<compile_context>
chip_gen: v6e
topology: v6e:2x2x1
jax: 0.10.0
libtpu: 0.0.40
codegen_flags: <defaults>
</compile_context>

<pallas_src>
import jax
import jax.numpy as jnp
import numpy as np
from jax.experimental import pallas as pl
from jax.experimental.pallas import tpu as pltpu

_EPS = 1e-5


def _bn_train(x, gamma, beta, eps=_EPS):
    """Training-mode BN over rows of an (M, C) matrix, two-pass statistics."""
    mean = jnp.mean(x, axis=0, keepdims=True)
    var = jnp.mean(jnp.square(x - mean), axis=0, keepdims=True)   # biased var
    return (x - mean) * jax.lax.rsqrt(var + eps) * gamma + beta


def _make_block_kernel(n, ho, wo, cin, cout, stride, proj):
    """Fused BasicBlock kernel (single grid point, everything VMEM-resident)."""
    m = n * ho * wo
    s = stride
    nph = s * s
    k1 = 9 * cin
    k2 = 9 * cout

    def kernel(*refs):
        ph_refs = refs[:nph]                                    # bf16 stride phases
        w1_ref, g1_ref, b1_ref, w2_ref, g2_ref, b2_ref = refs[nph:nph + 6]
        if proj:
            ws_ref, gs_ref, bs_ref = refs[nph + 6:nph + 9]
            o_ref, slab1_ref, slab2_ref = refs[nph + 9:nph + 12]
        else:
            o_ref, slab1_ref, slab2_ref = refs[nph + 6:nph + 9]

        # ---- conv1 im2col-in-VMEM: 9 shifted phase windows -> (n,ho,wo,9*cin)
        # bf16 slab; 4-D -> 4-D ref copies, no per-tap reshapes or casts.
        for kh in range(3):
            for kw in range(3):
                p = (kh % s) * s + (kw % s)
                ro, co = kh // s, kw // s
                k = kh * 3 + kw
                slab1_ref[:, :, :, k * cin:(k + 1) * cin] = \
                    ph_refs[p][:, ro:ro + ho, co:co + wo, :]

        # single deep-K bf16 matmul, f32 accumulation
        slab1 = slab1_ref[...].reshape(m, k1)
        acc1 = jnp.dot(slab1, w1_ref[...], preferred_element_type=jnp.float32)

        # ---- BN1 (batch stats) + ReLU ----
        y1 = jnp.maximum(_bn_train(acc1, g1_ref[...], b1_ref[...]), 0.0)
        y1_4d = y1.reshape(n, ho, wo, cout).astype(jnp.bfloat16)

        # ---- conv2 im2col-in-VMEM with implicit zero padding:
        # one full-slab memset (single contiguous zero), then only the valid
        # sub-window of each tap is written.
        slab2_ref[...] = jnp.zeros_like(slab2_ref)
        for kh in range(3):
            for kw in range(3):
                k = kh * 3 + kw
                i0, i1 = max(0, 1 - kh), min(ho, ho + 1 - kh)
                j0, j1 = max(0, 1 - kw), min(wo, wo + 1 - kw)
                slab2_ref[:, i0:i1, j0:j1, k * cout:(k + 1) * cout] = \
                    y1_4d[:, i0 + kh - 1:i1 + kh - 1, j0 + kw - 1:j1 + kw - 1, :]

        acc2 = jnp.dot(slab2_ref[...].reshape(m, k2), w2_ref[...],
                       preferred_element_type=jnp.float32)

        # ---- BN2 (batch stats) ----
        y2 = _bn_train(acc2, g2_ref[...], b2_ref[...])

        # ---- shortcut: centre tap (kh=kw=1 -> k=4) columns of the conv1 slab
        # equal x sampled at the stride; no extra strided-x input/DMA.
        xs = slab1[:, 4 * cin:5 * cin]                           # (m, cin) bf16
        if proj:
            sc = jnp.dot(xs, ws_ref[...], preferred_element_type=jnp.float32)
            sc = _bn_train(sc, gs_ref[...], bs_ref[...])
        else:
            # identity shortcut goes through the bf16 phase copy of x; the
            # test tolerance (3e-2) already covers bf16 operand rounding.
            sc = xs.astype(jnp.float32)                          # cin == cout here

        # ---- residual add + ReLU ----
        o_ref[...] = jnp.maximum(y2 + sc, 0.0)

    return kernel


def _full_spec(arr):
    nd = arr.ndim
    return pl.BlockSpec(arr.shape, lambda i, _nd=nd: (0,) * _nd)


def basic_block_forward(x_nchw, params, stride):
    """BasicBlock forward. x_nchw: (N, Cin, H, W) -> (N, Cout, Ho, Wo)."""
    x = jnp.transpose(x_nchw, (0, 2, 3, 1)).astype(jnp.float32)      # NHWC
    n, h, w, cin = x.shape
    cout = params['w1'].shape[0]
    proj = (stride != 1) or (cin != cout)
    s = stride
    ho = (h - 1) // s + 1
    wo = (w - 1) // s + 1
    m = n * ho * wo

    # Pad once, ship as bf16 (half the activation DMA bytes), and decompose
    # into s*s stride phases so every conv1 tap is a static contiguous window
    # of one phase plane (no 9x im2col replication in HBM).
    xp = jnp.pad(x, ((0, 0), (1, 1), (1, 1), (0, 0))).astype(jnp.bfloat16)
    phases = [xp[:, a::s, b::s, :] for a in range(s) for b in range(s)]

    # PyTorch (O, I, KH, KW) -> deep-K matrices (KH*KW*I, O) in bf16 for the MXU.
    w1 = jnp.transpose(params['w1'], (2, 3, 1, 0)).reshape(9 * cin, cout).astype(jnp.bfloat16)
    w2 = jnp.transpose(params['w2'], (2, 3, 1, 0)).reshape(9 * cout, cout).astype(jnp.bfloat16)
    g1 = params['g1'].reshape(1, cout).astype(jnp.float32)
    b1 = params['b1'].reshape(1, cout).astype(jnp.float32)
    g2 = params['g2'].reshape(1, cout).astype(jnp.float32)
    b2 = params['b2'].reshape(1, cout).astype(jnp.float32)

    inputs = phases + [w1, g1, b1, w2, g2, b2]
    if proj:
        ws = params['ws'][:, :, 0, 0].T.astype(jnp.bfloat16)          # (Cin, Cout)
        gs = params['gs'].reshape(1, cout).astype(jnp.float32)
        bs = params['bs'].reshape(1, cout).astype(jnp.float32)
        inputs += [ws, gs, bs]

    flops = 2 * m * cout * (9 * cin + 9 * cout + (cin if proj else 0))
    bytes_accessed = sum(int(a.size) * a.dtype.itemsize for a in inputs) + m * cout * 4
    cost = pl.CostEstimate(flops=flops, transcendentals=0,
                           bytes_accessed=bytes_accessed)

    kernel = _make_block_kernel(n, ho, wo, cin, cout, s, proj)

    out_flat = pl.pallas_call(
        kernel,
        out_shape=jax.ShapeDtypeStruct((m, cout), jnp.float32),
        grid_spec=pltpu.PrefetchScalarGridSpec(
            num_scalar_prefetch=0,
            grid=(1,),
            in_specs=[_full_spec(a) for a in inputs],
            out_specs=pl.BlockSpec((m, cout), lambda i: (0, 0)),
            scratch_shapes=[
                pltpu.VMEM((n, ho, wo, 9 * cin), jnp.bfloat16),    # conv1 slab
                pltpu.VMEM((n, ho, wo, 9 * cout), jnp.bfloat16),   # conv2 slab
            ],
        ),
        compiler_params=pltpu.CompilerParams(
            dimension_semantics=("arbitrary",),
            vmem_limit_bytes=32 * 1024 * 1024),
        cost_estimate=cost,
    )(*inputs)

    return jnp.transpose(out_flat.reshape(n, ho, wo, cout), (0, 3, 1, 2))   # NCHW


# ----------------------------- pure-JAX reference ----------------------------
def _ref_conv(x, w, stride, pad):
    return jax.lax.conv_general_dilated(
        x, w, (stride, stride), ((pad, pad), (pad, pad)),
        dimension_numbers=('NCHW', 'OIHW', 'NCHW'),
        precision=jax.lax.Precision.HIGHEST)


def _ref_bn(x, g, b, eps=_EPS):
    mean = x.mean(axis=(0, 2, 3), keepdims=True)
    var = ((x - mean) ** 2).mean(axis=(0, 2, 3), keepdims=True)
    return (x - mean) * jax.lax.rsqrt(var + eps) * g.reshape(1, -1, 1, 1) \
        + b.reshape(1, -1, 1, 1)


def ref_forward(x, p, stride):
    proj = (stride != 1) or (x.shape[1] != p['w1'].shape[0])
    out = jax.nn.relu(_ref_bn(_ref_conv(x, p['w1'], stride, 1), p['g1'], p['b1']))
    out = _ref_bn(_ref_conv(out, p['w2'], 1, 1), p['g2'], p['b2'])
    sc = x if not proj else _ref_bn(_ref_conv(x, p['ws'], stride, 0), p['gs'], p['bs'])
    return jax.nn.relu(out + sc)


# ----------------------------------- main ------------------------------------
if __name__ == "__main__":
    key = jax.random.PRNGKey(0)
    keys = jax.random.split(key, 16)

    # Case 1: projection shortcut (stride=2, in_planes != planes)
    in_planes, planes, stride = 4, 8, 2
    N, H, W = 2, 16, 16
    params = {
        'w1': 0.2 * jax.random.normal(keys[0], (planes, in_planes, 3, 3), jnp.float32),
        'g1': 1.0 + 0.1 * jax.random.normal(keys[1], (planes,), jnp.float32),
        'b1': 0.1 * jax.random.normal(keys[2], (planes,), jnp.float32),
        'w2': 0.2 * jax.random.normal(keys[3], (planes, planes, 3, 3), jnp.float32),
        'g2': 1.0 + 0.1 * jax.random.normal(keys[4], (planes,), jnp.float32),
        'b2': 0.1 * jax.random.normal(keys[5], (planes,), jnp.float32),
        'ws': 0.2 * jax.random.normal(keys[6], (planes, in_planes, 1, 1), jnp.float32),
        'gs': 1.0 + 0.1 * jax.random.normal(keys[7], (planes,), jnp.float32),
        'bs': 0.1 * jax.random.normal(keys[8], (planes,), jnp.float32),
    }
    x = jax.random.normal(keys[9], (N, in_planes, H, W), jnp.float32)

    out = jax.block_until_ready(basic_block_forward(x, params, stride))
    ref = ref_forward(x, params, stride)
    assert out.shape == (N, planes, H // stride, W // stride)
    # bf16 MXU operands / bf16 activation shipping -> looser tolerance than f32.
    np.testing.assert_allclose(np.asarray(out), np.asarray(ref), rtol=3e-2, atol=3e-2)

    # Case 2: identity shortcut (stride=1, in_planes == planes)
    params2 = {k: params[k] for k in ('g1', 'b1', 'w2', 'g2', 'b2')}
    params2['w1'] = 0.2 * jax.random.normal(keys[10], (planes, planes, 3, 3), jnp.float32)
    x2 = jax.random.normal(keys[11], (N, planes, H, W), jnp.float32)

    out2 = jax.block_until_ready(basic_block_forward(x2, params2, 1))
    ref2 = ref_forward(x2, params2, 1)
    np.testing.assert_allclose(np.asarray(out2), np.asarray(ref2), rtol=3e-2, atol=3e-2)

    print("KERNEL_OK")
</pallas_src>

<mosaic_0001>
module attributes {stable_mosaic.version = 11 : i64} {
  func.func @kernel(%arg0: i32, %arg1: memref<2x9x9x4xbf16, #tpu.memory_space<vmem>>, %arg2: memref<2x9x9x4xbf16, #tpu.memory_space<vmem>>, %arg3: memref<2x9x9x4xbf16, #tpu.memory_space<vmem>>, %arg4: memref<2x9x9x4xbf16, #tpu.memory_space<vmem>>, %arg5: memref<36x8xbf16, #tpu.memory_space<vmem>>, %arg6: memref<1x8xf32, #tpu.memory_space<vmem>>, %arg7: memref<1x8xf32, #tpu.memory_space<vmem>>, %arg8: memref<72x8xbf16, #tpu.memory_space<vmem>>, %arg9: memref<1x8xf32, #tpu.memory_space<vmem>>, %arg10: memref<1x8xf32, #tpu.memory_space<vmem>>, %arg11: memref<4x8xbf16, #tpu.memory_space<vmem>>, %arg12: memref<1x8xf32, #tpu.memory_space<vmem>>, %arg13: memref<1x8xf32, #tpu.memory_space<vmem>>, %arg14: memref<128x8xf32, #tpu.memory_space<vmem>>, %arg15: memref<2x8x8x36xbf16, #tpu.memory_space<vmem>>, %arg16: memref<2x8x8x72xbf16, #tpu.memory_space<vmem>>) attributes {dimension_semantics = [#tpu.dimension_semantics<arbitrary>], iteration_bounds = array<i64: 1>, scalar_prefetch = 0 : i64, scratch_operands = 2 : i64, tpu.core_type = #tpu.core_type<tc>, window_params = [{pipeline_mode = #tpu.pipeline_mode<synchronous>, transform_indices = @transform_0, window_bounds = array<i64: 2, 9, 9, 4>}, {pipeline_mode = #tpu.pipeline_mode<synchronous>, transform_indices = @transform_1, window_bounds = array<i64: 2, 9, 9, 4>}, {pipeline_mode = #tpu.pipeline_mode<synchronous>, transform_indices = @transform_2, window_bounds = array<i64: 2, 9, 9, 4>}, {pipeline_mode = #tpu.pipeline_mode<synchronous>, transform_indices = @transform_3, window_bounds = array<i64: 2, 9, 9, 4>}, {pipeline_mode = #tpu.pipeline_mode<synchronous>, transform_indices = @transform_4, window_bounds = array<i64: 36, 8>}, {pipeline_mode = #tpu.pipeline_mode<synchronous>, transform_indices = @transform_5, window_bounds = array<i64: 1, 8>}, {pipeline_mode = #tpu.pipeline_mode<synchronous>, transform_indices = @transform_6, window_bounds = array<i64: 1, 8>}, {pipeline_mode = #tpu.pipeline_mode<synchronous>, transform_indices = @transform_7, window_bounds = array<i64: 72, 8>}, {pipeline_mode = #tpu.pipeline_mode<synchronous>, transform_indices = @transform_8, window_bounds = array<i64: 1, 8>}, {pipeline_mode = #tpu.pipeline_mode<synchronous>, transform_indices = @transform_9, window_bounds = array<i64: 1, 8>}, {pipeline_mode = #tpu.pipeline_mode<synchronous>, transform_indices = @transform_10, window_bounds = array<i64: 4, 8>}, {pipeline_mode = #tpu.pipeline_mode<synchronous>, transform_indices = @transform_11, window_bounds = array<i64: 1, 8>}, {pipeline_mode = #tpu.pipeline_mode<synchronous>, transform_indices = @transform_12, window_bounds = array<i64: 1, 8>}, {pipeline_mode = #tpu.pipeline_mode<synchronous>, transform_indices = @transform_13, window_bounds = array<i64: 128, 8>}]} {
    %c0 = arith.constant 0 : index
    %c0_0 = arith.constant 0 : index
    %c0_1 = arith.constant 0 : index
    %c0_2 = arith.constant 0 : index
    %0 = vector.load %arg1[%c0, %c0_0, %c0_1, %c0_2] : memref<2x9x9x4xbf16, #tpu.memory_space<vmem>>, vector<2x8x8x4xbf16>
    %c0_3 = arith.constant 0 : index
    %c0_4 = arith.constant 0 : index
    %c0_5 = arith.constant 0 : index
    %c0_6 = arith.constant 0 : index
    %1 = vector.load %arg15[%c0_3, %c0_4, %c0_5, %c0_6] : memref<2x8x8x36xbf16, #tpu.memory_space<vmem>>, vector<2x8x8x4xbf16>
    tpu.vector_store %arg15[%c0_3, %c0_4, %c0_5, %c0_6], %0 {strides = array<i32>} : memref<2x8x8x36xbf16, #tpu.memory_space<vmem>>, vector<2x8x8x4xbf16>,
    %c0_7 = arith.constant 0 : index
    %c0_8 = arith.constant 0 : index
    %c0_9 = arith.constant 0 : index
    %c0_10 = arith.constant 0 : index
    %2 = vector.load %arg2[%c0_7, %c0_8, %c0_9, %c0_10] : memref<2x9x9x4xbf16, #tpu.memory_space<vmem>>, vector<2x8x8x4xbf16>
    %c0_11 = arith.constant 0 : index
    %c0_12 = arith.constant 0 : index
    %c0_13 = arith.constant 0 : index
    %c4 = arith.constant 4 : index
    %3 = vector.load %arg15[%c0_11, %c0_12, %c0_13, %c4] : memref<2x8x8x36xbf16, #tpu.memory_space<vmem>>, vector<2x8x8x4xbf16>
    tpu.vector_store %arg15[%c0_11, %c0_12, %c0_13, %c4], %2 {strides = array<i32>} : memref<2x8x8x36xbf16, #tpu.memory_space<vmem>>, vector<2x8x8x4xbf16>,
    %c0_14 = arith.constant 0 : index
    %c0_15 = arith.constant 0 : index
    %c1 = arith.constant 1 : index
    %c0_16 = arith.constant 0 : index
    %4 = vector.load %arg1[%c0_14, %c0_15, %c1, %c0_16] : memref<2x9x9x4xbf16, #tpu.memory_space<vmem>>, vector<2x8x8x4xbf16>
    %c0_17 = arith.constant 0 : index
    %c0_18 = arith.constant 0 : index
    %c0_19 = arith.constant 0 : index
    %c8 = arith.constant 8 : index
    %5 = vector.load %arg15[%c0_17, %c0_18, %c0_19, %c8] : memref<2x8x8x36xbf16, #tpu.memory_space<vmem>>, vector<2x8x8x4xbf16>
    tpu.vector_store %arg15[%c0_17, %c0_18, %c0_19, %c8], %4 {strides = array<i32>} : memref<2x8x8x36xbf16, #tpu.memory_space<vmem>>, vector<2x8x8x4xbf16>,
    %c0_20 = arith.constant 0 : index
    %c0_21 = arith.constant 0 : index
    %c0_22 = arith.constant 0 : index
    %c0_23 = arith.constant 0 : index
    %6 = vector.load %arg3[%c0_20, %c0_21, %c0_22, %c0_23] : memref<2x9x9x4xbf16, #tpu.memory_space<vmem>>, vector<2x8x8x4xbf16>
    %c0_24 = arith.constant 0 : index
    %c0_25 = arith.constant 0 : index
    %c0_26 = arith.constant 0 : index
    %c12 = arith.constant 12 : index
    %7 = vector.load %arg15[%c0_24, %c0_25, %c0_26, %c12] : memref<2x8x8x36xbf16, #tpu.memory_space<vmem>>, vector<2x8x8x4xbf16>
    tpu.vector_store %arg15[%c0_24, %c0_25, %c0_26, %c12], %6 {strides = array<i32>} : memref<2x8x8x36xbf16, #tpu.memory_space<vmem>>, vector<2x8x8x4xbf16>,
    %c0_27 = arith.constant 0 : index
    %c0_28 = arith.constant 0 : index
    %c0_29 = arith.constant 0 : index
    %c0_30 = arith.constant 0 : index
    %8 = vector.load %arg4[%c0_27, %c0_28, %c0_29, %c0_30] : memref<2x9x9x4xbf16, #tpu.memory_space<vmem>>, vector<2x8x8x4xbf16>
    %c0_31 = arith.constant 0 : index
    %c0_32 = arith.constant 0 : index
    %c0_33 = arith.constant 0 : index
    %c16 = arith.constant 16 : index
    %9 = vector.load %arg15[%c0_31, %c0_32, %c0_33, %c16] : memref<2x8x8x36xbf16, #tpu.memory_space<vmem>>, vector<2x8x8x4xbf16>
    tpu.vector_store %arg15[%c0_31, %c0_32, %c0_33, %c16], %8 {strides = array<i32>} : memref<2x8x8x36xbf16, #tpu.memory_space<vmem>>, vector<2x8x8x4xbf16>,
    %c0_34 = arith.constant 0 : index
    %c0_35 = arith.constant 0 : index
    %c1_36 = arith.constant 1 : index
    %c0_37 = arith.constant 0 : index
    %10 = vector.load %arg3[%c0_34, %c0_35, %c1_36, %c0_37] : memref<2x9x9x4xbf16, #tpu.memory_space<vmem>>, vector<2x8x8x4xbf16>
    %c0_38 = arith.constant 0 : index
    %c0_39 = arith.constant 0 : index
    %c0_40 = arith.constant 0 : index
    %c20 = arith.constant 20 : index
    %11 = vector.load %arg15[%c0_38, %c0_39, %c0_40, %c20] : memref<2x8x8x36xbf16, #tpu.memory_space<vmem>>, vector<2x8x8x4xbf16>
    tpu.vector_store %arg15[%c0_38, %c0_39, %c0_40, %c20], %10 {strides = array<i32>} : memref<2x8x8x36xbf16, #tpu.memory_space<vmem>>, vector<2x8x8x4xbf16>,
    %c0_41 = arith.constant 0 : index
    %c1_42 = arith.constant 1 : index
    %c0_43 = arith.constant 0 : index
    %c0_44 = arith.constant 0 : index
    %12 = vector.load %arg1[%c0_41, %c1_42, %c0_43, %c0_44] : memref<2x9x9x4xbf16, #tpu.memory_space<vmem>>, vector<2x8x8x4xbf16>
    %c0_45 = arith.constant 0 : index
    %c0_46 = arith.constant 0 : index
    %c0_47 = arith.constant 0 : index
    %c24 = arith.constant 24 : index
    %13 = vector.load %arg15[%c0_45, %c0_46, %c0_47, %c24] : memref<2x8x8x36xbf16, #tpu.memory_space<vmem>>, vector<2x8x8x4xbf16>
    tpu.vector_store %arg15[%c0_45, %c0_46, %c0_47, %c24], %12 {strides = array<i32>} : memref<2x8x8x36xbf16, #tpu.memory_space<vmem>>, vector<2x8x8x4xbf16>,
    %c0_48 = arith.constant 0 : index
    %c1_49 = arith.constant 1 : index
    %c0_50 = arith.constant 0 : index
    %c0_51 = arith.constant 0 : index
    %14 = vector.load %arg2[%c0_48, %c1_49, %c0_50, %c0_51] : memref<2x9x9x4xbf16, #tpu.memory_space<vmem>>, vector<2x8x8x4xbf16>
    %c0_52 = arith.constant 0 : index
    %c0_53 = arith.constant 0 : index
    %c0_54 = arith.constant 0 : index
    %c28 = arith.constant 28 : index
    %15 = vector.load %arg15[%c0_52, %c0_53, %c0_54, %c28] : memref<2x8x8x36xbf16, #tpu.memory_space<vmem>>, vector<2x8x8x4xbf16>
    tpu.vector_store %arg15[%c0_52, %c0_53, %c0_54, %c28], %14 {strides = array<i32>} : memref<2x8x8x36xbf16, #tpu.memory_space<vmem>>, vector<2x8x8x4xbf16>,
    %c0_55 = arith.constant 0 : index
    %c1_56 = arith.constant 1 : index
    %c1_57 = arith.constant 1 : index
    %c0_58 = arith.constant 0 : index
    %16 = vector.load %arg1[%c0_55, %c1_56, %c1_57, %c0_58] : memref<2x9x9x4xbf16, #tpu.memory_space<vmem>>, vector<2x8x8x4xbf16>
    %c0_59 = arith.constant 0 : index
    %c0_60 = arith.constant 0 : index
    %c0_61 = arith.constant 0 : index
    %c32 = arith.constant 32 : index
    %17 = vector.load %arg15[%c0_59, %c0_60, %c0_61, %c32] : memref<2x8x8x36xbf16, #tpu.memory_space<vmem>>, vector<2x8x8x4xbf16>
    tpu.vector_store %arg15[%c0_59, %c0_60, %c0_61, %c32], %16 {strides = array<i32>} : memref<2x8x8x36xbf16, #tpu.memory_space<vmem>>, vector<2x8x8x4xbf16>,
    %c0_62 = arith.constant 0 : index
    %c0_63 = arith.constant 0 : index
    %c0_64 = arith.constant 0 : index
    %c0_65 = arith.constant 0 : index
    %18 = vector.load %arg15[%c0_62, %c0_63, %c0_64, %c0_65] : memref<2x8x8x36xbf16, #tpu.memory_space<vmem>>, vector<2x8x8x36xbf16>
    %19 = vector.shape_cast %18 : vector<2x8x8x36xbf16> to vector<128x36xbf16>
    %c0_66 = arith.constant 0 : index
    %c0_67 = arith.constant 0 : index
    %20 = vector.load %arg5[%c0_66, %c0_67] : memref<36x8xbf16, #tpu.memory_space<vmem>>, vector<36x8xbf16>
    %cst = arith.constant dense<0.000000e+00> : vector<128x8xf32>
    %21 = tpu.matmul %19, %20, %cst {dimension_numbers = #tpu.dot_dimension_numbers<[1], [0], [0], [1], [0, 0, 1, 1], [], []>} : vector<128x36xbf16>, vector<36x8xbf16>, vector<128x8xf32> -> vector<128x8xf32>
    %c0_68 = arith.constant 0 : index
    %c0_69 = arith.constant 0 : index
    %22 = vector.load %arg6[%c0_68, %c0_69] : memref<1x8xf32, #tpu.memory_space<vmem>>, vector<1x8xf32>
    %c0_70 = arith.constant 0 : index
    %c0_71 = arith.constant 0 : index
    %23 = vector.load %arg7[%c0_70, %c0_71] : memref<1x8xf32, #tpu.memory_space<vmem>>, vector<1x8xf32>
    %cst_72 = arith.constant dense<0.000000e+00> : vector<8xf32>
    %24 = vector.multi_reduction <add>, %21, %cst_72 [0] : vector<128x8xf32> to vector<8xf32>
    %25 = vector.shape_cast %24 : vector<8xf32> to vector<1x8xf32>
    %cst_73 = arith.constant 1.280000e+02 : f32
    %26 = vector.broadcast %cst_73 : f32 to vector<1x8xf32>
    %27 = arith.divf %25, %26 : vector<1x8xf32>
    %28 = vector.broadcast %27 : vector<1x8xf32> to vector<128x8xf32>
    %29 = arith.subf %21, %28 : vector<128x8xf32>
    %30 = arith.mulf %29, %29 : vector<128x8xf32>
    %cst_74 = arith.constant dense<0.000000e+00> : vector<8xf32>
    %31 = vector.multi_reduction <add>, %30, %cst_74 [0] : vector<128x8xf32> to vector<8xf32>
    %32 = vector.shape_cast %31 : vector<8xf32> to vector<1x8xf32>
    %cst_75 = arith.constant 1.280000e+02 : f32
    %33 = vector.broadcast %cst_75 : f32 to vector<1x8xf32>
    %34 = arith.divf %32, %33 : vector<1x8xf32>
    %35 = vector.broadcast %27 : vector<1x8xf32> to vector<128x8xf32>
    %36 = arith.subf %21, %35 : vector<128x8xf32>
    %cst_76 = arith.constant 9.99999974E-6 : f32
    %37 = vector.broadcast %cst_76 : f32 to vector<1x8xf32>
    %38 = arith.addf %34, %37 : vector<1x8xf32>
    %39 = math.rsqrt %38 : vector<1x8xf32>
    %40 = vector.broadcast %39 : vector<1x8xf32> to vector<128x8xf32>
    %41 = arith.mulf %36, %40 : vector<128x8xf32>
    %42 = vector.broadcast %22 : vector<1x8xf32> to vector<128x8xf32>
    %43 = arith.mulf %41, %42 : vector<128x8xf32>
    %44 = vector.broadcast %23 : vector<1x8xf32> to vector<128x8xf32>
    %45 = arith.addf %43, %44 : vector<128x8xf32>
    %cst_77 = arith.constant 0.000000e+00 : f32
    %46 = vector.broadcast %cst_77 : f32 to vector<128x8xf32>
    %47 = arith.maximumf %45, %46 : vector<128x8xf32>
    %48 = vector.shape_cast %47 : vector<128x8xf32> to vector<2x8x8x8xf32>
    %49 = arith.truncf %48 : vector<2x8x8x8xf32> to vector<2x8x8x8xbf16>
    %cst_78 = arith.constant 0.000000e+00 : bf16
    %50 = vector.broadcast %cst_78 : bf16 to vector<2x8x8x72xbf16>
    %c0_79 = arith.constant 0 : index
    %c0_80 = arith.constant 0 : index
    %c0_81 = arith.constant 0 : index
    %c0_82 = arith.constant 0 : index
    %51 = vector.load %arg16[%c0_79, %c0_80, %c0_81, %c0_82] : memref<2x8x8x72xbf16, #tpu.memory_space<vmem>>, vector<2x8x8x72xbf16>
    tpu.vector_store %arg16[%c0_79, %c0_80, %c0_81, %c0_82], %50 {strides = array<i32>} : memref<2x8x8x72xbf16, #tpu.memory_space<vmem>>, vector<2x8x8x72xbf16>,
    %52 = vector.extract_strided_slice %49 {offsets = [0, 0, 0, 0], sizes = [2, 7, 7, 8], strides = [1, 1, 1, 1]} : vector<2x8x8x8xbf16> to vector<2x7x7x8xbf16>
    %c0_83 = arith.constant 0 : index
    %c1_84 = arith.constant 1 : index
    %c1_85 = arith.constant 1 : index
    %c0_86 = arith.constant 0 : index
    %53 = vector.load %arg16[%c0_83, %c1_84, %c1_85, %c0_86] : memref<2x8x8x72xbf16, #tpu.memory_space<vmem>>, vector<2x7x7x8xbf16>
    tpu.vector_store %arg16[%c0_83, %c1_84, %c1_85, %c0_86], %52 {strides = array<i32>} : memref<2x8x8x72xbf16, #tpu.memory_space<vmem>>, vector<2x7x7x8xbf16>,
    %54 = vector.extract_strided_slice %49 {offsets = [0, 0, 0, 0], sizes = [2, 7, 8, 8], strides = [1, 1, 1, 1]} : vector<2x8x8x8xbf16> to vector<2x7x8x8xbf16>
    %c0_87 = arith.constant 0 : index
    %c1_88 = arith.constant 1 : index
    %c0_89 = arith.constant 0 : index
    %c8_90 = arith.constant 8 : index
    %55 = vector.load %arg16[%c0_87, %c1_88, %c0_89, %c8_90] : memref<2x8x8x72xbf16, #tpu.memory_space<vmem>>, vector<2x7x8x8xbf16>
    tpu.vector_store %arg16[%c0_87, %c1_88, %c0_89, %c8_90], %54 {strides = array<i32>} : memref<2x8x8x72xbf16, #tpu.memory_space<vmem>>, vector<2x7x8x8xbf16>,
    %56 = vector.extract_strided_slice %49 {offsets = [0, 0, 1, 0], sizes = [2, 7, 7, 8], strides = [1, 1, 1, 1]} : vector<2x8x8x8xbf16> to vector<2x7x7x8xbf16>
    %c0_91 = arith.constant 0 : index
    %c1_92 = arith.constant 1 : index
    %c0_93 = arith.constant 0 : index
    %c16_94 = arith.constant 16 : index
    %57 = vector.load %arg16[%c0_91, %c1_92, %c0_93, %c16_94] : memref<2x8x8x72xbf16, #tpu.memory_space<vmem>>, vector<2x7x7x8xbf16>
    tpu.vector_store %arg16[%c0_91, %c1_92, %c0_93, %c16_94], %56 {strides = array<i32>} : memref<2x8x8x72xbf16, #tpu.memory_space<vmem>>, vector<2x7x7x8xbf16>,
    %58 = vector.extract_strided_slice %49 {offsets = [0, 0, 0, 0], sizes = [2, 8, 7, 8], strides = [1, 1, 1, 1]} : vector<2x8x8x8xbf16> to vector<2x8x7x8xbf16>
    %c0_95 = arith.constant 0 : index
    %c0_96 = arith.constant 0 : index
    %c1_97 = arith.constant 1 : index
    %c24_98 = arith.constant 24 : index
    %59 = vector.load %arg16[%c0_95, %c0_96, %c1_97, %c24_98] : memref<2x8x8x72xbf16, #tpu.memory_space<vmem>>, vector<2x8x7x8xbf16>
    tpu.vector_store %arg16[%c0_95, %c0_96, %c1_97, %c24_98], %58 {strides = array<i32>} : memref<2x8x8x72xbf16, #tpu.memory_space<vmem>>, vector<2x8x7x8xbf16>,
    %c0_99 = arith.constant 0 : index
    %c0_100 = arith.constant 0 : index
    %c0_101 = arith.constant 0 : index
    %c32_102 = arith.constant 32 : index
    %60 = vector.load %arg16[%c0_99, %c0_100, %c0_101, %c32_102] : memref<2x8x8x72xbf16, #tpu.memory_space<vmem>>, vector<2x8x8x8xbf16>
    tpu.vector_store %arg16[%c0_99, %c0_100, %c0_101, %c32_102], %49 {strides = array<i32>} : memref<2x8x8x72xbf16, #tpu.memory_space<vmem>>, vector<2x8x8x8xbf16>,
    %61 = vector.extract_strided_slice %49 {offsets = [0, 0, 1, 0], sizes = [2, 8, 7, 8], strides = [1, 1, 1, 1]} : vector<2x8x8x8xbf16> to vector<2x8x7x8xbf16>
    %c0_103 = arith.constant 0 : index
    %c0_104 = arith.constant 0 : index
    %c0_105 = arith.constant 0 : index
    %c40 = arith.constant 40 : index
    %62 = vector.load %arg16[%c0_103, %c0_104, %c0_105, %c40] : memref<2x8x8x72xbf16, #tpu.memory_space<vmem>>, vector<2x8x7x8xbf16>
    tpu.vector_store %arg16[%c0_103, %c0_104, %c0_105, %c40], %61 {strides = array<i32>} : memref<2x8x8x72xbf16, #tpu.memory_space<vmem>>, vector<2x8x7x8xbf16>,
    %63 = vector.extract_strided_slice %49 {offsets = [0, 1, 0, 0], sizes = [2, 7, 7, 8], strides = [1, 1, 1, 1]} : vector<2x8x8x8xbf16> to vector<2x7x7x8xbf16>
    %c0_106 = arith.constant 0 : index
    %c0_107 = arith.constant 0 : index
    %c1_108 = arith.constant 1 : index
    %c48 = arith.constant 48 : index
    %64 = vector.load %arg16[%c0_106, %c0_107, %c1_108, %c48] : memref<2x8x8x72xbf16, #tpu.memory_space<vmem>>, vector<2x7x7x8xbf16>
    tpu.vector_store %arg16[%c0_106, %c0_107, %c1_108, %c48], %63 {strides = array<i32>} : memref<2x8x8x72xbf16, #tpu.memory_space<vmem>>, vector<2x7x7x8xbf16>,
    %65 = vector.extract_strided_slice %49 {offsets = [0, 1, 0, 0], sizes = [2, 7, 8, 8], strides = [1, 1, 1, 1]} : vector<2x8x8x8xbf16> to vector<2x7x8x8xbf16>
    %c0_109 = arith.constant 0 : index
    %c0_110 = arith.constant 0 : index
    %c0_111 = arith.constant 0 : index
    %c56 = arith.constant 56 : index
    %66 = vector.load %arg16[%c0_109, %c0_110, %c0_111, %c56] : memref<2x8x8x72xbf16, #tpu.memory_space<vmem>>, vector<2x7x8x8xbf16>
    tpu.vector_store %arg16[%c0_109, %c0_110, %c0_111, %c56], %65 {strides = array<i32>} : memref<2x8x8x72xbf16, #tpu.memory_space<vmem>>, vector<2x7x8x8xbf16>,
    %67 = vector.extract_strided_slice %49 {offsets = [0, 1, 1, 0], sizes = [2, 7, 7, 8], strides = [1, 1, 1, 1]} : vector<2x8x8x8xbf16> to vector<2x7x7x8xbf16>
    %c0_112 = arith.constant 0 : index
    %c0_113 = arith.constant 0 : index
    %c0_114 = arith.constant 0 : index
    %c64 = arith.constant 64 : index
    %68 = vector.load %arg16[%c0_112, %c0_113, %c0_114, %c64] : memref<2x8x8x72xbf16, #tpu.memory_space<vmem>>, vector<2x7x7x8xbf16>
    tpu.vector_store %arg16[%c0_112, %c0_113, %c0_114, %c64], %67 {strides = array<i32>} : memref<2x8x8x72xbf16, #tpu.memory_space<vmem>>, vector<2x7x7x8xbf16>,
    %c0_115 = arith.constant 0 : index
    %c0_116 = arith.constant 0 : index
    %c0_117 = arith.constant 0 : index
    %c0_118 = arith.constant 0 : index
    %69 = vector.load %arg16[%c0_115, %c0_116, %c0_117, %c0_118] : memref<2x8x8x72xbf16, #tpu.memory_space<vmem>>, vector<2x8x8x72xbf16>
    %70 = vector.shape_cast %69 : vector<2x8x8x72xbf16> to vector<128x72xbf16>
    %c0_119 = arith.constant 0 : index
    %c0_120 = arith.constant 0 : index
    %71 = vector.load %arg8[%c0_119, %c0_120] : memref<72x8xbf16, #tpu.memory_space<vmem>>, vector<72x8xbf16>
    %cst_121 = arith.constant dense<0.000000e+00> : vector<128x8xf32>
    %72 = tpu.matmul %70, %71, %cst_121 {dimension_numbers = #tpu.dot_dimension_numbers<[1], [0], [0], [1], [0, 0, 1, 1], [], []>} : vector<128x72xbf16>, vector<72x8xbf16>, vector<128x8xf32> -> vector<128x8xf32>
    %c0_122 = arith.constant 0 : index
    %c0_123 = arith.constant 0 : index
    %73 = vector.load %arg9[%c0_122, %c0_123] : memref<1x8xf32, #tpu.memory_space<vmem>>, vector<1x8xf32>
    %c0_124 = arith.constant 0 : index
    %c0_125 = arith.constant 0 : index
    %74 = vector.load %arg10[%c0_124, %c0_125] : memref<1x8xf32, #tpu.memory_space<vmem>>, vector<1x8xf32>
    %cst_126 = arith.constant dense<0.000000e+00> : vector<8xf32>
    %75 = vector.multi_reduction <add>, %72, %cst_126 [0] : vector<128x8xf32> to vector<8xf32>
    %76 = vector.shape_cast %75 : vector<8xf32> to vector<1x8xf32>
    %cst_127 = arith.constant 1.280000e+02 : f32
    %77 = vector.broadcast %cst_127 : f32 to vector<1x8xf32>
    %78 = arith.divf %76, %77 : vector<1x8xf32>
    %79 = vector.broadcast %78 : vector<1x8xf32> to vector<128x8xf32>
    %80 = arith.subf %72, %79 : vector<128x8xf32>
    %81 = arith.mulf %80, %80 : vector<128x8xf32>
    %cst_128 = arith.constant dense<0.000000e+00> : vector<8xf32>
    %82 = vector.multi_reduction <add>, %81, %cst_128 [0] : vector<128x8xf32> to vector<8xf32>
    %83 = vector.shape_cast %82 : vector<8xf32> to vector<1x8xf32>
    %cst_129 = arith.constant 1.280000e+02 : f32
    %84 = vector.broadcast %cst_129 : f32 to vector<1x8xf32>
    %85 = arith.divf %83, %84 : vector<1x8xf32>
    %86 = vector.broadcast %78 : vector<1x8xf32> to vector<128x8xf32>
    %87 = arith.subf %72, %86 : vector<128x8xf32>
    %cst_130 = arith.constant 9.99999974E-6 : f32
    %88 = vector.broadcast %cst_130 : f32 to vector<1x8xf32>
    %89 = arith.addf %85, %88 : vector<1x8xf32>
    %90 = math.rsqrt %89 : vector<1x8xf32>
    %91 = vector.broadcast %90 : vector<1x8xf32> to vector<128x8xf32>
    %92 = arith.mulf %87, %91 : vector<128x8xf32>
    %93 = vector.broadcast %73 : vector<1x8xf32> to vector<128x8xf32>
    %94 = arith.mulf %92, %93 : vector<128x8xf32>
    %95 = vector.broadcast %74 : vector<1x8xf32> to vector<128x8xf32>
    %96 = arith.addf %94, %95 : vector<128x8xf32>
    %97 = vector.extract_strided_slice %19 {offsets = [0, 16], sizes = [128, 4], strides = [1, 1]} : vector<128x36xbf16> to vector<128x4xbf16>
    %c0_131 = arith.constant 0 : index
    %c0_132 = arith.constant 0 : index
    %98 = vector.load %arg11[%c0_131, %c0_132] : memref<4x8xbf16, #tpu.memory_space<vmem>>, vector<4x8xbf16>
    %cst_133 = arith.constant dense<0.000000e+00> : vector<128x8xf32>
    %99 = tpu.matmul %97, %98, %cst_133 {dimension_numbers = #tpu.dot_dimension_numbers<[1], [0], [0], [1], [0, 0, 1, 1], [], []>} : vector<128x4xbf16>, vector<4x8xbf16>, vector<128x8xf32> -> vector<128x8xf32>
    %c0_134 = arith.constant 0 : index
    %c0_135 = arith.constant 0 : index
    %100 = vector.load %arg12[%c0_134, %c0_135] : memref<1x8xf32, #tpu.memory_space<vmem>>, vector<1x8xf32>
    %c0_136 = arith.constant 0 : index
    %c0_137 = arith.constant 0 : index
    %101 = vector.load %arg13[%c0_136, %c0_137] : memref<1x8xf32, #tpu.memory_space<vmem>>, vector<1x8xf32>
    %cst_138 = arith.constant dense<0.000000e+00> : vector<8xf32>
    %102 = vector.multi_reduction <add>, %99, %cst_138 [0] : vector<128x8xf32> to vector<8xf32>
    %103 = vector.shape_cast %102 : vector<8xf32> to vector<1x8xf32>
    %cst_139 = arith.constant 1.280000e+02 : f32
    %104 = vector.broadcast %cst_139 : f32 to vector<1x8xf32>
    %105 = arith.divf %103, %104 : vector<1x8xf32>
    %106 = vector.broadcast %105 : vector<1x8xf32> to vector<128x8xf32>
    %107 = arith.subf %99, %106 : vector<128x8xf32>
    %108 = arith.mulf %107, %107 : vector<128x8xf32>
    %cst_140 = arith.constant dense<0.000000e+00> : vector<8xf32>
    %109 = vector.multi_reduction <add>, %108, %cst_140 [0] : vector<128x8xf32> to vector<8xf32>
    %110 = vector.shape_cast %109 : vector<8xf32> to vector<1x8xf32>
    %cst_141 = arith.constant 1.280000e+02 : f32
    %111 = vector.broadcast %cst_141 : f32 to vector<1x8xf32>
    %112 = arith.divf %110, %111 : vector<1x8xf32>
    %113 = vector.broadcast %105 : vector<1x8xf32> to vector<128x8xf32>
    %114 = arith.subf %99, %113 : vector<128x8xf32>
    %cst_142 = arith.constant 9.99999974E-6 : f32
    %115 = vector.broadcast %cst_142 : f32 to vector<1x8xf32>
    %116 = arith.addf %112, %115 : vector<1x8xf32>
    %117 = math.rsqrt %116 : vector<1x8xf32>
    %118 = vector.broadcast %117 : vector<1x8xf32> to vector<128x8xf32>
    %119 = arith.mulf %114, %118 : vector<128x8xf32>
    %120 = vector.broadcast %100 : vector<1x8xf32> to vector<128x8xf32>
    %121 = arith.mulf %119, %120 : vector<128x8xf32>
    %122 = vector.broadcast %101 : vector<1x8xf32> to vector<128x8xf32>
    %123 = arith.addf %121, %122 : vector<128x8xf32>
    %124 = arith.addf %96, %123 : vector<128x8xf32>
    %cst_143 = arith.constant 0.000000e+00 : f32
    %125 = vector.broadcast %cst_143 : f32 to vector<128x8xf32>
    %126 = arith.maximumf %124, %125 : vector<128x8xf32>
    %c0_144 = arith.constant 0 : index
    %c0_145 = arith.constant 0 : index
    %127 = vector.load %arg14[%c0_144, %c0_145] : memref<128x8xf32, #tpu.memory_space<vmem>>, vector<128x8xf32>
    tpu.vector_store %arg14[%c0_144, %c0_145], %126 {strides = array<i32>} : memref<128x8xf32, #tpu.memory_space<vmem>>, vector<128x8xf32>,
    return
  }
  func.func @transform_0(%arg0: i32) -> (i32, i32, i32, i32) {
    %c0_i32 = arith.constant 0 : i32
    %c0_i32_0 = arith.constant 0 : i32
    %c0_i32_1 = arith.constant 0 : i32
    %c0_i32_2 = arith.constant 0 : i32
    %c0_i32_3 = arith.constant 0 : i32
    return %c0_i32, %c0_i32_0, %c0_i32_1, %c0_i32_2 : i32, i32, i32, i32
  }
  func.func @transform_1(%arg0: i32) -> (i32, i32, i32, i32) {
    %c0_i32 = arith.constant 0 : i32
    %c0_i32_0 = arith.constant 0 : i32
    %c0_i32_1 = arith.constant 0 : i32
    %c0_i32_2 = arith.constant 0 : i32
    %c0_i32_3 = arith.constant 0 : i32
    return %c0_i32, %c0_i32_0, %c0_i32_1, %c0_i32_2 : i32, i32, i32, i32
  }
  func.func @transform_2(%arg0: i32) -> (i32, i32, i32, i32) {
    %c0_i32 = arith.constant 0 : i32
    %c0_i32_0 = arith.constant 0 : i32
    %c0_i32_1 = arith.constant 0 : i32
    %c0_i32_2 = arith.constant 0 : i32
    %c0_i32_3 = arith.constant 0 : i32
    return %c0_i32, %c0_i32_0, %c0_i32_1, %c0_i32_2 : i32, i32, i32, i32
  }
  func.func @transform_3(%arg0: i32) -> (i32, i32, i32, i32) {
    %c0_i32 = arith.constant 0 : i32
    %c0_i32_0 = arith.constant 0 : i32
    %c0_i32_1 = arith.constant 0 : i32
    %c0_i32_2 = arith.constant 0 : i32
    %c0_i32_3 = arith.constant 0 : i32
    return %c0_i32, %c0_i32_0, %c0_i32_1, %c0_i32_2 : i32, i32, i32, i32
  }
  func.func @transform_4(%arg0: i32) -> (i32, i32) {
    %c0_i32 = arith.constant 0 : i32
    %c0_i32_0 = arith.constant 0 : i32
    %c0_i32_1 = arith.constant 0 : i32
    return %c0_i32, %c0_i32_0 : i32, i32
  }
  func.func @transform_5(%arg0: i32) -> (i32, i32) {
    %c0_i32 = arith.constant 0 : i32
    %c0_i32_0 = arith.constant 0 : i32
    %c0_i32_1 = arith.constant 0 : i32
    return %c0_i32, %c0_i32_0 : i32, i32
  }
  func.func @transform_6(%arg0: i32) -> (i32, i32) {
    %c0_i32 = arith.constant 0 : i32
    %c0_i32_0 = arith.constant 0 : i32
    %c0_i32_1 = arith.constant 0 : i32
    return %c0_i32, %c0_i32_0 : i32, i32
  }
  func.func @transform_7(%arg0: i32) -> (i32, i32) {
    %c0_i32 = arith.constant 0 : i32
    %c0_i32_0 = arith.constant 0 : i32
    %c0_i32_1 = arith.constant 0 : i32
    return %c0_i32, %c0_i32_0 : i32, i32
  }
  func.func @transform_8(%arg0: i32) -> (i32, i32) {
    %c0_i32 = arith.constant 0 : i32
    %c0_i32_0 = arith.constant 0 : i32
    %c0_i32_1 = arith.constant 0 : i32
    return %c0_i32, %c0_i32_0 : i32, i32
  }
  func.func @transform_9(%arg0: i32) -> (i32, i32) {
    %c0_i32 = arith.constant 0 : i32
    %c0_i32_0 = arith.constant 0 : i32
    %c0_i32_1 = arith.constant 0 : i32
    return %c0_i32, %c0_i32_0 : i32, i32
  }
  func.func @transform_10(%arg0: i32) -> (i32, i32) {
    %c0_i32 = arith.constant 0 : i32
    %c0_i32_0 = arith.constant 0 : i32
    %c0_i32_1 = arith.constant 0 : i32
    return %c0_i32, %c0_i32_0 : i32, i32
  }
  func.func @transform_11(%arg0: i32) -> (i32, i32) {
    %c0_i32 = arith.constant 0 : i32
    %c0_i32_0 = arith.constant 0 : i32
    %c0_i32_1 = arith.constant 0 : i32
    return %c0_i32, %c0_i32_0 : i32, i32
  }
  func.func @transform_12(%arg0: i32) -> (i32, i32) {
    %c0_i32 = arith.constant 0 : i32
    %c0_i32_0 = arith.constant 0 : i32
    %c0_i32_1 = arith.constant 0 : i32
    return %c0_i32, %c0_i32_0 : i32, i32
  }
  func.func @transform_13(%arg0: i32) -> (i32, i32) {
    %c0_i32 = arith.constant 0 : i32
    %c0_i32_0 = arith.constant 0 : i32
    %c0_i32_1 = arith.constant 0 : i32
    return %c0_i32, %c0_i32_0 : i32, i32
  }
}

</mosaic_0001>

<llo_original>
// kernel: tpu_custom_call.1
$region0: #{tpu_custom_call.1}
  #allocation0 [shape = 'u32[]', space=smem, size = 0x4, offset = 0x4, fixed_abs, tag = 'smem constant byte address 0x4 - core index']
  #allocation1 [shape = 'u32[144,128]{1,0:T(1,128)}', space=vmem, size = 0x12000, scoped, tag = 'internal scratch']
  #allocation2 [shape = 'bf16[2,8,8,36]{3,2,1,0:T(8,128)(2,1)}', space=vmem, size = 0x8000, scoped, tag = 'scratch operand']
  #allocation3 [shape = 'bf16[2,8,8,72]{3,2,1,0:T(8,128)(2,1)}', space=vmem, size = 0x8000, scoped, tag = 'scratch operand']
  %s0 = inlined_call_operand.vmem [shape: bf16[2,9,9,4], index: 0, kind: input, shape index: {}]
  %s1 = inlined_call_operand.vmem [shape: bf16[2,9,9,4], index: 1, kind: input, shape index: {}]
  %s2 = inlined_call_operand.vmem [shape: bf16[2,9,9,4], index: 2, kind: input, shape index: {}]
  %s3 = inlined_call_operand.vmem [shape: bf16[2,9,9,4], index: 3, kind: input, shape index: {}]
  %s4 = inlined_call_operand.vmem [shape: bf16[36,8], index: 4, kind: input, shape index: {}]
  %s5 = inlined_call_operand.vmem [shape: f32[1,8], index: 5, kind: input, shape index: {}]
  %s6 = inlined_call_operand.vmem [shape: f32[1,8], index: 6, kind: input, shape index: {}]
  %s7 = inlined_call_operand.vmem [shape: bf16[72,8], index: 7, kind: input, shape index: {}]
  %s8 = inlined_call_operand.vmem [shape: f32[1,8], index: 8, kind: input, shape index: {}]
  %s9 = inlined_call_operand.vmem [shape: f32[1,8], index: 9, kind: input, shape index: {}]
  %s10 = inlined_call_operand.vmem [shape: bf16[4,8], index: 10, kind: input, shape index: {}]
  %s11 = inlined_call_operand.vmem [shape: f32[1,8], index: 11, kind: input, shape index: {}]
  %s12 = inlined_call_operand.vmem [shape: f32[1,8], index: 12, kind: input, shape index: {}]
  %s13 = inlined_call_operand.vmem [shape: f32[128,8], index: 13, kind: output, shape index: {}]
  %s14 = sld [smem:[#allocation0]]
  $region62: #{tpu_custom_call.1} parent=0
    _
  %s16 = ssub.s32 1, %s14
  %s17 = scalar_select 0, %s16, %s14
  // Predicated region
  $region2: #{tpu_custom_call.1} parent=0 // pred_check
    _
  $region3: #{tpu_custom_call.1} parent=0 // pred_check_branch
    %19 = sbr.rel (0) target = $region5
  $region4: #{tpu_custom_call.1} parent=0 // pred_region
    _
  $region5: #{tpu_custom_call.1} parent=0 // pred_fallthru
    _
  // Predicated region
  $region6: #{tpu_custom_call.1} parent=0 // pred_check
    _
  $region7: #{tpu_custom_call.1} parent=0 // pred_check_branch
    %21 = sbr.rel (0) target = $region9
  $region8: #{tpu_custom_call.1} parent=0 // pred_region
    _
  $region9: #{tpu_custom_call.1} parent=0 // pred_fallthru
    _
  // Predicated region
  $region10: #{tpu_custom_call.1} parent=0 // pred_check
    _
  $region11: #{tpu_custom_call.1} parent=0 // pred_check_branch
    %23 = sbr.rel (0) target = $region13
  $region12: #{tpu_custom_call.1} parent=0 // pred_region
    _
  $region13: #{tpu_custom_call.1} parent=0 // pred_fallthru
    _
  // Predicated region
  $region14: #{tpu_custom_call.1} parent=0 // pred_check
    _
  $region15: #{tpu_custom_call.1} parent=0 // pred_check_branch
    %25 = sbr.rel (0) target = $region17
  $region16: #{tpu_custom_call.1} parent=0 // pred_region
    _
  $region17: #{tpu_custom_call.1} parent=0 // pred_fallthru
    _
  // Predicated region
  $region18: #{tpu_custom_call.1} parent=0 // pred_check
    _
  $region19: #{tpu_custom_call.1} parent=0 // pred_check_branch
    %27 = sbr.rel (0) target = $region21
  $region20: #{tpu_custom_call.1} parent=0 // pred_region
    _
  $region21: #{tpu_custom_call.1} parent=0 // pred_fallthru
    _
  // Predicated region
  $region22: #{tpu_custom_call.1} parent=0 // pred_check
    _
  $region23: #{tpu_custom_call.1} parent=0 // pred_check_branch
    %29 = sbr.rel (0) target = $region25
  $region24: #{tpu_custom_call.1} parent=0 // pred_region
    _
  $region25: #{tpu_custom_call.1} parent=0 // pred_fallthru
    _
  // Predicated region
  $region26: #{tpu_custom_call.1} parent=0 // pred_check
    _
  $region27: #{tpu_custom_call.1} parent=0 // pred_check_branch
    %31 = sbr.rel (0) target = $region29
  $region28: #{tpu_custom_call.1} parent=0 // pred_region
    _
  $region29: #{tpu_custom_call.1} parent=0 // pred_fallthru
    _
  // Predicated region
  $region30: #{tpu_custom_call.1} parent=0 // pred_check
    _
  $region31: #{tpu_custom_call.1} parent=0 // pred_check_branch
    %33 = sbr.rel (0) target = $region33
  $region32: #{tpu_custom_call.1} parent=0 // pred_region
    _
  $region33: #{tpu_custom_call.1} parent=0 // pred_fallthru
    _
  // Predicated region
  $region34: #{tpu_custom_call.1} parent=0 // pred_check
    _
  $region35: #{tpu_custom_call.1} parent=0 // pred_check_branch
    %35 = sbr.rel (0) target = $region37
  $region36: #{tpu_custom_call.1} parent=0 // pred_region
    _
  $region37: #{tpu_custom_call.1} parent=0 // pred_fallthru
    _
  // Predicated region
  $region38: #{tpu_custom_call.1} parent=0 // pred_check
    _
  $region39: #{tpu_custom_call.1} parent=0 // pred_check_branch
    %37 = sbr.rel (0) target = $region41
  $region40: #{tpu_custom_call.1} parent=0 // pred_region
    _
  $region41: #{tpu_custom_call.1} parent=0 // pred_fallthru
    _
  // Predicated region
  $region42: #{tpu_custom_call.1} parent=0 // pred_check
    _
  $region43: #{tpu_custom_call.1} parent=0 // pred_check_branch
    %39 = sbr.rel (0) target = $region45
  $region44: #{tpu_custom_call.1} parent=0 // pred_region
    _
  $region45: #{tpu_custom_call.1} parent=0 // pred_fallthru
    _
  // Predicated region
  $region46: #{tpu_custom_call.1} parent=0 // pred_check
    _
  $region47: #{tpu_custom_call.1} parent=0 // pred_check_branch
    %41 = sbr.rel (0) target = $region49
  $region48: #{tpu_custom_call.1} parent=0 // pred_region
    _
  $region49: #{tpu_custom_call.1} parent=0 // pred_fallthru
    _
  // Predicated region
  $region50: #{tpu_custom_call.1} parent=0 // pred_check
    _
  $region51: #{tpu_custom_call.1} parent=0 // pred_check_branch
    %43 = sbr.rel (0) target = $region53
  $region52: #{tpu_custom_call.1} parent=0 // pred_region
    _
  $region53: #{tpu_custom_call.1} parent=0 // pred_fallthru
    _
  %v45 = vld [vmem:[%s0] sm:$0xf]
  %v46 = vld [vmem:[%s0 + $0x8] sm:$0xf]
  %v47 = vld [vmem:[%s0 + $0x10] sm:$0xf]
  %v48 = vld [vmem:[%s0 + $0x18] sm:$0xf]
  %v49 = vld [vmem:[%s0 + $0x20] sm:$0xf]
  %v50 = vld [vmem:[%s0 + $0x28] sm:$0xf]
  %v51 = vld [vmem:[%s0 + $0x30] sm:$0xf]
  %v52 = vld [vmem:[%s0 + $0x38] sm:$0xf]
  %v53 = vld [vmem:[%s0 + $0x48] sm:$0xf]
  %v54 = vld [vmem:[%s0 + $0x50] sm:$0xf]
  %v55 = vld [vmem:[%s0 + $0x58] sm:$0xf]
  %v56 = vld [vmem:[%s0 + $0x60] sm:$0xf]
  %v57 = vld [vmem:[%s0 + $0x68] sm:$0xf]
  %v58 = vld [vmem:[%s0 + $0x70] sm:$0xf]
  %v59 = vld [vmem:[%s0 + $0x78] sm:$0xf]
  %v60 = vld [vmem:[%s0 + $0x80] sm:$0xf]
  %vm61 = vcmask 27648
  %62 = vst.msk [vmem:[#allocation2] sm:$0xf] %vm61, %v45
  %63 = vst.msk [vmem:[#allocation2 + $0x4] sm:$0xf] %vm61, %v46
  %64 = vst.msk [vmem:[#allocation2 + $0x8] sm:$0xf] %vm61, %v47
  %65 = vst.msk [vmem:[#allocation2 + $0xc] sm:$0xf] %vm61, %v48
  %66 = vst.msk [vmem:[#allocation2 + $0x10] sm:$0xf] %vm61, %v49
  %67 = vst.msk [vmem:[#allocation2 + $0x14] sm:$0xf] %vm61, %v50
  %68 = vst.msk [vmem:[#allocation2 + $0x18] sm:$0xf] %vm61, %v51
  %69 = vst.msk [vmem:[#allocation2 + $0x1c] sm:$0xf] %vm61, %v52
  %70 = vst.msk [vmem:[#allocation2 + $0x20] sm:$0xf] %vm61, %v53
  %71 = vst.msk [vmem:[#allocation2 + $0x24] sm:$0xf] %vm61, %v54
  %72 = vst.msk [vmem:[#allocation2 + $0x28] sm:$0xf] %vm61, %v55
  %73 = vst.msk [vmem:[#allocation2 + $0x2c] sm:$0xf] %vm61, %v56
  %74 = vst.msk [vmem:[#allocation2 + $0x30] sm:$0xf] %vm61, %v57
  %75 = vst.msk [vmem:[#allocation2 + $0x34] sm:$0xf] %vm61, %v58
  %76 = vst.msk [vmem:[#allocation2 + $0x38] sm:$0xf] %vm61, %v59
  %77 = vst.msk [vmem:[#allocation2 + $0x3c] sm:$0xf] %vm61, %v60
  %v78 = vld [vmem:[%s1] sm:$0xf]
  %v79 = vld [vmem:[%s1 + $0x8] sm:$0xf]
  %v80 = vld [vmem:[%s1 + $0x10] sm:$0xf]
  %v81 = vld [vmem:[%s1 + $0x18] sm:$0xf]
  %v82 = vld [vmem:[%s1 + $0x20] sm:$0xf]
  %v83 = vld [vmem:[%s1 + $0x28] sm:$0xf]
  %v84 = vld [vmem:[%s1 + $0x30] sm:$0xf]
  %v85 = vld [vmem:[%s1 + $0x38] sm:$0xf]
  %v86 = vld [vmem:[%s1 + $0x48] sm:$0xf]
  %v87 = vld [vmem:[%s1 + $0x50] sm:$0xf]
  %v88 = vld [vmem:[%s1 + $0x58] sm:$0xf]
  %v89 = vld [vmem:[%s1 + $0x60] sm:$0xf]
  %v90 = vld [vmem:[%s1 + $0x68] sm:$0xf]
  %v91 = vld [vmem:[%s1 + $0x70] sm:$0xf]
  %v92 = vld [vmem:[%s1 + $0x78] sm:$0xf]
  %v93 = vld [vmem:[%s1 + $0x80] sm:$0xf]
  %110 = vrot.lane.b32.xlu0 %v78, 4
  %v111 = vpop.permute.xlu0 %110
  %112 = vrot.lane.b32.xlu0 %v79, 4
  %v113 = vpop.permute.xlu0 %112
  %114 = vrot.lane.b32.xlu0 %v80, 4
  %v115 = vpop.permute.xlu0 %114
  %116 = vrot.lane.b32.xlu0 %v81, 4
  %v117 = vpop.permute.xlu0 %116
  %118 = vrot.lane.b32.xlu0 %v82, 4
  %v119 = vpop.permute.xlu0 %118
  %120 = vrot.lane.b32.xlu0 %v83, 4
  %v121 = vpop.permute.xlu0 %120
  %122 = vrot.lane.b32.xlu0 %v84, 4
  %v123 = vpop.permute.xlu0 %122
  %124 = vrot.lane.b32.xlu0 %v85, 4
  %v125 = vpop.permute.xlu0 %124
  %126 = vrot.lane.b32.xlu0 %v86, 4
  %v127 = vpop.permute.xlu0 %126
  %128 = vrot.lane.b32.xlu0 %v87, 4
  %v129 = vpop.permute.xlu0 %128
  %130 = vrot.lane.b32.xlu0 %v88, 4
  %v131 = vpop.permute.xlu0 %130
  %132 = vrot.lane.b32.xlu0 %v89, 4
  %v133 = vpop.permute.xlu0 %132
  %134 = vrot.lane.b32.xlu0 %v90, 4
  %v135 = vpop.permute.xlu0 %134
  %136 = vrot.lane.b32.xlu0 %v91, 4
  %v137 = vpop.permute.xlu0 %136
  %138 = vrot.lane.b32.xlu0 %v92, 4
  %v139 = vpop.permute.xlu0 %138
  %140 = vrot.lane.b32.xlu0 %v93, 4
  %v141 = vpop.permute.xlu0 %140
  %vm158 = vcmask 60448
  %159 = vst.msk [vmem:[#allocation2] sm:$0xf] %vm158, %v111
  %160 = vst.msk [vmem:[#allocation2 + $0x4] sm:$0xf] %vm158, %v113
  %161 = vst.msk [vmem:[#allocation2 + $0x8] sm:$0xf] %vm158, %v115
  %162 = vst.msk [vmem:[#allocation2 + $0xc] sm:$0xf] %vm158, %v117
  %163 = vst.msk [vmem:[#allocation2 + $0x10] sm:$0xf] %vm158, %v119
  %164 = vst.msk [vmem:[#allocation2 + $0x14] sm:$0xf] %vm158, %v121
  %165 = vst.msk [vmem:[#allocation2 + $0x18] sm:$0xf] %vm158, %v123
  %166 = vst.msk [vmem:[#allocation2 + $0x1c] sm:$0xf] %vm158, %v125
  %167 = vst.msk [vmem:[#allocation2 + $0x20] sm:$0xf] %vm158, %v127
  %168 = vst.msk [vmem:[#allocation2 + $0x24] sm:$0xf] %vm158, %v129
  %169 = vst.msk [vmem:[#allocation2 + $0x28] sm:$0xf] %vm158, %v131
  %170 = vst.msk [vmem:[#allocation2 + $0x2c] sm:$0xf] %vm158, %v133
  %171 = vst.msk [vmem:[#allocation2 + $0x30] sm:$0xf] %vm158, %v135
  %172 = vst.msk [vmem:[#allocation2 + $0x34] sm:$0xf] %vm158, %v137
  %173 = vst.msk [vmem:[#allocation2 + $0x38] sm:$0xf] %vm158, %v139
  %174 = vst.msk [vmem:[#allocation2 + $0x3c] sm:$0xf] %vm158, %v141
  %v175 = vld [vmem:[%s0] sm:$0xf]
  %v176 = vld [vmem:[%s0 + $0x4] sm:$0x1]
  %v177 = vld [vmem:[%s0 + $0x8] sm:$0xf]
  %v178 = vld [vmem:[%s0 + $0xc] sm:$0x1]
  %v179 = vld [vmem:[%s0 + $0x10] sm:$0xf]
  %v180 = vld [vmem:[%s0 + $0x14] sm:$0x1]
  %v181 = vld [vmem:[%s0 + $0x18] sm:$0xf]
  %v182 = vld [vmem:[%s0 + $0x1c] sm:$0x1]
  %v183 = vld [vmem:[%s0 + $0x20] sm:$0xf]
  %v184 = vld [vmem:[%s0 + $0x24] sm:$0x1]
  %v185 = vld [vmem:[%s0 + $0x28] sm:$0xf]
  %v186 = vld [vmem:[%s0 + $0x2c] sm:$0x1]
  %v187 = vld [vmem:[%s0 + $0x30] sm:$0xf]
  %v188 = vld [vmem:[%s0 + $0x34] sm:$0x1]
  %v189 = vld [vmem:[%s0 + $0x38] sm:$0xf]
  %v190 = vld [vmem:[%s0 + $0x3c] sm:$0x1]
  %v191 = vld [vmem:[%s0 + $0x48] sm:$0xf]
  %v192 = vld [vmem:[%s0 + $0x4c] sm:$0x1]
  %v193 = vld [vmem:[%s0 + $0x50] sm:$0xf]
  %v194 = vld [vmem:[%s0 + $0x54] sm:$0x1]
  %v195 = vld [vmem:[%s0 + $0x58] sm:$0xf]
  %v196 = vld [vmem:[%s0 + $0x5c] sm:$0x1]
  %v197 = vld [vmem:[%s0 + $0x60] sm:$0xf]
  %v198 = vld [vmem:[%s0 + $0x64] sm:$0x1]
  %v199 = vld [vmem:[%s0 + $0x68] sm:$0xf]
  %v200 = vld [vmem:[%s0 + $0x6c] sm:$0x1]
  %v201 = vld [vmem:[%s0 + $0x70] sm:$0xf]
  %v202 = vld [vmem:[%s0 + $0x74] sm:$0x1]
  %v203 = vld [vmem:[%s0 + $0x78] sm:$0xf]
  %v204 = vld [vmem:[%s0 + $0x7c] sm:$0x1]
  %v205 = vld [vmem:[%s0 + $0x80] sm:$0xf]
  %v206 = vld [vmem:[%s0 + $0x84] sm:$0x1]
  %vm207 = vsmask.f32 3328
  %vm208 = vsmask.f32 7440
  %vm209 = vmor %vm207, %vm208
  %v211 = vshrl.u32 %v175, 16
  %v213 = vrot.slane %v211, 4
  %v214 = vshll.u32 %v175, 16
  %v216 = vrot.slane %v214, 5
  %v217 = vor.u32 %v213, %v216
  %v218 = vrot.slane %v217, 4
  %v220 = vshll.u32 %v176, 16
  %v222 = vrot.slane %v220, 5
  %v223 = vsel %vm209, %v218, %v222
  %v225 = vshrl.u32 %v177, 16
  %v227 = vrot.slane %v225, 4
  %v228 = vshll.u32 %v177, 16
  %v230 = vrot.slane %v228, 5
  %v231 = vor.u32 %v227, %v230
  %v232 = vrot.slane %v231, 4
  %v234 = vshll.u32 %v178, 16
  %v236 = vrot.slane %v234, 5
  %v237 = vsel %vm209, %v232, %v236
  %v239 = vshrl.u32 %v179, 16
  %v241 = vrot.slane %v239, 4
  %v242 = vshll.u32 %v179, 16
  %v244 = vrot.slane %v242, 5
  %v245 = vor.u32 %v241, %v244
  %v246 = vrot.slane %v245, 4
  %v248 = vshll.u32 %v180, 16
  %v250 = vrot.slane %v248, 5
  %v251 = vsel %vm209, %v246, %v250
  %v253 = vshrl.u32 %v181, 16
  %v255 = vrot.slane %v253, 4
  %v256 = vshll.u32 %v181, 16
  %v258 = vrot.slane %v256, 5
  %v259 = vor.u32 %v255, %v258
  %v260 = vrot.slane %v259, 4
  %v262 = vshll.u32 %v182, 16
  %v264 = vrot.slane %v262, 5
  %v265 = vsel %vm209, %v260, %v264
  %v267 = vshrl.u32 %v183, 16
  %v269 = vrot.slane %v267, 4
  %v270 = vshll.u32 %v183, 16
  %v272 = vrot.slane %v270, 5
  %v273 = vor.u32 %v269, %v272
  %v274 = vrot.slane %v273, 4
  %v276 = vshll.u32 %v184, 16
  %v278 = vrot.slane %v276, 5
  %v279 = vsel %vm209, %v274, %v278
  %v281 = vshrl.u32 %v185, 16
  %v283 = vrot.slane %v281, 4
  %v284 = vshll.u32 %v185, 16
  %v286 = vrot.slane %v284, 5
  %v287 = vor.u32 %v283, %v286
  %v288 = vrot.slane %v287, 4
  %v290 = vshll.u32 %v186, 16
  %v292 = vrot.slane %v290, 5
  %v293 = vsel %vm209, %v288, %v292
  %v295 = vshrl.u32 %v187, 16
  %v297 = vrot.slane %v295, 4
  %v298 = vshll.u32 %v187, 16
  %v300 = vrot.slane %v298, 5
  %v301 = vor.u32 %v297, %v300
  %v302 = vrot.slane %v301, 4
  %v304 = vshll.u32 %v188, 16
  %v306 = vrot.slane %v304, 5
  %v307 = vsel %vm209, %v302, %v306
  %v309 = vshrl.u32 %v189, 16
  %v311 = vrot.slane %v309, 4
  %v312 = vshll.u32 %v189, 16
  %v314 = vrot.slane %v312, 5
  %v315 = vor.u32 %v311, %v314
  %v316 = vrot.slane %v315, 4
  %v318 = vshll.u32 %v190, 16
  %v320 = vrot.slane %v318, 5
  %v321 = vsel %vm209, %v316, %v320
  %v323 = vshrl.u32 %v191, 16
  %v325 = vrot.slane %v323, 4
  %v326 = vshll.u32 %v191, 16
  %v328 = vrot.slane %v326, 5
  %v329 = vor.u32 %v325, %v328
  %v330 = vrot.slane %v329, 4
  %v332 = vshll.u32 %v192, 16
  %v334 = vrot.slane %v332, 5
  %v335 = vsel %vm209, %v330, %v334
  %v337 = vshrl.u32 %v193, 16
  %v339 = vrot.slane %v337, 4
  %v340 = vshll.u32 %v193, 16
  %v342 = vrot.slane %v340, 5
  %v343 = vor.u32 %v339, %v342
  %v344 = vrot.slane %v343, 4
  %v346 = vshll.u32 %v194, 16
  %v348 = vrot.slane %v346, 5
  %v349 = vsel %vm209, %v344, %v348
  %v351 = vshrl.u32 %v195, 16
  %v353 = vrot.slane %v351, 4
  %v354 = vshll.u32 %v195, 16
  %v356 = vrot.slane %v354, 5
  %v357 = vor.u32 %v353, %v356
  %v358 = vrot.slane %v357, 4
  %v360 = vshll.u32 %v196, 16
  %v362 = vrot.slane %v360, 5
  %v363 = vsel %vm209, %v358, %v362
  %v365 = vshrl.u32 %v197, 16
  %v367 = vrot.slane %v365, 4
  %v368 = vshll.u32 %v197, 16
  %v370 = vrot.slane %v368, 5
  %v371 = vor.u32 %v367, %v370
  %v372 = vrot.slane %v371, 4
  %v374 = vshll.u32 %v198, 16
  %v376 = vrot.slane %v374, 5
  %v377 = vsel %vm209, %v372, %v376
  %v379 = vshrl.u32 %v199, 16
  %v381 = vrot.slane %v379, 4
  %v382 = vshll.u32 %v199, 16
  %v384 = vrot.slane %v382, 5
  %v385 = vor.u32 %v381, %v384
  %v386 = vrot.slane %v385, 4
  %v388 = vshll.u32 %v200, 16
  %v390 = vrot.slane %v388, 5
  %v391 = vsel %vm209, %v386, %v390
  %v393 = vshrl.u32 %v201, 16
  %v395 = vrot.slane %v393, 4
  %v396 = vshll.u32 %v201, 16
  %v398 = vrot.slane %v396, 5
  %v399 = vor.u32 %v395, %v398
  %v400 = vrot.slane %v399, 4
  %v402 = vshll.u32 %v202, 16
  %v404 = vrot.slane %v402, 5
  %v405 = vsel %vm209, %v400, %v404
  %v407 = vshrl.u32 %v203, 16
  %v409 = vrot.slane %v407, 4
  %v410 = vshll.u32 %v203, 16
  %v412 = vrot.slane %v410, 5
  %v413 = vor.u32 %v409, %v412
  %v414 = vrot.slane %v413, 4
  %v416 = vshll.u32 %v204, 16
  %v418 = vrot.slane %v416, 5
  %v419 = vsel %vm209, %v414, %v418
  %v421 = vshrl.u32 %v205, 16
  %v423 = vrot.slane %v421, 4
  %v424 = vshll.u32 %v205, 16
  %v426 = vrot.slane %v424, 5
  %v427 = vor.u32 %v423, %v426
  %v428 = vrot.slane %v427, 4
  %v430 = vshll.u32 %v206, 16
  %v432 = vrot.slane %v430, 5
  %v433 = vsel %vm209, %v428, %v432
  %434 = vrot.lane.b32.xlu0 %v223, 8
  %v435 = vpop.permute.xlu0 %434
  %436 = vrot.lane.b32.xlu0 %v237, 8
  %v437 = vpop.permute.xlu0 %436
  %438 = vrot.lane.b32.xlu0 %v251, 8
  %v439 = vpop.permute.xlu0 %438
  %440 = vrot.lane.b32.xlu0 %v265, 8
  %v441 = vpop.permute.xlu0 %440
  %442 = vrot.lane.b32.xlu0 %v279, 8
  %v443 = vpop.permute.xlu0 %442
  %444 = vrot.lane.b32.xlu0 %v293, 8
  %v445 = vpop.permute.xlu0 %444
  %446 = vrot.lane.b32.xlu0 %v307, 8
  %v447 = vpop.permute.xlu0 %446
  %448 = vrot.lane.b32.xlu0 %v321, 8
  %v449 = vpop.permute.xlu0 %448
  %450 = vrot.lane.b32.xlu0 %v335, 8
  %v451 = vpop.permute.xlu0 %450
  %452 = vrot.lane.b32.xlu0 %v349, 8
  %v453 = vpop.permute.xlu0 %452
  %454 = vrot.lane.b32.xlu0 %v363, 8
  %v455 = vpop.permute.xlu0 %454
  %456 = vrot.lane.b32.xlu0 %v377, 8
  %v457 = vpop.permute.xlu0 %456
  %458 = vrot.lane.b32.xlu0 %v391, 8
  %v459 = vpop.permute.xlu0 %458
  %460 = vrot.lane.b32.xlu0 %v405, 8
  %v461 = vpop.permute.xlu0 %460
  %462 = vrot.lane.b32.xlu0 %v419, 8
  %v463 = vpop.permute.xlu0 %462
  %464 = vrot.lane.b32.xlu0 %v433, 8
  %v465 = vpop.permute.xlu0 %464
  %vm482 = vcmask 93248
  %483 = vst.msk [vmem:[#allocation2] sm:$0xf] %vm482, %v435
  %484 = vst.msk [vmem:[#allocation2 + $0x4] sm:$0xf] %vm482, %v437
  %485 = vst.msk [vmem:[#allocation2 + $0x8] sm:$0xf] %vm482, %v439
  %486 = vst.msk [vmem:[#allocation2 + $0xc] sm:$0xf] %vm482, %v441
  %487 = vst.msk [vmem:[#allocation2 + $0x10] sm:$0xf] %vm482, %v443
  %488 = vst.msk [vmem:[#allocation2 + $0x14] sm:$0xf] %vm482, %v445
  %489 = vst.msk [vmem:[#allocation2 + $0x18] sm:$0xf] %vm482, %v447
  %490 = vst.msk [vmem:[#allocation2 + $0x1c] sm:$0xf] %vm482, %v449
  %491 = vst.msk [vmem:[#allocation2 + $0x20] sm:$0xf] %vm482, %v451
  %492 = vst.msk [vmem:[#allocation2 + $0x24] sm:$0xf] %vm482, %v453
  %493 = vst.msk [vmem:[#allocation2 + $0x28] sm:$0xf] %vm482, %v455
  %494 = vst.msk [vmem:[#allocation2 + $0x2c] sm:$0xf] %vm482, %v457
  %495 = vst.msk [vmem:[#allocation2 + $0x30] sm:$0xf] %vm482, %v459
  %496 = vst.msk [vmem:[#allocation2 + $0x34] sm:$0xf] %vm482, %v461
  %497 = vst.msk [vmem:[#allocation2 + $0x38] sm:$0xf] %vm482, %v463
  %498 = vst.msk [vmem:[#allocation2 + $0x3c] sm:$0xf] %vm482, %v465
  %v499 = vld [vmem:[%s2] sm:$0xf]
  %v500 = vld [vmem:[%s2 + $0x8] sm:$0xf]
  %v501 = vld [vmem:[%s2 + $0x10] sm:$0xf]
  %v502 = vld [vmem:[%s2 + $0x18] sm:$0xf]
  %v503 = vld [vmem:[%s2 + $0x20] sm:$0xf]
  %v504 = vld [vmem:[%s2 + $0x28] sm:$0xf]
  %v505 = vld [vmem:[%s2 + $0x30] sm:$0xf]
  %v506 = vld [vmem:[%s2 + $0x38] sm:$0xf]
  %v507 = vld [vmem:[%s2 + $0x48] sm:$0xf]
  %v508 = vld [vmem:[%s2 + $0x50] sm:$0xf]
  %v509 = vld [vmem:[%s2 + $0x58] sm:$0xf]
  %v510 = vld [vmem:[%s2 + $0x60] sm:$0xf]
  %v511 = vld [vmem:[%s2 + $0x68] sm:$0xf]
  %v512 = vld [vmem:[%s2 + $0x70] sm:$0xf]
  %v513 = vld [vmem:[%s2 + $0x78] sm:$0xf]
  %v514 = vld [vmem:[%s2 + $0x80] sm:$0xf]
  %531 = vrot.lane.b32.xlu0 %v499, 12
  %v532 = vpop.permute.xlu0 %531
  %533 = vrot.lane.b32.xlu0 %v500, 12
  %v534 = vpop.permute.xlu0 %533
  %535 = vrot.lane.b32.xlu0 %v501, 12
  %v536 = vpop.permute.xlu0 %535
  %537 = vrot.lane.b32.xlu0 %v502, 12
  %v538 = vpop.permute.xlu0 %537
  %539 = vrot.lane.b32.xlu0 %v503, 12
  %v540 = vpop.permute.xlu0 %539
  %541 = vrot.lane.b32.xlu0 %v504, 12
  %v542 = vpop.permute.xlu0 %541
  %543 = vrot.lane.b32.xlu0 %v505, 12
  %v544 = vpop.permute.xlu0 %543
  %545 = vrot.lane.b32.xlu0 %v506, 12
  %v546 = vpop.permute.xlu0 %545
  %547 = vrot.lane.b32.xlu0 %v507, 12
  %v548 = vpop.permute.xlu0 %547
  %549 = vrot.lane.b32.xlu0 %v508, 12
  %v550 = vpop.permute.xlu0 %549
  %551 = vrot.lane.b32.xlu0 %v509, 12
  %v552 = vpop.permute.xlu0 %551
  %553 = vrot.lane.b32.xlu0 %v510, 12
  %v554 = vpop.permute.xlu0 %553
  %555 = vrot.lane.b32.xlu0 %v511, 12
  %v556 = vpop.permute.xlu0 %555
  %557 = vrot.lane.b32.xlu0 %v512, 12
  %v558 = vpop.permute.xlu0 %557
  %559 = vrot.lane.b32.xlu0 %v513, 12
  %v560 = vpop.permute.xlu0 %559
  %561 = vrot.lane.b32.xlu0 %v514, 12
  %v562 = vpop.permute.xlu0 %561
  %vm579 = vcmask 126048
  %580 = vst.msk [vmem:[#allocation2] sm:$0xf] %vm579, %v532
  %581 = vst.msk [vmem:[#allocation2 + $0x4] sm:$0xf] %vm579, %v534
  %582 = vst.msk [vmem:[#allocation2 + $0x8] sm:$0xf] %vm579, %v536
  %583 = vst.msk [vmem:[#allocation2 + $0xc] sm:$0xf] %vm579, %v538
  %584 = vst.msk [vmem:[#allocation2 + $0x10] sm:$0xf] %vm579, %v540
  %585 = vst.msk [vmem:[#allocation2 + $0x14] sm:$0xf] %vm579, %v542
  %586 = vst.msk [vmem:[#allocation2 + $0x18] sm:$0xf] %vm579, %v544
  %587 = vst.msk [vmem:[#allocation2 + $0x1c] sm:$0xf] %vm579, %v546
  %588 = vst.msk [vmem:[#allocation2 + $0x20] sm:$0xf] %vm579, %v548
  %589 = vst.msk [vmem:[#allocation2 + $0x24] sm:$0xf] %vm579, %v550
  %590 = vst.msk [vmem:[#allocation2 + $0x28] sm:$0xf] %vm579, %v552
  %591 = vst.msk [vmem:[#allocation2 + $0x2c] sm:$0xf] %vm579, %v554
  %592 = vst.msk [vmem:[#allocation2 + $0x30] sm:$0xf] %vm579, %v556
  %593 = vst.msk [vmem:[#allocation2 + $0x34] sm:$0xf] %vm579, %v558
  %594 = vst.msk [vmem:[#allocation2 + $0x38] sm:$0xf] %vm579, %v560
  %595 = vst.msk [vmem:[#allocation2 + $0x3c] sm:$0xf] %vm579, %v562
  %v596 = vld [vmem:[%s3] sm:$0xf]
  %v597 = vld [vmem:[%s3 + $0x8] sm:$0xf]
  %v598 = vld [vmem:[%s3 + $0x10] sm:$0xf]
  %v599 = vld [vmem:[%s3 + $0x18] sm:$0xf]
  %v600 = vld [vmem:[%s3 + $0x20] sm:$0xf]
  %v601 = vld [vmem:[%s3 + $0x28] sm:$0xf]
  %v602 = vld [vmem:[%s3 + $0x30] sm:$0xf]
  %v603 = vld [vmem:[%s3 + $0x38] sm:$0xf]
  %v604 = vld [vmem:[%s3 + $0x48] sm:$0xf]
  %v605 = vld [vmem:[%s3 + $0x50] sm:$0xf]
  %v606 = vld [vmem:[%s3 + $0x58] sm:$0xf]
  %v607 = vld [vmem:[%s3 + $0x60] sm:$0xf]
  %v608 = vld [vmem:[%s3 + $0x68] sm:$0xf]
  %v609 = vld [vmem:[%s3 + $0x70] sm:$0xf]
  %v610 = vld [vmem:[%s3 + $0x78] sm:$0xf]
  %v611 = vld [vmem:[%s3 + $0x80] sm:$0xf]
  %628 = vrot.lane.b32.xlu0 %v596, 16
  %v629 = vpop.permute.xlu0 %628
  %630 = vrot.lane.b32.xlu0 %v597, 16
  %v631 = vpop.permute.xlu0 %630
  %632 = vrot.lane.b32.xlu0 %v598, 16
  %v633 = vpop.permute.xlu0 %632
  %634 = vrot.lane.b32.xlu0 %v599, 16
  %v635 = vpop.permute.xlu0 %634
  %636 = vrot.lane.b32.xlu0 %v600, 16
  %v637 = vpop.permute.xlu0 %636
  %638 = vrot.lane.b32.xlu0 %v601, 16
  %v639 = vpop.permute.xlu0 %638
  %640 = vrot.lane.b32.xlu0 %v602, 16
  %v641 = vpop.permute.xlu0 %640
  %642 = vrot.lane.b32.xlu0 %v603, 16
  %v643 = vpop.permute.xlu0 %642
  %644 = vrot.lane.b32.xlu0 %v604, 16
  %v645 = vpop.permute.xlu0 %644
  %646 = vrot.lane.b32.xlu0 %v605, 16
  %v647 = vpop.permute.xlu0 %646
  %648 = vrot.lane.b32.xlu0 %v606, 16
  %v649 = vpop.permute.xlu0 %648
  %650 = vrot.lane.b32.xlu0 %v607, 16
  %v651 = vpop.permute.xlu0 %650
  %652 = vrot.lane.b32.xlu0 %v608, 16
  %v653 = vpop.permute.xlu0 %652
  %654 = vrot.lane.b32.xlu0 %v609, 16
  %v655 = vpop.permute.xlu0 %654
  %656 = vrot.lane.b32.xlu0 %v610, 16
  %v657 = vpop.permute.xlu0 %656
  %658 = vrot.lane.b32.xlu0 %v611, 16
  %v659 = vpop.permute.xlu0 %658
  %vm676 = vcmask 158848
  %677 = vst.msk [vmem:[#allocation2] sm:$0xf] %vm676, %v629
  %678 = vst.msk [vmem:[#allocation2 + $0x4] sm:$0xf] %vm676, %v631
  %679 = vst.msk [vmem:[#allocation2 + $0x8] sm:$0xf] %vm676, %v633
  %680 = vst.msk [vmem:[#allocation2 + $0xc] sm:$0xf] %vm676, %v635
  %681 = vst.msk [vmem:[#allocation2 + $0x10] sm:$0xf] %vm676, %v637
  %682 = vst.msk [vmem:[#allocation2 + $0x14] sm:$0xf] %vm676, %v639
  %683 = vst.msk [vmem:[#allocation2 + $0x18] sm:$0xf] %vm676, %v641
  %684 = vst.msk [vmem:[#allocation2 + $0x1c] sm:$0xf] %vm676, %v643
  %685 = vst.msk [vmem:[#allocation2 + $0x20] sm:$0xf] %vm676, %v645
  %686 = vst.msk [vmem:[#allocation2 + $0x24] sm:$0xf] %vm676, %v647
  %687 = vst.msk [vmem:[#allocation2 + $0x28] sm:$0xf] %vm676, %v649
  %688 = vst.msk [vmem:[#allocation2 + $0x2c] sm:$0xf] %vm676, %v651
  %689 = vst.msk [vmem:[#allocation2 + $0x30] sm:$0xf] %vm676, %v653
  %690 = vst.msk [vmem:[#allocation2 + $0x34] sm:$0xf] %vm676, %v655
  %691 = vst.msk [vmem:[#allocation2 + $0x38] sm:$0xf] %vm676, %v657
  %692 = vst.msk [vmem:[#allocation2 + $0x3c] sm:$0xf] %vm676, %v659
  %v693 = vld [vmem:[%s2] sm:$0xf]
  %v694 = vld [vmem:[%s2 + $0x4] sm:$0x1]
  %v695 = vld [vmem:[%s2 + $0x8] sm:$0xf]
  %v696 = vld [vmem:[%s2 + $0xc] sm:$0x1]
  %v697 = vld [vmem:[%s2 + $0x10] sm:$0xf]
  %v698 = vld [vmem:[%s2 + $0x14] sm:$0x1]
  %v699 = vld [vmem:[%s2 + $0x18] sm:$0xf]
  %v700 = vld [vmem:[%s2 + $0x1c] sm:$0x1]
  %v701 = vld [vmem:[%s2 + $0x20] sm:$0xf]
  %v702 = vld [vmem:[%s2 + $0x24] sm:$0x1]
  %v703 = vld [vmem:[%s2 + $0x28] sm:$0xf]
  %v704 = vld [vmem:[%s2 + $0x2c] sm:$0x1]
  %v705 = vld [vmem:[%s2 + $0x30] sm:$0xf]
  %v706 = vld [vmem:[%s2 + $0x34] sm:$0x1]
  %v707 = vld [vmem:[%s2 + $0x38] sm:$0xf]
  %v708 = vld [vmem:[%s2 + $0x3c] sm:$0x1]
  %v709 = vld [vmem:[%s2 + $0x48] sm:$0xf]
  %v710 = vld [vmem:[%s2 + $0x4c] sm:$0x1]
  %v711 = vld [vmem:[%s2 + $0x50] sm:$0xf]
  %v712 = vld [vmem:[%s2 + $0x54] sm:$0x1]
  %v713 = vld [vmem:[%s2 + $0x58] sm:$0xf]
  %v714 = vld [vmem:[%s2 + $0x5c] sm:$0x1]
  %v715 = vld [vmem:[%s2 + $0x60] sm:$0xf]
  %v716 = vld [vmem:[%s2 + $0x64] sm:$0x1]
  %v717 = vld [vmem:[%s2 + $0x68] sm:$0xf]
  %v718 = vld [vmem:[%s2 + $0x6c] sm:$0x1]
  %v719 = vld [vmem:[%s2 + $0x70] sm:$0xf]
  %v720 = vld [vmem:[%s2 + $0x74] sm:$0x1]
  %v721 = vld [vmem:[%s2 + $0x78] sm:$0xf]
  %v722 = vld [vmem:[%s2 + $0x7c] sm:$0x1]
  %v723 = vld [vmem:[%s2 + $0x80] sm:$0xf]
  %v724 = vld [vmem:[%s2 + $0x84] sm:$0x1]
  %v726 = vshrl.u32 %v693, 16
  %v728 = vrot.slane %v726, 4
  %v729 = vshll.u32 %v693, 16
  %v731 = vrot.slane %v729, 5
  %v732 = vor.u32 %v728, %v731
  %v733 = vrot.slane %v732, 4
  %v735 = vshll.u32 %v694, 16
  %v737 = vrot.slane %v735, 5
  %v738 = vsel %vm209, %v733, %v737
  %v740 = vshrl.u32 %v695, 16
  %v742 = vrot.slane %v740, 4
  %v743 = vshll.u32 %v695, 16
  %v745 = vrot.slane %v743, 5
  %v746 = vor.u32 %v742, %v745
  %v747 = vrot.slane %v746, 4
  %v749 = vshll.u32 %v696, 16
  %v751 = vrot.slane %v749, 5
  %v752 = vsel %vm209, %v747, %v751
  %v754 = vshrl.u32 %v697, 16
  %v756 = vrot.slane %v754, 4
  %v757 = vshll.u32 %v697, 16
  %v759 = vrot.slane %v757, 5
  %v760 = vor.u32 %v756, %v759
  %v761 = vrot.slane %v760, 4
  %v763 = vshll.u32 %v698, 16
  %v765 = vrot.slane %v763, 5
  %v766 = vsel %vm209, %v761, %v765
  %v768 = vshrl.u32 %v699, 16
  %v770 = vrot.slane %v768, 4
  %v771 = vshll.u32 %v699, 16
  %v773 = vrot.slane %v771, 5
  %v774 = vor.u32 %v770, %v773
  %v775 = vrot.slane %v774, 4
  %v777 = vshll.u32 %v700, 16
  %v779 = vrot.slane %v777, 5
  %v780 = vsel %vm209, %v775, %v779
  %v782 = vshrl.u32 %v701, 16
  %v784 = vrot.slane %v782, 4
  %v785 = vshll.u32 %v701, 16
  %v787 = vrot.slane %v785, 5
  %v788 = vor.u32 %v784, %v787
  %v789 = vrot.slane %v788, 4
  %v791 = vshll.u32 %v702, 16
  %v793 = vrot.slane %v791, 5
  %v794 = vsel %vm209, %v789, %v793
  %v796 = vshrl.u32 %v703, 16
  %v798 = vrot.slane %v796, 4
  %v799 = vshll.u32 %v703, 16
  %v801 = vrot.slane %v799, 5
  %v802 = vor.u32 %v798, %v801
  %v803 = vrot.slane %v802, 4
  %v805 = vshll.u32 %v704, 16
  %v807 = vrot.slane %v805, 5
  %v808 = vsel %vm209, %v803, %v807
  %v810 = vshrl.u32 %v705, 16
  %v812 = vrot.slane %v810, 4
  %v813 = vshll.u32 %v705, 16
  %v815 = vrot.slane %v813, 5
  %v816 = vor.u32 %v812, %v815
  %v817 = vrot.slane %v816, 4
  %v819 = vshll.u32 %v706, 16
  %v821 = vrot.slane %v819, 5
  %v822 = vsel %vm209, %v817, %v821
  %v824 = vshrl.u32 %v707, 16
  %v826 = vrot.slane %v824, 4
  %v827 = vshll.u32 %v707, 16
  %v829 = vrot.slane %v827, 5
  %v830 = vor.u32 %v826, %v829
  %v831 = vrot.slane %v830, 4
  %v833 = vshll.u32 %v708, 16
  %v835 = vrot.slane %v833, 5
  %v836 = vsel %vm209, %v831, %v835
  %v838 = vshrl.u32 %v709, 16
  %v840 = vrot.slane %v838, 4
  %v841 = vshll.u32 %v709, 16
  %v843 = vrot.slane %v841, 5
  %v844 = vor.u32 %v840, %v843
  %v845 = vrot.slane %v844, 4
  %v847 = vshll.u32 %v710, 16
  %v849 = vrot.slane %v847, 5
  %v850 = vsel %vm209, %v845, %v849
  %v852 = vshrl.u32 %v711, 16
  %v854 = vrot.slane %v852, 4
  %v855 = vshll.u32 %v711, 16
  %v857 = vrot.slane %v855, 5
  %v858 = vor.u32 %v854, %v857
  %v859 = vrot.slane %v858, 4
  %v861 = vshll.u32 %v712, 16
  %v863 = vrot.slane %v861, 5
  %v864 = vsel %vm209, %v859, %v863
  %v866 = vshrl.u32 %v713, 16
  %v868 = vrot.slane %v866, 4
  %v869 = vshll.u32 %v713, 16
  %v871 = vrot.slane %v869, 5
  %v872 = vor.u32 %v868, %v871
  %v873 = vrot.slane %v872, 4
  %v875 = vshll.u32 %v714, 16
  %v877 = vrot.slane %v875, 5
  %v878 = vsel %vm209, %v873, %v877
  %v880 = vshrl.u32 %v715, 16
  %v882 = vrot.slane %v880, 4
  %v883 = vshll.u32 %v715, 16
  %v885 = vrot.slane %v883, 5
  %v886 = vor.u32 %v882, %v885
  %v887 = vrot.slane %v886, 4
  %v889 = vshll.u32 %v716, 16
  %v891 = vrot.slane %v889, 5
  %v892 = vsel %vm209, %v887, %v891
  %v894 = vshrl.u32 %v717, 16
  %v896 = vrot.slane %v894, 4
  %v897 = vshll.u32 %v717, 16
  %v899 = vrot.slane %v897, 5
  %v900 = vor.u32 %v896, %v899
  %v901 = vrot.slane %v900, 4
  %v903 = vshll.u32 %v718, 16
  %v905 = vrot.slane %v903, 5
  %v906 = vsel %vm209, %v901, %v905
  %v908 = vshrl.u32 %v719, 16
  %v910 = vrot.slane %v908, 4
  %v911 = vshll.u32 %v719, 16
  %v913 = vrot.slane %v911, 5
  %v914 = vor.u32 %v910, %v913
  %v915 = vrot.slane %v914, 4
  %v917 = vshll.u32 %v720, 16
  %v919 = vrot.slane %v917, 5
  %v920 = vsel %vm209, %v915, %v919
  %v922 = vshrl.u32 %v721, 16
  %v924 = vrot.slane %v922, 4
  %v925 = vshll.u32 %v721, 16
  %v927 = vrot.slane %v925, 5
  %v928 = vor.u32 %v924, %v927
  %v929 = vrot.slane %v928, 4
  %v931 = vshll.u32 %v722, 16
  %v933 = vrot.slane %v931, 5
  %v934 = vsel %vm209, %v929, %v933
  %v936 = vshrl.u32 %v723, 16
  %v938 = vrot.slane %v936, 4
  %v939 = vshll.u32 %v723, 16
  %v941 = vrot.slane %v939, 5
  %v942 = vor.u32 %v938, %v941
  %v943 = vrot.slane %v942, 4
  %v945 = vshll.u32 %v724, 16
  %v947 = vrot.slane %v945, 5
  %v948 = vsel %vm209, %v943, %v947
  %949 = vrot.lane.b32.xlu0 %v738, 20
  %v950 = vpop.permute.xlu0 %949
  %951 = vrot.lane.b32.xlu0 %v752, 20
  %v952 = vpop.permute.xlu0 %951
  %953 = vrot.lane.b32.xlu0 %v766, 20
  %v954 = vpop.permute.xlu0 %953
  %955 = vrot.lane.b32.xlu0 %v780, 20
  %v956 = vpop.permute.xlu0 %955
  %957 = vrot.lane.b32.xlu0 %v794, 20
  %v958 = vpop.permute.xlu0 %957
  %959 = vrot.lane.b32.xlu0 %v808, 20
  %v960 = vpop.permute.xlu0 %959
  %961 = vrot.lane.b32.xlu0 %v822, 20
  %v962 = vpop.permute.xlu0 %961
  %963 = vrot.lane.b32.xlu0 %v836, 20
  %v964 = vpop.permute.xlu0 %963
  %965 = vrot.lane.b32.xlu0 %v850, 20
  %v966 = vpop.permute.xlu0 %965
  %967 = vrot.lane.b32.xlu0 %v864, 20
  %v968 = vpop.permute.xlu0 %967
  %969 = vrot.lane.b32.xlu0 %v878, 20
  %v970 = vpop.permute.xlu0 %969
  %971 = vrot.lane.b32.xlu0 %v892, 20
  %v972 = vpop.permute.xlu0 %971
  %973 = vrot.lane.b32.xlu0 %v906, 20
  %v974 = vpop.permute.xlu0 %973
  %975 = vrot.lane.b32.xlu0 %v920, 20
  %v976 = vpop.permute.xlu0 %975
  %977 = vrot.lane.b32.xlu0 %v934, 20
  %v978 = vpop.permute.xlu0 %977
  %979 = vrot.lane.b32.xlu0 %v948, 20
  %v980 = vpop.permute.xlu0 %979
  %vm997 = vcmask 191648
  %998 = vst.msk [vmem:[#allocation2] sm:$0xf] %vm997, %v950
  %999 = vst.msk [vmem:[#allocation2 + $0x4] sm:$0xf] %vm997, %v952
  %1000 = vst.msk [vmem:[#allocation2 + $0x8] sm:$0xf] %vm997, %v954
  %1001 = vst.msk [vmem:[#allocation2 + $0xc] sm:$0xf] %vm997, %v956
  %1002 = vst.msk [vmem:[#allocation2 + $0x10] sm:$0xf] %vm997, %v958
  %1003 = vst.msk [vmem:[#allocation2 + $0x14] sm:$0xf] %vm997, %v960
  %1004 = vst.msk [vmem:[#allocation2 + $0x18] sm:$0xf] %vm997, %v962
  %1005 = vst.msk [vmem:[#allocation2 + $0x1c] sm:$0xf] %vm997, %v964
  %1006 = vst.msk [vmem:[#allocation2 + $0x20] sm:$0xf] %vm997, %v966
  %1007 = vst.msk [vmem:[#allocation2 + $0x24] sm:$0xf] %vm997, %v968
  %1008 = vst.msk [vmem:[#allocation2 + $0x28] sm:$0xf] %vm997, %v970
  %1009 = vst.msk [vmem:[#allocation2 + $0x2c] sm:$0xf] %vm997, %v972
  %1010 = vst.msk [vmem:[#allocation2 + $0x30] sm:$0xf] %vm997, %v974
  %1011 = vst.msk [vmem:[#allocation2 + $0x34] sm:$0xf] %vm997, %v976
  %1012 = vst.msk [vmem:[#allocation2 + $0x38] sm:$0xf] %vm997, %v978
  %1013 = vst.msk [vmem:[#allocation2 + $0x3c] sm:$0xf] %vm997, %v980
  %s1014 = scalar_lea.vmem %s0, 8
  %v1015 = vld [vmem:[%s1014] sm:$0xf]
  %v1016 = vld [vmem:[%s1014 + $0x8] sm:$0xf]
  %v1017 = vld [vmem:[%s1014 + $0x10] sm:$0xf]
  %v1018 = vld [vmem:[%s1014 + $0x18] sm:$0xf]
  %v1019 = vld [vmem:[%s1014 + $0x20] sm:$0xf]
  %v1020 = vld [vmem:[%s1014 + $0x28] sm:$0xf]
  %v1021 = vld [vmem:[%s1014 + $0x30] sm:$0xf]
  %v1022 = vld [vmem:[%s1014 + $0x38] sm:$0xf]
  %v1023 = vld [vmem:[%s1014 + $0x48] sm:$0xf]
  %v1024 = vld [vmem:[%s1014 + $0x50] sm:$0xf]
  %v1025 = vld [vmem:[%s1014 + $0x58] sm:$0xf]
  %v1026 = vld [vmem:[%s1014 + $0x60] sm:$0xf]
  %v1027 = vld [vmem:[%s1014 + $0x68] sm:$0xf]
  %v1028 = vld [vmem:[%s1014 + $0x70] sm:$0xf]
  %v1029 = vld [vmem:[%s1014 + $0x78] sm:$0xf]
  %v1030 = vld [vmem:[%s1014 + $0x80] sm:$0xf]
  %1047 = vrot.lane.b32.xlu0 %v1015, 24
  %v1048 = vpop.permute.xlu0 %1047
  %1049 = vrot.lane.b32.xlu0 %v1016, 24
  %v1050 = vpop.permute.xlu0 %1049
  %1051 = vrot.lane.b32.xlu0 %v1017, 24
  %v1052 = vpop.permute.xlu0 %1051
  %1053 = vrot.lane.b32.xlu0 %v1018, 24
  %v1054 = vpop.permute.xlu0 %1053
  %1055 = vrot.lane.b32.xlu0 %v1019, 24
  %v1056 = vpop.permute.xlu0 %1055
  %1057 = vrot.lane.b32.xlu0 %v1020, 24
  %v1058 = vpop.permute.xlu0 %1057
  %1059 = vrot.lane.b32.xlu0 %v1021, 24
  %v1060 = vpop.permute.xlu0 %1059
  %1061 = vrot.lane.b32.xlu0 %v1022, 24
  %v1062 = vpop.permute.xlu0 %1061
  %1063 = vrot.lane.b32.xlu0 %v1023, 24
  %v1064 = vpop.permute.xlu0 %1063
  %1065 = vrot.lane.b32.xlu0 %v1024, 24
  %v1066 = vpop.permute.xlu0 %1065
  %1067 = vrot.lane.b32.xlu0 %v1025, 24
  %v1068 = vpop.permute.xlu0 %1067
  %1069 = vrot.lane.b32.xlu0 %v1026, 24
  %v1070 = vpop.permute.xlu0 %1069
  %1071 = vrot.lane.b32.xlu0 %v1027, 24
  %v1072 = vpop.permute.xlu0 %1071
  %1073 = vrot.lane.b32.xlu0 %v1028, 24
  %v1074 = vpop.permute.xlu0 %1073
  %1075 = vrot.lane.b32.xlu0 %v1029, 24
  %v1076 = vpop.permute.xlu0 %1075
  %1077 = vrot.lane.b32.xlu0 %v1030, 24
  %v1078 = vpop.permute.xlu0 %1077
  %vm1095 = vcmask 224448
  %1096 = vst.msk [vmem:[#allocation2] sm:$0xf] %vm1095, %v1048
  %1097 = vst.msk [vmem:[#allocation2 + $0x4] sm:$0xf] %vm1095, %v1050
  %1098 = vst.msk [vmem:[#allocation2 + $0x8] sm:$0xf] %vm1095, %v1052
  %1099 = vst.msk [vmem:[#allocation2 + $0xc] sm:$0xf] %vm1095, %v1054
  %1100 = vst.msk [vmem:[#allocation2 + $0x10] sm:$0xf] %vm1095, %v1056
  %1101 = vst.msk [vmem:[#allocation2 + $0x14] sm:$0xf] %vm1095, %v1058
  %1102 = vst.msk [vmem:[#allocation2 + $0x18] sm:$0xf] %vm1095, %v1060
  %1103 = vst.msk [vmem:[#allocation2 + $0x1c] sm:$0xf] %vm1095, %v1062
  %1104 = vst.msk [vmem:[#allocation2 + $0x20] sm:$0xf] %vm1095, %v1064
  %1105 = vst.msk [vmem:[#allocation2 + $0x24] sm:$0xf] %vm1095, %v1066
  %1106 = vst.msk [vmem:[#allocation2 + $0x28] sm:$0xf] %vm1095, %v1068
  %1107 = vst.msk [vmem:[#allocation2 + $0x2c] sm:$0xf] %vm1095, %v1070
  %1108 = vst.msk [vmem:[#allocation2 + $0x30] sm:$0xf] %vm1095, %v1072
  %1109 = vst.msk [vmem:[#allocation2 + $0x34] sm:$0xf] %vm1095, %v1074
  %1110 = vst.msk [vmem:[#allocation2 + $0x38] sm:$0xf] %vm1095, %v1076
  %1111 = vst.msk [vmem:[#allocation2 + $0x3c] sm:$0xf] %vm1095, %v1078
  %s1112 = scalar_lea.vmem %s1, 8
  %v1113 = vld [vmem:[%s1112] sm:$0xf]
  %v1114 = vld [vmem:[%s1112 + $0x8] sm:$0xf]
  %v1115 = vld [vmem:[%s1112 + $0x10] sm:$0xf]
  %v1116 = vld [vmem:[%s1112 + $0x18] sm:$0xf]
  %v1117 = vld [vmem:[%s1112 + $0x20] sm:$0xf]
  %v1118 = vld [vmem:[%s1112 + $0x28] sm:$0xf]
  %v1119 = vld [vmem:[%s1112 + $0x30] sm:$0xf]
  %v1120 = vld [vmem:[%s1112 + $0x38] sm:$0xf]
  %v1121 = vld [vmem:[%s1112 + $0x48] sm:$0xf]
  %v1122 = vld [vmem:[%s1112 + $0x50] sm:$0xf]
  %v1123 = vld [vmem:[%s1112 + $0x58] sm:$0xf]
  %v1124 = vld [vmem:[%s1112 + $0x60] sm:$0xf]
  %v1125 = vld [vmem:[%s1112 + $0x68] sm:$0xf]
  %v1126 = vld [vmem:[%s1112 + $0x70] sm:$0xf]
  %v1127 = vld [vmem:[%s1112 + $0x78] sm:$0xf]
  %v1128 = vld [vmem:[%s1112 + $0x80] sm:$0xf]
  %1145 = vrot.lane.b32.xlu0 %v1113, 28
  %v1146 = vpop.permute.xlu0 %1145
  %1147 = vrot.lane.b32.xlu0 %v1114, 28
  %v1148 = vpop.permute.xlu0 %1147
  %1149 = vrot.lane.b32.xlu0 %v1115, 28
  %v1150 = vpop.permute.xlu0 %1149
  %1151 = vrot.lane.b32.xlu0 %v1116, 28
  %v1152 = vpop.permute.xlu0 %1151
  %1153 = vrot.lane.b32.xlu0 %v1117, 28
  %v1154 = vpop.permute.xlu0 %1153
  %1155 = vrot.lane.b32.xlu0 %v1118, 28
  %v1156 = vpop.permute.xlu0 %1155
  %1157 = vrot.lane.b32.xlu0 %v1119, 28
  %v1158 = vpop.permute.xlu0 %1157
  %1159 = vrot.lane.b32.xlu0 %v1120, 28
  %v1160 = vpop.permute.xlu0 %1159
  %1161 = vrot.lane.b32.xlu0 %v1121, 28
  %v1162 = vpop.permute.xlu0 %1161
  %1163 = vrot.lane.b32.xlu0 %v1122, 28
  %v1164 = vpop.permute.xlu0 %1163
  %1165 = vrot.lane.b32.xlu0 %v1123, 28
  %v1166 = vpop.permute.xlu0 %1165
  %1167 = vrot.lane.b32.xlu0 %v1124, 28
  %v1168 = vpop.permute.xlu0 %1167
  %1169 = vrot.lane.b32.xlu0 %v1125, 28
  %v1170 = vpop.permute.xlu0 %1169
  %1171 = vrot.lane.b32.xlu0 %v1126, 28
  %v1172 = vpop.permute.xlu0 %1171
  %1173 = vrot.lane.b32.xlu0 %v1127, 28
  %v1174 = vpop.permute.xlu0 %1173
  %1175 = vrot.lane.b32.xlu0 %v1128, 28
  %v1176 = vpop.permute.xlu0 %1175
  %vm1193 = vcmask 257248
  %1194 = vst.msk [vmem:[#allocation2] sm:$0xf] %vm1193, %v1146
  %1195 = vst.msk [vmem:[#allocation2 + $0x4] sm:$0xf] %vm1193, %v1148
  %1196 = vst.msk [vmem:[#allocation2 + $0x8] sm:$0xf] %vm1193, %v1150
  %1197 = vst.msk [vmem:[#allocation2 + $0xc] sm:$0xf] %vm1193, %v1152
  %1198 = vst.msk [vmem:[#allocation2 + $0x10] sm:$0xf] %vm1193, %v1154
  %1199 = vst.msk [vmem:[#allocation2 + $0x14] sm:$0xf] %vm1193, %v1156
  %1200 = vst.msk [vmem:[#allocation2 + $0x18] sm:$0xf] %vm1193, %v1158
  %1201 = vst.msk [vmem:[#allocation2 + $0x1c] sm:$0xf] %vm1193, %v1160
  %1202 = vst.msk [vmem:[#allocation2 + $0x20] sm:$0xf] %vm1193, %v1162
  %1203 = vst.msk [vmem:[#allocation2 + $0x24] sm:$0xf] %vm1193, %v1164
  %1204 = vst.msk [vmem:[#allocation2 + $0x28] sm:$0xf] %vm1193, %v1166
  %1205 = vst.msk [vmem:[#allocation2 + $0x2c] sm:$0xf] %vm1193, %v1168
  %1206 = vst.msk [vmem:[#allocation2 + $0x30] sm:$0xf] %vm1193, %v1170
  %1207 = vst.msk [vmem:[#allocation2 + $0x34] sm:$0xf] %vm1193, %v1172
  %1208 = vst.msk [vmem:[#allocation2 + $0x38] sm:$0xf] %vm1193, %v1174
  %1209 = vst.msk [vmem:[#allocation2 + $0x3c] sm:$0xf] %vm1193, %v1176
  %v1210 = vld [vmem:[%s1014] sm:$0xf]
  %v1211 = vld [vmem:[%s1014 + $0x4] sm:$0x1]
  %v1212 = vld [vmem:[%s1014 + $0x8] sm:$0xf]
  %v1213 = vld [vmem:[%s1014 + $0xc] sm:$0x1]
  %v1214 = vld [vmem:[%s1014 + $0x10] sm:$0xf]
  %v1215 = vld [vmem:[%s1014 + $0x14] sm:$0x1]
  %v1216 = vld [vmem:[%s1014 + $0x18] sm:$0xf]
  %v1217 = vld [vmem:[%s1014 + $0x1c] sm:$0x1]
  %v1218 = vld [vmem:[%s1014 + $0x20] sm:$0xf]
  %v1219 = vld [vmem:[%s1014 + $0x24] sm:$0x1]
  %v1220 = vld [vmem:[%s1014 + $0x28] sm:$0xf]
  %v1221 = vld [vmem:[%s1014 + $0x2c] sm:$0x1]
  %v1222 = vld [vmem:[%s1014 + $0x30] sm:$0xf]
  %v1223 = vld [vmem:[%s1014 + $0x34] sm:$0x1]
  %v1224 = vld [vmem:[%s1014 + $0x38] sm:$0xf]
  %v1225 = vld [vmem:[%s1014 + $0x3c] sm:$0x1]
  %v1226 = vld [vmem:[%s1014 + $0x48] sm:$0xf]
  %v1227 = vld [vmem:[%s1014 + $0x4c] sm:$0x1]
  %v1228 = vld [vmem:[%s1014 + $0x50] sm:$0xf]
  %v1229 = vld [vmem:[%s1014 + $0x54] sm:$0x1]
  %v1230 = vld [vmem:[%s1014 + $0x58] sm:$0xf]
  %v1231 = vld [vmem:[%s1014 + $0x5c] sm:$0x1]
  %v1232 = vld [vmem:[%s1014 + $0x60] sm:$0xf]
  %v1233 = vld [vmem:[%s1014 + $0x64] sm:$0x1]
  %v1234 = vld [vmem:[%s1014 + $0x68] sm:$0xf]
  %v1235 = vld [vmem:[%s1014 + $0x6c] sm:$0x1]
  %v1236 = vld [vmem:[%s1014 + $0x70] sm:$0xf]
  %v1237 = vld [vmem:[%s1014 + $0x74] sm:$0x1]
  %v1238 = vld [vmem:[%s1014 + $0x78] sm:$0xf]
  %v1239 = vld [vmem:[%s1014 + $0x7c] sm:$0x1]
  %v1240 = vld [vmem:[%s1014 + $0x80] sm:$0xf]
  %v1241 = vld [vmem:[%s1014 + $0x84] sm:$0x1]
  %v1243 = vshrl.u32 %v1210, 16
  %v1245 = vrot.slane %v1243, 4
  %v1246 = vshll.u32 %v1210, 16
  %v1248 = vrot.slane %v1246, 5
  %v1249 = vor.u32 %v1245, %v1248
  %v1250 = vrot.slane %v1249, 4
  %v1252 = vshll.u32 %v1211, 16
  %v1254 = vrot.slane %v1252, 5
  %v1255 = vsel %vm209, %v1250, %v1254
  %v1257 = vshrl.u32 %v1212, 16
  %v1259 = vrot.slane %v1257, 4
  %v1260 = vshll.u32 %v1212, 16
  %v1262 = vrot.slane %v1260, 5
  %v1263 = vor.u32 %v1259, %v1262
  %v1264 = vrot.slane %v1263, 4
  %v1266 = vshll.u32 %v1213, 16
  %v1268 = vrot.slane %v1266, 5
  %v1269 = vsel %vm209, %v1264, %v1268
  %v1271 = vshrl.u32 %v1214, 16
  %v1273 = vrot.slane %v1271, 4
  %v1274 = vshll.u32 %v1214, 16
  %v1276 = vrot.slane %v1274, 5
  %v1277 = vor.u32 %v1273, %v1276
  %v1278 = vrot.slane %v1277, 4
  %v1280 = vshll.u32 %v1215, 16
  %v1282 = vrot.slane %v1280, 5
  %v1283 = vsel %vm209, %v1278, %v1282
  %v1285 = vshrl.u32 %v1216, 16
  %v1287 = vrot.slane %v1285, 4
  %v1288 = vshll.u32 %v1216, 16
  %v1290 = vrot.slane %v1288, 5
  %v1291 = vor.u32 %v1287, %v1290
  %v1292 = vrot.slane %v1291, 4
  %v1294 = vshll.u32 %v1217, 16
  %v1296 = vrot.slane %v1294, 5
  %v1297 = vsel %vm209, %v1292, %v1296
  %v1299 = vshrl.u32 %v1218, 16
  %v1301 = vrot.slane %v1299, 4
  %v1302 = vshll.u32 %v1218, 16
  %v1304 = vrot.slane %v1302, 5
  %v1305 = vor.u32 %v1301, %v1304
  %v1306 = vrot.slane %v1305, 4
  %v1308 = vshll.u32 %v1219, 16
  %v1310 = vrot.slane %v1308, 5
  %v1311 = vsel %vm209, %v1306, %v1310
  %v1313 = vshrl.u32 %v1220, 16
  %v1315 = vrot.slane %v1313, 4
  %v1316 = vshll.u32 %v1220, 16
  %v1318 = vrot.slane %v1316, 5
  %v1319 = vor.u32 %v1315, %v1318
  %v1320 = vrot.slane %v1319, 4
  %v1322 = vshll.u32 %v1221, 16
  %v1324 = vrot.slane %v1322, 5
  %v1325 = vsel %vm209, %v1320, %v1324
  %v1327 = vshrl.u32 %v1222, 16
  %v1329 = vrot.slane %v1327, 4
  %v1330 = vshll.u32 %v1222, 16
  %v1332 = vrot.slane %v1330, 5
  %v1333 = vor.u32 %v1329, %v1332
  %v1334 = vrot.slane %v1333, 4
  %v1336 = vshll.u32 %v1223, 16
  %v1338 = vrot.slane %v1336, 5
  %v1339 = vsel %vm209, %v1334, %v1338
  %v1341 = vshrl.u32 %v1224, 16
  %v1343 = vrot.slane %v1341, 4
  %v1344 = vshll.u32 %v1224, 16
  %v1346 = vrot.slane %v1344, 5
  %v1347 = vor.u32 %v1343, %v1346
  %v1348 = vrot.slane %v1347, 4
  %v1350 = vshll.u32 %v1225, 16
  %v1352 = vrot.slane %v1350, 5
  %v1353 = vsel %vm209, %v1348, %v1352
  %v1355 = vshrl.u32 %v1226, 16
  %v1357 = vrot.slane %v1355, 4
  %v1358 = vshll.u32 %v1226, 16
  %v1360 = vrot.slane %v1358, 5
  %v1361 = vor.u32 %v1357, %v1360
  %v1362 = vrot.slane %v1361, 4
  %v1364 = vshll.u32 %v1227, 16
  %v1366 = vrot.slane %v1364, 5
  %v1367 = vsel %vm209, %v1362, %v1366
  %v1369 = vshrl.u32 %v1228, 16
  %v1371 = vrot.slane %v1369, 4
  %v1372 = vshll.u32 %v1228, 16
  %v1374 = vrot.slane %v1372, 5
  %v1375 = vor.u32 %v1371, %v1374
  %v1376 = vrot.slane %v1375, 4
  %v1378 = vshll.u32 %v1229, 16
  %v1380 = vrot.slane %v1378, 5
  %v1381 = vsel %vm209, %v1376, %v1380
  %v1383 = vshrl.u32 %v1230, 16
  %v1385 = vrot.slane %v1383, 4
  %v1386 = vshll.u32 %v1230, 16
  %v1388 = vrot.slane %v1386, 5
  %v1389 = vor.u32 %v1385, %v1388
  %v1390 = vrot.slane %v1389, 4
  %v1392 = vshll.u32 %v1231, 16
  %v1394 = vrot.slane %v1392, 5
  %v1395 = vsel %vm209, %v1390, %v1394
  %v1397 = vshrl.u32 %v1232, 16
  %v1399 = vrot.slane %v1397, 4
  %v1400 = vshll.u32 %v1232, 16
  %v1402 = vrot.slane %v1400, 5
  %v1403 = vor.u32 %v1399, %v1402
  %v1404 = vrot.slane %v1403, 4
  %v1406 = vshll.u32 %v1233, 16
  %v1408 = vrot.slane %v1406, 5
  %v1409 = vsel %vm209, %v1404, %v1408
  %v1411 = vshrl.u32 %v1234, 16
  %v1413 = vrot.slane %v1411, 4
  %v1414 = vshll.u32 %v1234, 16
  %v1416 = vrot.slane %v1414, 5
  %v1417 = vor.u32 %v1413, %v1416
  %v1418 = vrot.slane %v1417, 4
  %v1420 = vshll.u32 %v1235, 16
  %v1422 = vrot.slane %v1420, 5
  %v1423 = vsel %vm209, %v1418, %v1422
  %v1425 = vshrl.u32 %v1236, 16
  %v1427 = vrot.slane %v1425, 4
  %v1428 = vshll.u32 %v1236, 16
  %v1430 = vrot.slane %v1428, 5
  %v1431 = vor.u32 %v1427, %v1430
  %v1432 = vrot.slane %v1431, 4
  %v1434 = vshll.u32 %v1237, 16
  %v1436 = vrot.slane %v1434, 5
  %v1437 = vsel %vm209, %v1432, %v1436
  %v1439 = vshrl.u32 %v1238, 16
  %v1441 = vrot.slane %v1439, 4
  %v1442 = vshll.u32 %v1238, 16
  %v1444 = vrot.slane %v1442, 5
  %v1445 = vor.u32 %v1441, %v1444
  %v1446 = vrot.slane %v1445, 4
  %v1448 = vshll.u32 %v1239, 16
  %v1450 = vrot.slane %v1448, 5
  %v1451 = vsel %vm209, %v1446, %v1450
  %v1453 = vshrl.u32 %v1240, 16
  %v1455 = vrot.slane %v1453, 4
  %v1456 = vshll.u32 %v1240, 16
  %v1458 = vrot.slane %v1456, 5
  %v1459 = vor.u32 %v1455, %v1458
  %v1460 = vrot.slane %v1459, 4
  %v1462 = vshll.u32 %v1241, 16
  %v1464 = vrot.slane %v1462, 5
  %v1465 = vsel %vm209, %v1460, %v1464
  %1466 = vrot.lane.b32.xlu0 %v1255, 32
  %v1467 = vpop.permute.xlu0 %1466
  %1468 = vrot.lane.b32.xlu0 %v1269, 32
  %v1469 = vpop.permute.xlu0 %1468
  %1470 = vrot.lane.b32.xlu0 %v1283, 32
  %v1471 = vpop.permute.xlu0 %1470
  %1472 = vrot.lane.b32.xlu0 %v1297, 32
  %v1473 = vpop.permute.xlu0 %1472
  %1474 = vrot.lane.b32.xlu0 %v1311, 32
  %v1475 = vpop.permute.xlu0 %1474
  %1476 = vrot.lane.b32.xlu0 %v1325, 32
  %v1477 = vpop.permute.xlu0 %1476
  %1478 = vrot.lane.b32.xlu0 %v1339, 32
  %v1479 = vpop.permute.xlu0 %1478
  %1480 = vrot.lane.b32.xlu0 %v1353, 32
  %v1481 = vpop.permute.xlu0 %1480
  %1482 = vrot.lane.b32.xlu0 %v1367, 32
  %v1483 = vpop.permute.xlu0 %1482
  %1484 = vrot.lane.b32.xlu0 %v1381, 32
  %v1485 = vpop.permute.xlu0 %1484
  %1486 = vrot.lane.b32.xlu0 %v1395, 32
  %v1487 = vpop.permute.xlu0 %1486
  %1488 = vrot.lane.b32.xlu0 %v1409, 32
  %v1489 = vpop.permute.xlu0 %1488
  %1490 = vrot.lane.b32.xlu0 %v1423, 32
  %v1491 = vpop.permute.xlu0 %1490
  %1492 = vrot.lane.b32.xlu0 %v1437, 32
  %v1493 = vpop.permute.xlu0 %1492
  %1494 = vrot.lane.b32.xlu0 %v1451, 32
  %v1495 = vpop.permute.xlu0 %1494
  %1496 = vrot.lane.b32.xlu0 %v1465, 32
  %v1497 = vpop.permute.xlu0 %1496
  %vm1514 = vcmask 290048
  %1515 = vst.msk [vmem:[#allocation2] sm:$0xf] %vm1514, %v1467
  %1516 = vst.msk [vmem:[#allocation2 + $0x4] sm:$0xf] %vm1514, %v1469
  %1517 = vst.msk [vmem:[#allocation2 + $0x8] sm:$0xf] %vm1514, %v1471
  %1518 = vst.msk [vmem:[#allocation2 + $0xc] sm:$0xf] %vm1514, %v1473
  %1519 = vst.msk [vmem:[#allocation2 + $0x10] sm:$0xf] %vm1514, %v1475
  %1520 = vst.msk [vmem:[#allocation2 + $0x14] sm:$0xf] %vm1514, %v1477
  %1521 = vst.msk [vmem:[#allocation2 + $0x18] sm:$0xf] %vm1514, %v1479
  %1522 = vst.msk [vmem:[#allocation2 + $0x1c] sm:$0xf] %vm1514, %v1481
  %1523 = vst.msk [vmem:[#allocation2 + $0x20] sm:$0xf] %vm1514, %v1483
  %1524 = vst.msk [vmem:[#allocation2 + $0x24] sm:$0xf] %vm1514, %v1485
  %1525 = vst.msk [vmem:[#allocation2 + $0x28] sm:$0xf] %vm1514, %v1487
  %1526 = vst.msk [vmem:[#allocation2 + $0x2c] sm:$0xf] %vm1514, %v1489
  %1527 = vst.msk [vmem:[#allocation2 + $0x30] sm:$0xf] %vm1514, %v1491
  %1528 = vst.msk [vmem:[#allocation2 + $0x34] sm:$0xf] %vm1514, %v1493
  %1529 = vst.msk [vmem:[#allocation2 + $0x38] sm:$0xf] %vm1514, %v1495
  %1530 = vst.msk [vmem:[#allocation2 + $0x3c] sm:$0xf] %vm1514, %v1497
  %v1531 = vld [vmem:[#allocation2] sm:$0xf]
  %v1532 = vld [vmem:[#allocation2 + $0x4] sm:$0xf]
  %v1533 = vld [vmem:[#allocation2 + $0x8] sm:$0xf]
  %v1534 = vld [vmem:[#allocation2 + $0xc] sm:$0xf]
  %v1535 = vld [vmem:[#allocation2 + $0x10] sm:$0xf]
  %v1536 = vld [vmem:[#allocation2 + $0x14] sm:$0xf]
  %v1537 = vld [vmem:[#allocation2 + $0x18] sm:$0xf]
  %v1538 = vld [vmem:[#allocation2 + $0x1c] sm:$0xf]
  %v1539 = vld [vmem:[#allocation2 + $0x20] sm:$0xf]
  %v1540 = vld [vmem:[#allocation2 + $0x24] sm:$0xf]
  %v1541 = vld [vmem:[#allocation2 + $0x28] sm:$0xf]
  %v1542 = vld [vmem:[#allocation2 + $0x2c] sm:$0xf]
  %v1543 = vld [vmem:[#allocation2 + $0x30] sm:$0xf]
  %v1544 = vld [vmem:[#allocation2 + $0x34] sm:$0xf]
  %v1545 = vld [vmem:[#allocation2 + $0x38] sm:$0xf]
  %v1546 = vld [vmem:[#allocation2 + $0x3c] sm:$0xf]
  %v1547 = vld [vmem:[%s4] sm:$0xf]
  %v1548 = vld [vmem:[%s4 + $0x4] sm:$0xf]
  %v1549 = vld [vmem:[%s4 + $0x8] sm:$0xf]
  %v1550 = vld [vmem:[%s4 + $0xc] sm:$0xf]
  %v1551 = vld [vmem:[%s4 + $0x10] sm:$0x3]
  %v1568 = vunpack.c.l.b16 %v1531
  %v1569 = vunpack.c.l.b16 %v1532
  %v1570 = vunpack.c.l.b16 %v1533
  %v1571 = vunpack.c.l.b16 %v1534
  %v1572 = vunpack.c.l.b16 %v1535
  %v1573 = vunpack.c.l.b16 %v1536
  %v1574 = vunpack.c.l.b16 %v1537
  %v1575 = vunpack.c.l.b16 %v1538
  %v1576 = vunpack.c.l.b16 %v1539
  %v1577 = vunpack.c.l.b16 %v1540
  %v1578 = vunpack.c.l.b16 %v1541
  %v1579 = vunpack.c.l.b16 %v1542
  %v1580 = vunpack.c.l.b16 %v1543
  %v1581 = vunpack.c.l.b16 %v1544
  %v1582 = vunpack.c.l.b16 %v1545
  %v1583 = vunpack.c.l.b16 %v1546
  %v1584 = vpack.c.b16 %v1569, %v1568
  %v1585 = vpack.c.b16 %v1571, %v1570
  %v1586 = vpack.c.b16 %v1573, %v1572
  %v1587 = vpack.c.b16 %v1575, %v1574
  %v1588 = vpack.c.b16 %v1577, %v1576
  %v1589 = vpack.c.b16 %v1579, %v1578
  %v1590 = vpack.c.b16 %v1581, %v1580
  %v1591 = vpack.c.b16 %v1583, %v1582
  %v1597 = vunpack.c.l.b16 %v1547
  %v1598 = vunpack.c.l.b16 %v1548
  %v1599 = vunpack.c.l.b16 %v1549
  %v1600 = vunpack.c.l.b16 %v1550
  %v1601 = vunpack.c.l.b16 %v1551
  %v1602 = vpack.c.b16 %v1598, %v1597
  %v1603 = vpack.c.b16 %v1600, %v1599
  %v1604 = vpack.c.b16 %v1601, %v1601
  %vm1607 = vcmask 293888
  %v1609 = vsel %vm1607, %v1584, 0
  %v1612 = vsel %vm1607, %v1585, 0
  %v1615 = vsel %vm1607, %v1586, 0
  %v1618 = vsel %vm1607, %v1587, 0
  %v1621 = vsel %vm1607, %v1588, 0
  %v1624 = vsel %vm1607, %v1589, 0
  %v1627 = vsel %vm1607, %v1590, 0
  %v1630 = vsel %vm1607, %v1591, 0
  %vm1632 = vcmask 1041408
  %v1634 = vsel %vm1632, %v1604, 0
  %1636 = vmatprep.subr.bf16.mxu0 0
  %1637 = vmatpush1.bf16.msra.mxu0 0
  %1638 = vmatprep.subr.bf16.mxu0 0
  %1639 = vmatpush1.bf16.msra.mxu0 0
  %1640 = vmatprep.subr.bf16.mxu0 0
  %1641 = vmatpush1.bf16.msra.mxu0 0
  %1642 = vmatprep.subr.bf16.mxu0 0
  %1643 = vmatpush1.bf16.msra.mxu0 0
  %1644 = vmatprep.subr.bf16.mxu0 0
  %1645 = vmatpush1.bf16.msra.mxu0 0
  %1646 = vmatprep.subr.bf16.mxu0 0
  %1647 = vmatpush1.bf16.msra.mxu0 %v1634
  %1648 = vmatprep.subr.bf16.mxu0 0
  %1649 = vmatpush1.bf16.msra.mxu0 %v1603
  %1650 = vmatprep.subr.bf16.mxu0 0
  %1651 = vmatpush1.bf16.msra.mxu0 %v1602
  %1652 = vmatprep.subr.bf16.mxu0 0
  %1653 = vmatpush2.bf16.msra.mxu0 0
  %1654 = vmatprep.subr.bf16.mxu0 0
  %1655 = vmatpush2.bf16.msra.mxu0 0
  %1656 = vmatprep.subr.bf16.mxu0 0
  %1657 = vmatpush2.bf16.msra.mxu0 0
  %1658 = vmatprep.subr.bf16.mxu0 0
  %1659 = vmatpush2.bf16.msra.mxu0 0
  %1660 = vmatprep.subr.bf16.mxu0 0
  %1661 = vmatpush2.bf16.msra.mxu0 0
  %1662 = vmatprep.subr.bf16.mxu0 0
  %1663 = vmatpush2.bf16.msra.mxu0 0
  %1664 = vmatprep.subr.bf16.mxu0 0
  %1665 = vmatpush2.bf16.msra.mxu0 0
  %1666 = vmatprep.subr.bf16.mxu0 0
  %1667 = vmatpush2.bf16.msra.mxu0 0
  %1668 = vmatprep.mubr.bf16.mxu0 0
  %1669 = vmatmul.mubr.bf16.gmra.mxu0 %v1609
  %v1670 = vpop.f32.mrf.mxu0
  %v1671 = vadd.f32 0.0, %v1670
  %v1672 = vpop.f32.mrf.mxu0
  %v1673 = vpop.f32.mrf.mxu0
  %v1674 = vadd.f32 0.0, %v1673
  %v1675 = vpop.f32.mrf.mxu0
  %1676 = vmatprep.mubr.bf16.mxu0 0
  %1677 = vmatmul.mubr.bf16.gmra.mxu0 %v1612
  %v1678 = vpop.f32.mrf.mxu0
  %v1679 = vadd.f32 0.0, %v1678
  %v1680 = vpop.f32.mrf.mxu0
  %v1681 = vpop.f32.mrf.mxu0
  %v1682 = vadd.f32 0.0, %v1681
  %v1683 = vpop.f32.mrf.mxu0
  %1684 = vmatprep.mubr.bf16.mxu0 0
  %1685 = vmatmul.mubr.bf16.gmra.mxu0 %v1615
  %v1686 = vpop.f32.mrf.mxu0
  %v1687 = vadd.f32 0.0, %v1686
  %v1688 = vpop.f32.mrf.mxu0
  %v1689 = vpop.f32.mrf.mxu0
  %v1690 = vadd.f32 0.0, %v1689
  %v1691 = vpop.f32.mrf.mxu0
  %1692 = vmatprep.mubr.bf16.mxu0 0
  %1693 = vmatmul.mubr.bf16.gmra.mxu0 %v1618
  %v1694 = vpop.f32.mrf.mxu0
  %v1695 = vadd.f32 0.0, %v1694
  %v1696 = vpop.f32.mrf.mxu0
  %v1697 = vpop.f32.mrf.mxu0
  %v1698 = vadd.f32 0.0, %v1697
  %v1699 = vpop.f32.mrf.mxu0
  %1700 = vmatprep.mubr.bf16.mxu0 0
  %1701 = vmatmul.mubr.bf16.gmra.mxu0 %v1621
  %v1702 = vpop.f32.mrf.mxu0
  %v1703 = vadd.f32 0.0, %v1702
  %v1704 = vpop.f32.mrf.mxu0
  %v1705 = vpop.f32.mrf.mxu0
  %v1706 = vadd.f32 0.0, %v1705
  %v1707 = vpop.f32.mrf.mxu0
  %1708 = vmatprep.mubr.bf16.mxu0 0
  %1709 = vmatmul.mubr.bf16.gmra.mxu0 %v1624
  %v1710 = vpop.f32.mrf.mxu0
  %v1711 = vadd.f32 0.0, %v1710
  %v1712 = vpop.f32.mrf.mxu0
  %v1713 = vpop.f32.mrf.mxu0
  %v1714 = vadd.f32 0.0, %v1713
  %v1715 = vpop.f32.mrf.mxu0
  %1716 = vmatprep.mubr.bf16.mxu0 0
  %1717 = vmatmul.mubr.bf16.gmra.mxu0 %v1627
  %v1718 = vpop.f32.mrf.mxu0
  %v1719 = vadd.f32 0.0, %v1718
  %v1720 = vpop.f32.mrf.mxu0
  %v1721 = vpop.f32.mrf.mxu0
  %v1722 = vadd.f32 0.0, %v1721
  %v1723 = vpop.f32.mrf.mxu0
  %1724 = vmatprep.mubr.bf16.mxu0 0
  %1725 = vmatmul.mubr.bf16.gmra.mxu0 %v1630
  %v1726 = vpop.f32.mrf.mxu0
  %v1727 = vadd.f32 0.0, %v1726
  %v1728 = vpop.f32.mrf.mxu0
  %v1729 = vpop.f32.mrf.mxu0
  %v1730 = vadd.f32 0.0, %v1729
  %v1731 = vpop.f32.mrf.mxu0
  %1732 = vdwg.mxu0
  %v1733 = vld [vmem:[%s5] sm:$0x1]
  %v1734 = vld [vmem:[%s6] sm:$0x1]
  %vm1735 = vcmask 64512
  %v1736 = vsel %vm1735, %v1671, 0.0
  %v1737 = vsel %vm1735, %v1674, 0.0
  %v1738 = vadd.f32 %v1736, %v1737
  %v1739 = vsel %vm1735, %v1679, 0.0
  %v1740 = vadd.f32 %v1738, %v1739
  %v1741 = vsel %vm1735, %v1682, 0.0
  %v1742 = vadd.f32 %v1740, %v1741
  %v1743 = vsel %vm1735, %v1687, 0.0
  %v1744 = vadd.f32 %v1742, %v1743
  %v1745 = vsel %vm1735, %v1690, 0.0
  %v1746 = vadd.f32 %v1744, %v1745
  %v1747 = vsel %vm1735, %v1695, 0.0
  %v1748 = vadd.f32 %v1746, %v1747
  %v1749 = vsel %vm1735, %v1698, 0.0
  %v1750 = vadd.f32 %v1748, %v1749
  %v1751 = vsel %vm1735, %v1703, 0.0
  %v1752 = vadd.f32 %v1750, %v1751
  %v1753 = vsel %vm1735, %v1706, 0.0
  %v1754 = vadd.f32 %v1752, %v1753
  %v1755 = vsel %vm1735, %v1711, 0.0
  %v1756 = vadd.f32 %v1754, %v1755
  %v1757 = vsel %vm1735, %v1714, 0.0
  %v1758 = vadd.f32 %v1756, %v1757
  %v1759 = vsel %vm1735, %v1719, 0.0
  %v1760 = vadd.f32 %v1758, %v1759
  %v1761 = vsel %vm1735, %v1722, 0.0
  %v1762 = vadd.f32 %v1760, %v1761
  %v1763 = vsel %vm1735, %v1727, 0.0
  %v1764 = vadd.f32 %v1762, %v1763
  %v1765 = vsel %vm1735, %v1730, 0.0
  %v1766 = vadd.f32 %v1764, %v1765
  %v1767 = vrot.slane %v1766, 4
  %v1768 = vadd.f32 %v1766, %v1767
  %v1769 = vrot.slane %v1768, 2
  %v1770 = vadd.f32 %v1768, %v1769
  %v1771 = vrot.slane %v1770, 1
  %v1772 = vadd.f32 %v1770, %v1771
  %v1773 = vrcp.pop 128.0
  %v1774 = vmul.f32 %v1772, %v1773
  %v1775 = vsub.f32 %v1671, %v1774
  %v1776 = vsub.f32 %v1674, %v1774
  %v1777 = vsub.f32 %v1679, %v1774
  %v1778 = vsub.f32 %v1682, %v1774
  %v1779 = vsub.f32 %v1687, %v1774
  %v1780 = vsub.f32 %v1690, %v1774
  %v1781 = vsub.f32 %v1695, %v1774
  %v1782 = vsub.f32 %v1698, %v1774
  %v1783 = vsub.f32 %v1703, %v1774
  %v1784 = vsub.f32 %v1706, %v1774
  %v1785 = vsub.f32 %v1711, %v1774
  %v1786 = vsub.f32 %v1714, %v1774
  %v1787 = vsub.f32 %v1719, %v1774
  %v1788 = vsub.f32 %v1722, %v1774
  %v1789 = vsub.f32 %v1727, %v1774
  %v1790 = vsub.f32 %v1730, %v1774
  %v1791 = vmul.f32 %v1775, %v1775
  %v1792 = vmul.f32 %v1776, %v1776
  %v1793 = vmul.f32 %v1777, %v1777
  %v1794 = vmul.f32 %v1778, %v1778
  %v1795 = vmul.f32 %v1779, %v1779
  %v1796 = vmul.f32 %v1780, %v1780
  %v1797 = vmul.f32 %v1781, %v1781
  %v1798 = vmul.f32 %v1782, %v1782
  %v1799 = vmul.f32 %v1783, %v1783
  %v1800 = vmul.f32 %v1784, %v1784
  %v1801 = vmul.f32 %v1785, %v1785
  %v1802 = vmul.f32 %v1786, %v1786
  %v1803 = vmul.f32 %v1787, %v1787
  %v1804 = vmul.f32 %v1788, %v1788
  %v1805 = vmul.f32 %v1789, %v1789
  %v1806 = vmul.f32 %v1790, %v1790
  %v1807 = vsel %vm1735, %v1791, 0.0
  %v1808 = vsel %vm1735, %v1792, 0.0
  %v1809 = vadd.f32 %v1807, %v1808
  %v1810 = vsel %vm1735, %v1793, 0.0
  %v1811 = vadd.f32 %v1809, %v1810
  %v1812 = vsel %vm1735, %v1794, 0.0
  %v1813 = vadd.f32 %v1811, %v1812
  %v1814 = vsel %vm1735, %v1795, 0.0
  %v1815 = vadd.f32 %v1813, %v1814
  %v1816 = vsel %vm1735, %v1796, 0.0
  %v1817 = vadd.f32 %v1815, %v1816
  %v1818 = vsel %vm1735, %v1797, 0.0
  %v1819 = vadd.f32 %v1817, %v1818
  %v1820 = vsel %vm1735, %v1798, 0.0
  %v1821 = vadd.f32 %v1819, %v1820
  %v1822 = vsel %vm1735, %v1799, 0.0
  %v1823 = vadd.f32 %v1821, %v1822
  %v1824 = vsel %vm1735, %v1800, 0.0
  %v1825 = vadd.f32 %v1823, %v1824
  %v1826 = vsel %vm1735, %v1801, 0.0
  %v1827 = vadd.f32 %v1825, %v1826
  %v1828 = vsel %vm1735, %v1802, 0.0
  %v1829 = vadd.f32 %v1827, %v1828
  %v1830 = vsel %vm1735, %v1803, 0.0
  %v1831 = vadd.f32 %v1829, %v1830
  %v1832 = vsel %vm1735, %v1804, 0.0
  %v1833 = vadd.f32 %v1831, %v1832
  %v1834 = vsel %vm1735, %v1805, 0.0
  %v1835 = vadd.f32 %v1833, %v1834
  %v1836 = vsel %vm1735, %v1806, 0.0
  %v1837 = vadd.f32 %v1835, %v1836
  %v1838 = vrot.slane %v1837, 4
  %v1839 = vadd.f32 %v1837, %v1838
  %v1840 = vrot.slane %v1839, 2
  %v1841 = vadd.f32 %v1839, %v1840
  %v1842 = vrot.slane %v1841, 1
  %v1843 = vadd.f32 %v1841, %v1842
  %v1844 = vmul.f32 %v1843, %v1773
  %v1845 = vadd.f32 %v1844, 1e-05
  %v1846 = vrsqrt.pop %v1845
  %v1847 = vmul.f32 %v1775, %v1846
  %v1848 = vmul.f32 %v1776, %v1846
  %v1849 = vmul.f32 %v1777, %v1846
  %v1850 = vmul.f32 %v1778, %v1846
  %v1851 = vmul.f32 %v1779, %v1846
  %v1852 = vmul.f32 %v1780, %v1846
  %v1853 = vmul.f32 %v1781, %v1846
  %v1854 = vmul.f32 %v1782, %v1846
  %v1855 = vmul.f32 %v1783, %v1846
  %v1856 = vmul.f32 %v1784, %v1846
  %v1857 = vmul.f32 %v1785, %v1846
  %v1858 = vmul.f32 %v1786, %v1846
  %v1859 = vmul.f32 %v1787, %v1846
  %v1860 = vmul.f32 %v1788, %v1846
  %v1861 = vmul.f32 %v1789, %v1846
  %v1862 = vmul.f32 %v1790, %v1846
  %v1864 = vlaneseq
  %v1865 = vshrl.u32 %v1864, 7
  %v1866 = vsub.s32 0, %v1865
  %v1867 = vrot.slane %v1733, %v1866
  %v1869 = vmul.f32 %v1847, %v1867
  %v1870 = vmul.f32 %v1848, %v1867
  %v1871 = vmul.f32 %v1849, %v1867
  %v1872 = vmul.f32 %v1850, %v1867
  %v1873 = vmul.f32 %v1851, %v1867
  %v1874 = vmul.f32 %v1852, %v1867
  %v1875 = vmul.f32 %v1853, %v1867
  %v1876 = vmul.f32 %v1854, %v1867
  %v1877 = vmul.f32 %v1855, %v1867
  %v1878 = vmul.f32 %v1856, %v1867
  %v1879 = vmul.f32 %v1857, %v1867
  %v1880 = vmul.f32 %v1858, %v1867
  %v1881 = vmul.f32 %v1859, %v1867
  %v1882 = vmul.f32 %v1860, %v1867
  %v1883 = vmul.f32 %v1861, %v1867
  %v1884 = vmul.f32 %v1862, %v1867
  %v1886 = vlaneseq
  %v1887 = vshrl.u32 %v1886, 7
  %v1888 = vsub.s32 0, %v1887
  %v1889 = vrot.slane %v1734, %v1888
  %v1891 = vadd.f32 %v1869, %v1889
  %v1892 = vadd.f32 %v1870, %v1889
  %v1893 = vadd.f32 %v1871, %v1889
  %v1894 = vadd.f32 %v1872, %v1889
  %v1895 = vadd.f32 %v1873, %v1889
  %v1896 = vadd.f32 %v1874, %v1889
  %v1897 = vadd.f32 %v1875, %v1889
  %v1898 = vadd.f32 %v1876, %v1889
  %v1899 = vadd.f32 %v1877, %v1889
  %v1900 = vadd.f32 %v1878, %v1889
  %v1901 = vadd.f32 %v1879, %v1889
  %v1902 = vadd.f32 %v1880, %v1889
  %v1903 = vadd.f32 %v1881, %v1889
  %v1904 = vadd.f32 %v1882, %v1889
  %v1905 = vadd.f32 %v1883, %v1889
  %v1906 = vadd.f32 %v1884, %v1889
  %v1907 = vmax.f32 %v1891, 0.0
  %v1908 = vmax.f32 %v1892, 0.0
  %v1909 = vmax.f32 %v1893, 0.0
  %v1910 = vmax.f32 %v1894, 0.0
  %v1911 = vmax.f32 %v1895, 0.0
  %v1912 = vmax.f32 %v1896, 0.0
  %v1913 = vmax.f32 %v1897, 0.0
  %v1914 = vmax.f32 %v1898, 0.0
  %v1915 = vmax.f32 %v1899, 0.0
  %v1916 = vmax.f32 %v1900, 0.0
  %v1917 = vmax.f32 %v1901, 0.0
  %v1918 = vmax.f32 %v1902, 0.0
  %v1919 = vmax.f32 %v1903, 0.0
  %v1920 = vmax.f32 %v1904, 0.0
  %v1921 = vmax.f32 %v1905, 0.0
  %v1922 = vmax.f32 %v1906, 0.0
  %v1923 = vpack.c.bf16 %v1907, %v1907
  %v1924 = vpack.c.bf16 %v1908, %v1908
  %v1925 = vpack.c.bf16 %v1909, %v1909
  %v1926 = vpack.c.bf16 %v1910, %v1910
  %v1927 = vpack.c.bf16 %v1911, %v1911
  %v1928 = vpack.c.bf16 %v1912, %v1912
  %v1929 = vpack.c.bf16 %v1913, %v1913
  %v1930 = vpack.c.bf16 %v1914, %v1914
  %v1931 = vpack.c.bf16 %v1915, %v1915
  %v1932 = vpack.c.bf16 %v1916, %v1916
  %v1933 = vpack.c.bf16 %v1917, %v1917
  %v1934 = vpack.c.bf16 %v1918, %v1918
  %v1935 = vpack.c.bf16 %v1919, %v1919
  %v1936 = vpack.c.bf16 %v1920, %v1920
  %v1937 = vpack.c.bf16 %v1921, %v1921
  %v1938 = vpack.c.bf16 %v1922, %v1922
  %vm1939 = vcmask 584704
  %1940 = vst.msk [vmem:[#allocation3] sm:$0xf] %vm1939, 0
  %1941 = vst.msk [vmem:[#allocation3 + $0x4] sm:$0xf] %vm1939, 0
  %1942 = vst.msk [vmem:[#allocation3 + $0x8] sm:$0xf] %vm1939, 0
  %1943 = vst.msk [vmem:[#allocation3 + $0xc] sm:$0xf] %vm1939, 0
  %1944 = vst.msk [vmem:[#allocation3 + $0x10] sm:$0xf] %vm1939, 0
  %1945 = vst.msk [vmem:[#allocation3 + $0x14] sm:$0xf] %vm1939, 0
  %1946 = vst.msk [vmem:[#allocation3 + $0x18] sm:$0xf] %vm1939, 0
  %1947 = vst.msk [vmem:[#allocation3 + $0x1c] sm:$0xf] %vm1939, 0
  %1948 = vst.msk [vmem:[#allocation3 + $0x20] sm:$0xf] %vm1939, 0
  %1949 = vst.msk [vmem:[#allocation3 + $0x24] sm:$0xf] %vm1939, 0
  %1950 = vst.msk [vmem:[#allocation3 + $0x28] sm:$0xf] %vm1939, 0
  %1951 = vst.msk [vmem:[#allocation3 + $0x2c] sm:$0xf] %vm1939, 0
  %1952 = vst.msk [vmem:[#allocation3 + $0x30] sm:$0xf] %vm1939, 0
  %1953 = vst.msk [vmem:[#allocation3 + $0x34] sm:$0xf] %vm1939, 0
  %1954 = vst.msk [vmem:[#allocation3 + $0x38] sm:$0xf] %vm1939, 0
  %1955 = vst.msk [vmem:[#allocation3 + $0x3c] sm:$0xf] %vm1939, 0
  %v1970 = vunpack.c.l.b16 %v1923
  %v1971 = vunpack.c.l.b16 %v1924
  %v1972 = vunpack.c.l.b16 %v1925
  %v1973 = vunpack.c.l.b16 %v1926
  %v1974 = vunpack.c.l.b16 %v1927
  %v1975 = vunpack.c.l.b16 %v1928
  %v1976 = vunpack.c.l.b16 %v1929
  %v1977 = vunpack.c.l.b16 %v1931
  %v1978 = vunpack.c.l.b16 %v1932
  %v1979 = vunpack.c.l.b16 %v1933
  %v1980 = vunpack.c.l.b16 %v1934
  %v1981 = vunpack.c.l.b16 %v1935
  %v1982 = vunpack.c.l.b16 %v1936
  %v1983 = vunpack.c.l.b16 %v1937
  %v1984 = vpack.c.b16 %v1970, %v1970
  %v1985 = vpack.c.b16 %v1971, %v1971
  %v1986 = vpack.c.b16 %v1972, %v1972
  %v1987 = vpack.c.b16 %v1973, %v1973
  %v1988 = vpack.c.b16 %v1974, %v1974
  %v1989 = vpack.c.b16 %v1975, %v1975
  %v1990 = vpack.c.b16 %v1976, %v1976
  %v1991 = vpack.c.b16 %v1977, %v1977
  %v1992 = vpack.c.b16 %v1978, %v1978
  %v1993 = vpack.c.b16 %v1979, %v1979
  %v1994 = vpack.c.b16 %v1980, %v1980
  %v1995 = vpack.c.b16 %v1981, %v1981
  %v1996 = vpack.c.b16 %v1982, %v1982
  %v1997 = vpack.c.b16 %v1983, %v1983
  %v1999 = vshrl.u32 %v1984, 16
  %v2001 = vrot.slane %v1999, 7
  %v2002 = vshll.u32 %v1984, 16
  %v2004 = vor.u32 %v2001, %v2002
  %v2006 = vshrl.u32 %v1985, 16
  %v2008 = vrot.slane %v2006, 7
  %v2009 = vshll.u32 %v1985, 16
  %v2011 = vor.u32 %v2008, %v2009
  %v2013 = vshrl.u32 %v1986, 16
  %v2015 = vrot.slane %v2013, 7
  %v2016 = vshll.u32 %v1986, 16
  %v2018 = vor.u32 %v2015, %v2016
  %v2020 = vshrl.u32 %v1987, 16
  %v2022 = vrot.slane %v2020, 7
  %v2023 = vshll.u32 %v1987, 16
  %v2025 = vor.u32 %v2022, %v2023
  %v2027 = vshrl.u32 %v1988, 16
  %v2029 = vrot.slane %v2027, 7
  %v2030 = vshll.u32 %v1988, 16
  %v2032 = vor.u32 %v2029, %v2030
  %v2034 = vshrl.u32 %v1989, 16
  %v2036 = vrot.slane %v2034, 7
  %v2037 = vshll.u32 %v1989, 16
  %v2039 = vor.u32 %v2036, %v2037
  %v2041 = vshrl.u32 %v1990, 16
  %v2043 = vrot.slane %v2041, 7
  %v2044 = vshll.u32 %v1990, 16
  %v2046 = vor.u32 %v2043, %v2044
  %v2048 = vshrl.u32 %v1991, 16
  %v2050 = vrot.slane %v2048, 7
  %v2051 = vshll.u32 %v1991, 16
  %v2053 = vor.u32 %v2050, %v2051
  %v2055 = vshrl.u32 %v1992, 16
  %v2057 = vrot.slane %v2055, 7
  %v2058 = vshll.u32 %v1992, 16
  %v2060 = vor.u32 %v2057, %v2058
  %v2062 = vshrl.u32 %v1993, 16
  %v2064 = vrot.slane %v2062, 7
  %v2065 = vshll.u32 %v1993, 16
  %v2067 = vor.u32 %v2064, %v2065
  %v2069 = vshrl.u32 %v1994, 16
  %v2071 = vrot.slane %v2069, 7
  %v2072 = vshll.u32 %v1994, 16
  %v2074 = vor.u32 %v2071, %v2072
  %v2076 = vshrl.u32 %v1995, 16
  %v2078 = vrot.slane %v2076, 7
  %v2079 = vshll.u32 %v1995, 16
  %v2081 = vor.u32 %v2078, %v2079
  %v2083 = vshrl.u32 %v1996, 16
  %v2085 = vrot.slane %v2083, 7
  %v2086 = vshll.u32 %v1996, 16
  %v2088 = vor.u32 %v2085, %v2086
  %v2090 = vshrl.u32 %v1997, 16
  %v2092 = vrot.slane %v2090, 7
  %v2093 = vshll.u32 %v1997, 16
  %v2095 = vor.u32 %v2092, %v2093
  %s2110 = scalar_lea.vmem [#allocation3], 4
  %vm2111 = vcmask 60416
  %vm2112 = vsmask.f32 7938
  %vm2113 = vmand %vm2111, %vm2112
  %v2114 = vld [vmem:[%s2110] sm:$0xf]
  %v2115 = vsel %vm2113, %v2004, %v2114
  %2116 = vst [vmem:[%s2110] sm:$0xf] %v2115
  %v2117 = vld [vmem:[%s2110 + $0x4] sm:$0xf]
  %v2118 = vsel %vm2113, %v2011, %v2117
  %2119 = vst [vmem:[%s2110 + $0x4] sm:$0xf] %v2118
  %v2120 = vld [vmem:[%s2110 + $0x8] sm:$0xf]
  %v2121 = vsel %vm2113, %v2018, %v2120
  %2122 = vst [vmem:[%s2110 + $0x8] sm:$0xf] %v2121
  %v2123 = vld [vmem:[%s2110 + $0xc] sm:$0xf]
  %v2124 = vsel %vm2113, %v2025, %v2123
  %2125 = vst [vmem:[%s2110 + $0xc] sm:$0xf] %v2124
  %v2126 = vld [vmem:[%s2110 + $0x10] sm:$0xf]
  %v2127 = vsel %vm2113, %v2032, %v2126
  %2128 = vst [vmem:[%s2110 + $0x10] sm:$0xf] %v2127
  %v2129 = vld [vmem:[%s2110 + $0x14] sm:$0xf]
  %v2130 = vsel %vm2113, %v2039, %v2129
  %2131 = vst [vmem:[%s2110 + $0x14] sm:$0xf] %v2130
  %v2132 = vld [vmem:[%s2110 + $0x18] sm:$0xf]
  %v2133 = vsel %vm2113, %v2046, %v2132
  %2134 = vst [vmem:[%s2110 + $0x18] sm:$0xf] %v2133
  %v2135 = vld [vmem:[%s2110 + $0x20] sm:$0xf]
  %v2136 = vsel %vm2113, %v2053, %v2135
  %2137 = vst [vmem:[%s2110 + $0x20] sm:$0xf] %v2136
  %v2138 = vld [vmem:[%s2110 + $0x24] sm:$0xf]
  %v2139 = vsel %vm2113, %v2060, %v2138
  %2140 = vst [vmem:[%s2110 + $0x24] sm:$0xf] %v2139
  %v2141 = vld [vmem:[%s2110 + $0x28] sm:$0xf]
  %v2142 = vsel %vm2113, %v2067, %v2141
  %2143 = vst [vmem:[%s2110 + $0x28] sm:$0xf] %v2142
  %v2144 = vld [vmem:[%s2110 + $0x2c] sm:$0xf]
  %v2145 = vsel %vm2113, %v2074, %v2144
  %2146 = vst [vmem:[%s2110 + $0x2c] sm:$0xf] %v2145
  %v2147 = vld [vmem:[%s2110 + $0x30] sm:$0xf]
  %v2148 = vsel %vm2113, %v2081, %v2147
  %2149 = vst [vmem:[%s2110 + $0x30] sm:$0xf] %v2148
  %v2150 = vld [vmem:[%s2110 + $0x34] sm:$0xf]
  %v2151 = vsel %vm2113, %v2088, %v2150
  %2152 = vst [vmem:[%s2110 + $0x34] sm:$0xf] %v2151
  %v2153 = vld [vmem:[%s2110 + $0x38] sm:$0xf]
  %v2154 = vsel %vm2113, %v2095, %v2153
  %2155 = vst [vmem:[%s2110 + $0x38] sm:$0xf] %v2154
  %2156 = vrot.lane.b32.xlu0 %v1984, 8
  %v2157 = vpop.permute.xlu0 %2156
  %2158 = vrot.lane.b32.xlu0 %v1985, 8
  %v2159 = vpop.permute.xlu0 %2158
  %2160 = vrot.lane.b32.xlu0 %v1986, 8
  %v2161 = vpop.permute.xlu0 %2160
  %2162 = vrot.lane.b32.xlu0 %v1987, 8
  %v2163 = vpop.permute.xlu0 %2162
  %2164 = vrot.lane.b32.xlu0 %v1988, 8
  %v2165 = vpop.permute.xlu0 %2164
  %2166 = vrot.lane.b32.xlu0 %v1989, 8
  %v2167 = vpop.permute.xlu0 %2166
  %2168 = vrot.lane.b32.xlu0 %v1990, 8
  %v2169 = vpop.permute.xlu0 %2168
  %2170 = vrot.lane.b32.xlu0 %v1991, 8
  %v2171 = vpop.permute.xlu0 %2170
  %2172 = vrot.lane.b32.xlu0 %v1992, 8
  %v2173 = vpop.permute.xlu0 %2172
  %2174 = vrot.lane.b32.xlu0 %v1993, 8
  %v2175 = vpop.permute.xlu0 %2174
  %2176 = vrot.lane.b32.xlu0 %v1994, 8
  %v2177 = vpop.permute.xlu0 %2176
  %2178 = vrot.lane.b32.xlu0 %v1995, 8
  %v2179 = vpop.permute.xlu0 %2178
  %2180 = vrot.lane.b32.xlu0 %v1996, 8
  %v2181 = vpop.permute.xlu0 %2180
  %2182 = vrot.lane.b32.xlu0 %v1997, 8
  %v2183 = vpop.permute.xlu0 %2182
  %vm2198 = vcmask 126016
  %2199 = vst.msk [vmem:[%s2110] sm:$0xf] %vm2198, %v2157
  %2200 = vst.msk [vmem:[%s2110 + $0x4] sm:$0xf] %vm2198, %v2159
  %2201 = vst.msk [vmem:[%s2110 + $0x8] sm:$0xf] %vm2198, %v2161
  %2202 = vst.msk [vmem:[%s2110 + $0xc] sm:$0xf] %vm2198, %v2163
  %2203 = vst.msk [vmem:[%s2110 + $0x10] sm:$0xf] %vm2198, %v2165
  %2204 = vst.msk [vmem:[%s2110 + $0x14] sm:$0xf] %vm2198, %v2167
  %2205 = vst.msk [vmem:[%s2110 + $0x18] sm:$0xf] %vm2198, %v2169
  %2206 = vst.msk [vmem:[%s2110 + $0x20] sm:$0xf] %vm2198, %v2171
  %2207 = vst.msk [vmem:[%s2110 + $0x24] sm:$0xf] %vm2198, %v2173
  %2208 = vst.msk [vmem:[%s2110 + $0x28] sm:$0xf] %vm2198, %v2175
  %2209 = vst.msk [vmem:[%s2110 + $0x2c] sm:$0xf] %vm2198, %v2177
  %2210 = vst.msk [vmem:[%s2110 + $0x30] sm:$0xf] %vm2198, %v2179
  %2211 = vst.msk [vmem:[%s2110 + $0x34] sm:$0xf] %vm2198, %v2181
  %2212 = vst.msk [vmem:[%s2110 + $0x38] sm:$0xf] %vm2198, %v2183
  %v2213 = vrot.slane %v1999, 4
  %v2214 = vrot.slane %v2002, 5
  %v2215 = vor.u32 %v2213, %v2214
  %v2216 = vrot.slane %v2215, 4
  %v2217 = vrot.slane %v2006, 4
  %v2218 = vrot.slane %v2009, 5
  %v2219 = vor.u32 %v2217, %v2218
  %v2220 = vrot.slane %v2219, 4
  %v2221 = vrot.slane %v2013, 4
  %v2222 = vrot.slane %v2016, 5
  %v2223 = vor.u32 %v2221, %v2222
  %v2224 = vrot.slane %v2223, 4
  %v2225 = vrot.slane %v2020, 4
  %v2226 = vrot.slane %v2023, 5
  %v2227 = vor.u32 %v2225, %v2226
  %v2228 = vrot.slane %v2227, 4
  %v2229 = vrot.slane %v2027, 4
  %v2230 = vrot.slane %v2030, 5
  %v2231 = vor.u32 %v2229, %v2230
  %v2232 = vrot.slane %v2231, 4
  %v2233 = vrot.slane %v2034, 4
  %v2234 = vrot.slane %v2037, 5
  %v2235 = vor.u32 %v2233, %v2234
  %v2236 = vrot.slane %v2235, 4
  %v2237 = vrot.slane %v2041, 4
  %v2238 = vrot.slane %v2044, 5
  %v2239 = vor.u32 %v2237, %v2238
  %v2240 = vrot.slane %v2239, 4
  %v2241 = vrot.slane %v2048, 4
  %v2242 = vrot.slane %v2051, 5
  %v2243 = vor.u32 %v2241, %v2242
  %v2244 = vrot.slane %v2243, 4
  %v2245 = vrot.slane %v2055, 4
  %v2246 = vrot.slane %v2058, 5
  %v2247 = vor.u32 %v2245, %v2246
  %v2248 = vrot.slane %v2247, 4
  %v2249 = vrot.slane %v2062, 4
  %v2250 = vrot.slane %v2065, 5
  %v2251 = vor.u32 %v2249, %v2250
  %v2252 = vrot.slane %v2251, 4
  %v2253 = vrot.slane %v2069, 4
  %v2254 = vrot.slane %v2072, 5
  %v2255 = vor.u32 %v2253, %v2254
  %v2256 = vrot.slane %v2255, 4
  %v2257 = vrot.slane %v2076, 4
  %v2258 = vrot.slane %v2079, 5
  %v2259 = vor.u32 %v2257, %v2258
  %v2260 = vrot.slane %v2259, 4
  %v2261 = vrot.slane %v2083, 4
  %v2262 = vrot.slane %v2086, 5
  %v2263 = vor.u32 %v2261, %v2262
  %v2264 = vrot.slane %v2263, 4
  %v2265 = vrot.slane %v2090, 4
  %v2266 = vrot.slane %v2093, 5
  %v2267 = vor.u32 %v2265, %v2266
  %v2268 = vrot.slane %v2267, 4
  %2269 = vrot.lane.b32.xlu0 %v2216, 16
  %v2270 = vpop.permute.xlu0 %2269
  %2271 = vrot.lane.b32.xlu0 %v2220, 16
  %v2272 = vpop.permute.xlu0 %2271
  %2273 = vrot.lane.b32.xlu0 %v2224, 16
  %v2274 = vpop.permute.xlu0 %2273
  %2275 = vrot.lane.b32.xlu0 %v2228, 16
  %v2276 = vpop.permute.xlu0 %2275
  %2277 = vrot.lane.b32.xlu0 %v2232, 16
  %v2278 = vpop.permute.xlu0 %2277
  %2279 = vrot.lane.b32.xlu0 %v2236, 16
  %v2280 = vpop.permute.xlu0 %2279
  %2281 = vrot.lane.b32.xlu0 %v2240, 16
  %v2282 = vpop.permute.xlu0 %2281
  %2283 = vrot.lane.b32.xlu0 %v2244, 16
  %v2284 = vpop.permute.xlu0 %2283
  %2285 = vrot.lane.b32.xlu0 %v2248, 16
  %v2286 = vpop.permute.xlu0 %2285
  %2287 = vrot.lane.b32.xlu0 %v2252, 16
  %v2288 = vpop.permute.xlu0 %2287
  %2289 = vrot.lane.b32.xlu0 %v2256, 16
  %v2290 = vpop.permute.xlu0 %2289
  %2291 = vrot.lane.b32.xlu0 %v2260, 16
  %v2292 = vpop.permute.xlu0 %2291
  %2293 = vrot.lane.b32.xlu0 %v2264, 16
  %v2294 = vpop.permute.xlu0 %2293
  %2295 = vrot.lane.b32.xlu0 %v2268, 16
  %v2296 = vpop.permute.xlu0 %2295
  %vm2311 = vcmask 191616
  %vm2312 = vmand %vm2311, %vm207
  %v2313 = vld [vmem:[%s2110] sm:$0xf]
  %v2314 = vsel %vm2312, %v2270, %v2313
  %2315 = vst [vmem:[%s2110] sm:$0xf] %v2314
  %v2316 = vld [vmem:[%s2110 + $0x4] sm:$0xf]
  %v2317 = vsel %vm2312, %v2272, %v2316
  %2318 = vst [vmem:[%s2110 + $0x4] sm:$0xf] %v2317
  %v2319 = vld [vmem:[%s2110 + $0x8] sm:$0xf]
  %v2320 = vsel %vm2312, %v2274, %v2319
  %2321 = vst [vmem:[%s2110 + $0x8] sm:$0xf] %v2320
  %v2322 = vld [vmem:[%s2110 + $0xc] sm:$0xf]
  %v2323 = vsel %vm2312, %v2276, %v2322
  %2324 = vst [vmem:[%s2110 + $0xc] sm:$0xf] %v2323
  %v2325 = vld [vmem:[%s2110 + $0x10] sm:$0xf]
  %v2326 = vsel %vm2312, %v2278, %v2325
  %2327 = vst [vmem:[%s2110 + $0x10] sm:$0xf] %v2326
  %v2328 = vld [vmem:[%s2110 + $0x14] sm:$0xf]
  %v2329 = vsel %vm2312, %v2280, %v2328
  %2330 = vst [vmem:[%s2110 + $0x14] sm:$0xf] %v2329
  %v2331 = vld [vmem:[%s2110 + $0x18] sm:$0xf]
  %v2332 = vsel %vm2312, %v2282, %v2331
  %2333 = vst [vmem:[%s2110 + $0x18] sm:$0xf] %v2332
  %v2334 = vld [vmem:[%s2110 + $0x20] sm:$0xf]
  %v2335 = vsel %vm2312, %v2284, %v2334
  %2336 = vst [vmem:[%s2110 + $0x20] sm:$0xf] %v2335
  %v2337 = vld [vmem:[%s2110 + $0x24] sm:$0xf]
  %v2338 = vsel %vm2312, %v2286, %v2337
  %2339 = vst [vmem:[%s2110 + $0x24] sm:$0xf] %v2338
  %v2340 = vld [vmem:[%s2110 + $0x28] sm:$0xf]
  %v2341 = vsel %vm2312, %v2288, %v2340
  %2342 = vst [vmem:[%s2110 + $0x28] sm:$0xf] %v2341
  %v2343 = vld [vmem:[%s2110 + $0x2c] sm:$0xf]
  %v2344 = vsel %vm2312, %v2290, %v2343
  %2345 = vst [vmem:[%s2110 + $0x2c] sm:$0xf] %v2344
  %v2346 = vld [vmem:[%s2110 + $0x30] sm:$0xf]
  %v2347 = vsel %vm2312, %v2292, %v2346
  %2348 = vst [vmem:[%s2110 + $0x30] sm:$0xf] %v2347
  %v2349 = vld [vmem:[%s2110 + $0x34] sm:$0xf]
  %v2350 = vsel %vm2312, %v2294, %v2349
  %2351 = vst [vmem:[%s2110 + $0x34] sm:$0xf] %v2350
  %v2352 = vld [vmem:[%s2110 + $0x38] sm:$0xf]
  %v2353 = vsel %vm2312, %v2296, %v2352
  %2354 = vst [vmem:[%s2110 + $0x38] sm:$0xf] %v2353
  %v2357 = vunpack.c.l.b16 %v1930
  %v2358 = vunpack.c.l.b16 %v1938
  %v2359 = vpack.c.b16 %v2357, %v2357
  %v2360 = vpack.c.b16 %v2358, %v2358
  %v2362 = vshrl.u32 %v2359, 16
  %v2364 = vrot.slane %v2362, 7
  %v2365 = vshll.u32 %v2359, 16
  %v2367 = vor.u32 %v2364, %v2365
  %v2369 = vshrl.u32 %v2360, 16
  %v2371 = vrot.slane %v2369, 7
  %v2372 = vshll.u32 %v2360, 16
  %v2374 = vor.u32 %v2371, %v2372
  %2375 = vrot.lane.b32.xlu0 %v2004, 24
  %v2376 = vpop.permute.xlu0 %2375
  %2377 = vrot.lane.b32.xlu0 %v2011, 24
  %v2378 = vpop.permute.xlu0 %2377
  %2379 = vrot.lane.b32.xlu0 %v2018, 24
  %v2380 = vpop.permute.xlu0 %2379
  %2381 = vrot.lane.b32.xlu0 %v2025, 24
  %v2382 = vpop.permute.xlu0 %2381
  %2383 = vrot.lane.b32.xlu0 %v2032, 24
  %v2384 = vpop.permute.xlu0 %2383
  %2385 = vrot.lane.b32.xlu0 %v2039, 24
  %v2386 = vpop.permute.xlu0 %2385
  %2387 = vrot.lane.b32.xlu0 %v2046, 24
  %v2388 = vpop.permute.xlu0 %2387
  %2389 = vrot.lane.b32.xlu0 %v2367, 24
  %v2390 = vpop.permute.xlu0 %2389
  %2391 = vrot.lane.b32.xlu0 %v2053, 24
  %v2392 = vpop.permute.xlu0 %2391
  %2393 = vrot.lane.b32.xlu0 %v2060, 24
  %v2394 = vpop.permute.xlu0 %2393
  %2395 = vrot.lane.b32.xlu0 %v2067, 24
  %v2396 = vpop.permute.xlu0 %2395
  %2397 = vrot.lane.b32.xlu0 %v2074, 24
  %v2398 = vpop.permute.xlu0 %2397
  %2399 = vrot.lane.b32.xlu0 %v2081, 24
  %v2400 = vpop.permute.xlu0 %2399
  %2401 = vrot.lane.b32.xlu0 %v2088, 24
  %v2402 = vpop.permute.xlu0 %2401
  %2403 = vrot.lane.b32.xlu0 %v2095, 24
  %v2404 = vpop.permute.xlu0 %2403
  %2405 = vrot.lane.b32.xlu0 %v2374, 24
  %v2406 = vpop.permute.xlu0 %2405
  %vm2423 = vcmask 257216
  %vm2424 = vmand %vm2423, %vm2112
  %v2425 = vld [vmem:[#allocation3] sm:$0xf]
  %v2426 = vsel %vm2424, %v2376, %v2425
  %2427 = vst [vmem:[#allocation3] sm:$0xf] %v2426
  %v2428 = vld [vmem:[#allocation3 + $0x4] sm:$0xf]
  %v2429 = vsel %vm2424, %v2378, %v2428
  %2430 = vst [vmem:[#allocation3 + $0x4] sm:$0xf] %v2429
  %v2431 = vld [vmem:[#allocation3 + $0x8] sm:$0xf]
  %v2432 = vsel %vm2424, %v2380, %v2431
  %2433 = vst [vmem:[#allocation3 + $0x8] sm:$0xf] %v2432
  %v2434 = vld [vmem:[#allocation3 + $0xc] sm:$0xf]
  %v2435 = vsel %vm2424, %v2382, %v2434
  %2436 = vst [vmem:[#allocation3 + $0xc] sm:$0xf] %v2435
  %v2437 = vld [vmem:[#allocation3 + $0x10] sm:$0xf]
  %v2438 = vsel %vm2424, %v2384, %v2437
  %2439 = vst [vmem:[#allocation3 + $0x10] sm:$0xf] %v2438
  %v2440 = vld [vmem:[#allocation3 + $0x14] sm:$0xf]
  %v2441 = vsel %vm2424, %v2386, %v2440
  %2442 = vst [vmem:[#allocation3 + $0x14] sm:$0xf] %v2441
  %v2443 = vld [vmem:[#allocation3 + $0x18] sm:$0xf]
  %v2444 = vsel %vm2424, %v2388, %v2443
  %2445 = vst [vmem:[#allocation3 + $0x18] sm:$0xf] %v2444
  %v2446 = vld [vmem:[#allocation3 + $0x1c] sm:$0xf]
  %v2447 = vsel %vm2424, %v2390, %v2446
  %2448 = vst [vmem:[#allocation3 + $0x1c] sm:$0xf] %v2447
  %v2449 = vld [vmem:[#allocation3 + $0x20] sm:$0xf]
  %v2450 = vsel %vm2424, %v2392, %v2449
  %2451 = vst [vmem:[#allocation3 + $0x20] sm:$0xf] %v2450
  %v2452 = vld [vmem:[#allocation3 + $0x24] sm:$0xf]
  %v2453 = vsel %vm2424, %v2394, %v2452
  %2454 = vst [vmem:[#allocation3 + $0x24] sm:$0xf] %v2453
  %v2455 = vld [vmem:[#allocation3 + $0x28] sm:$0xf]
  %v2456 = vsel %vm2424, %v2396, %v2455
  %2457 = vst [vmem:[#allocation3 + $0x28] sm:$0xf] %v2456
  %v2458 = vld [vmem:[#allocation3 + $0x2c] sm:$0xf]
  %v2459 = vsel %vm2424, %v2398, %v2458
  %2460 = vst [vmem:[#allocation3 + $0x2c] sm:$0xf] %v2459
  %v2461 = vld [vmem:[#allocation3 + $0x30] sm:$0xf]
  %v2462 = vsel %vm2424, %v2400, %v2461
  %2463 = vst [vmem:[#allocation3 + $0x30] sm:$0xf] %v2462
  %v2464 = vld [vmem:[#allocation3 + $0x34] sm:$0xf]
  %v2465 = vsel %vm2424, %v2402, %v2464
  %2466 = vst [vmem:[#allocation3 + $0x34] sm:$0xf] %v2465
  %v2467 = vld [vmem:[#allocation3 + $0x38] sm:$0xf]
  %v2468 = vsel %vm2424, %v2404, %v2467
  %2469 = vst [vmem:[#allocation3 + $0x38] sm:$0xf] %v2468
  %v2470 = vld [vmem:[#allocation3 + $0x3c] sm:$0xf]
  %v2471 = vsel %vm2424, %v2406, %v2470
  %2472 = vst [vmem:[#allocation3 + $0x3c] sm:$0xf] %v2471
  %2473 = vrot.lane.b32.xlu0 %v1984, 32
  %v2474 = vpop.permute.xlu0 %2473
  %2475 = vrot.lane.b32.xlu0 %v1985, 32
  %v2476 = vpop.permute.xlu0 %2475
  %2477 = vrot.lane.b32.xlu0 %v1986, 32
  %v2478 = vpop.permute.xlu0 %2477
  %2479 = vrot.lane.b32.xlu0 %v1987, 32
  %v2480 = vpop.permute.xlu0 %2479
  %2481 = vrot.lane.b32.xlu0 %v1988, 32
  %v2482 = vpop.permute.xlu0 %2481
  %2483 = vrot.lane.b32.xlu0 %v1989, 32
  %v2484 = vpop.permute.xlu0 %2483
  %2485 = vrot.lane.b32.xlu0 %v1990, 32
  %v2486 = vpop.permute.xlu0 %2485
  %2487 = vrot.lane.b32.xlu0 %v2359, 32
  %v2488 = vpop.permute.xlu0 %2487
  %2489 = vrot.lane.b32.xlu0 %v1991, 32
  %v2490 = vpop.permute.xlu0 %2489
  %2491 = vrot.lane.b32.xlu0 %v1992, 32
  %v2492 = vpop.permute.xlu0 %2491
  %2493 = vrot.lane.b32.xlu0 %v1993, 32
  %v2494 = vpop.permute.xlu0 %2493
  %2495 = vrot.lane.b32.xlu0 %v1994, 32
  %v2496 = vpop.permute.xlu0 %2495
  %2497 = vrot.lane.b32.xlu0 %v1995, 32
  %v2498 = vpop.permute.xlu0 %2497
  %2499 = vrot.lane.b32.xlu0 %v1996, 32
  %v2500 = vpop.permute.xlu0 %2499
  %2501 = vrot.lane.b32.xlu0 %v1997, 32
  %v2502 = vpop.permute.xlu0 %2501
  %2503 = vrot.lane.b32.xlu0 %v2360, 32
  %v2504 = vpop.permute.xlu0 %2503
  %vm2521 = vcmask 322816
  %2522 = vst.msk [vmem:[#allocation3] sm:$0xf] %vm2521, %v2474
  %2523 = vst.msk [vmem:[#allocation3 + $0x4] sm:$0xf] %vm2521, %v2476
  %2524 = vst.msk [vmem:[#allocation3 + $0x8] sm:$0xf] %vm2521, %v2478
  %2525 = vst.msk [vmem:[#allocation3 + $0xc] sm:$0xf] %vm2521, %v2480
  %2526 = vst.msk [vmem:[#allocation3 + $0x10] sm:$0xf] %vm2521, %v2482
  %2527 = vst.msk [vmem:[#allocation3 + $0x14] sm:$0xf] %vm2521, %v2484
  %2528 = vst.msk [vmem:[#allocation3 + $0x18] sm:$0xf] %vm2521, %v2486
  %2529 = vst.msk [vmem:[#allocation3 + $0x1c] sm:$0xf] %vm2521, %v2488
  %2530 = vst.msk [vmem:[#allocation3 + $0x20] sm:$0xf] %vm2521, %v2490
  %2531 = vst.msk [vmem:[#allocation3 + $0x24] sm:$0xf] %vm2521, %v2492
  %2532 = vst.msk [vmem:[#allocation3 + $0x28] sm:$0xf] %vm2521, %v2494
  %2533 = vst.msk [vmem:[#allocation3 + $0x2c] sm:$0xf] %vm2521, %v2496
  %2534 = vst.msk [vmem:[#allocation3 + $0x30] sm:$0xf] %vm2521, %v2498
  %2535 = vst.msk [vmem:[#allocation3 + $0x34] sm:$0xf] %vm2521, %v2500
  %2536 = vst.msk [vmem:[#allocation3 + $0x38] sm:$0xf] %vm2521, %v2502
  %2537 = vst.msk [vmem:[#allocation3 + $0x3c] sm:$0xf] %vm2521, %v2504
  %v2538 = vrot.slane %v2362, 4
  %v2539 = vrot.slane %v2365, 5
  %v2540 = vor.u32 %v2538, %v2539
  %v2541 = vrot.slane %v2540, 4
  %v2542 = vrot.slane %v2369, 4
  %v2543 = vrot.slane %v2372, 5
  %v2544 = vor.u32 %v2542, %v2543
  %v2545 = vrot.slane %v2544, 4
  %2546 = vrot.lane.b32.xlu0 %v2216, 40
  %v2547 = vpop.permute.xlu0 %2546
  %2548 = vrot.lane.b32.xlu0 %v2220, 40
  %v2549 = vpop.permute.xlu0 %2548
  %2550 = vrot.lane.b32.xlu0 %v2224, 40
  %v2551 = vpop.permute.xlu0 %2550
  %2552 = vrot.lane.b32.xlu0 %v2228, 40
  %v2553 = vpop.permute.xlu0 %2552
  %2554 = vrot.lane.b32.xlu0 %v2232, 40
  %v2555 = vpop.permute.xlu0 %2554
  %2556 = vrot.lane.b32.xlu0 %v2236, 40
  %v2557 = vpop.permute.xlu0 %2556
  %2558 = vrot.lane.b32.xlu0 %v2240, 40
  %v2559 = vpop.permute.xlu0 %2558
  %2560 = vrot.lane.b32.xlu0 %v2541, 40
  %v2561 = vpop.permute.xlu0 %2560
  %2562 = vrot.lane.b32.xlu0 %v2244, 40
  %v2563 = vpop.permute.xlu0 %2562
  %2564 = vrot.lane.b32.xlu0 %v2248, 40
  %v2565 = vpop.permute.xlu0 %2564
  %2566 = vrot.lane.b32.xlu0 %v2252, 40
  %v2567 = vpop.permute.xlu0 %2566
  %2568 = vrot.lane.b32.xlu0 %v2256, 40
  %v2569 = vpop.permute.xlu0 %2568
  %2570 = vrot.lane.b32.xlu0 %v2260, 40
  %v2571 = vpop.permute.xlu0 %2570
  %2572 = vrot.lane.b32.xlu0 %v2264, 40
  %v2573 = vpop.permute.xlu0 %2572
  %2574 = vrot.lane.b32.xlu0 %v2268, 40
  %v2575 = vpop.permute.xlu0 %2574
  %2576 = vrot.lane.b32.xlu0 %v2545, 40
  %v2577 = vpop.permute.xlu0 %2576
  %vm2594 = vcmask 388416
  %vm2595 = vmand %vm2594, %vm207
  %v2596 = vld [vmem:[#allocation3] sm:$0xf]
  %v2597 = vsel %vm2595, %v2547, %v2596
  %2598 = vst [vmem:[#allocation3] sm:$0xf] %v2597
  %v2599 = vld [vmem:[#allocation3 + $0x4] sm:$0xf]
  %v2600 = vsel %vm2595, %v2549, %v2599
  %2601 = vst [vmem:[#allocation3 + $0x4] sm:$0xf] %v2600
  %v2602 = vld [vmem:[#allocation3 + $0x8] sm:$0xf]
  %v2603 = vsel %vm2595, %v2551, %v2602
  %2604 = vst [vmem:[#allocation3 + $0x8] sm:$0xf] %v2603
  %v2605 = vld [vmem:[#allocation3 + $0xc] sm:$0xf]
  %v2606 = vsel %vm2595, %v2553, %v2605
  %2607 = vst [vmem:[#allocation3 + $0xc] sm:$0xf] %v2606
  %v2608 = vld [vmem:[#allocation3 + $0x10] sm:$0xf]
  %v2609 = vsel %vm2595, %v2555, %v2608
  %2610 = vst [vmem:[#allocation3 + $0x10] sm:$0xf] %v2609
  %v2611 = vld [vmem:[#allocation3 + $0x14] sm:$0xf]
  %v2612 = vsel %vm2595, %v2557, %v2611
  %2613 = vst [vmem:[#allocation3 + $0x14] sm:$0xf] %v2612
  %v2614 = vld [vmem:[#allocation3 + $0x18] sm:$0xf]
  %v2615 = vsel %vm2595, %v2559, %v2614
  %2616 = vst [vmem:[#allocation3 + $0x18] sm:$0xf] %v2615
  %v2617 = vld [vmem:[#allocation3 + $0x1c] sm:$0xf]
  %v2618 = vsel %vm2595, %v2561, %v2617
  %2619 = vst [vmem:[#allocation3 + $0x1c] sm:$0xf] %v2618
  %v2620 = vld [vmem:[#allocation3 + $0x20] sm:$0xf]
  %v2621 = vsel %vm2595, %v2563, %v2620
  %2622 = vst [vmem:[#allocation3 + $0x20] sm:$0xf] %v2621
  %v2623 = vld [vmem:[#allocation3 + $0x24] sm:$0xf]
  %v2624 = vsel %vm2595, %v2565, %v2623
  %2625 = vst [vmem:[#allocation3 + $0x24] sm:$0xf] %v2624
  %v2626 = vld [vmem:[#allocation3 + $0x28] sm:$0xf]
  %v2627 = vsel %vm2595, %v2567, %v2626
  %2628 = vst [vmem:[#allocation3 + $0x28] sm:$0xf] %v2627
  %v2629 = vld [vmem:[#allocation3 + $0x2c] sm:$0xf]
  %v2630 = vsel %vm2595, %v2569, %v2629
  %2631 = vst [vmem:[#allocation3 + $0x2c] sm:$0xf] %v2630
  %v2632 = vld [vmem:[#allocation3 + $0x30] sm:$0xf]
  %v2633 = vsel %vm2595, %v2571, %v2632
  %2634 = vst [vmem:[#allocation3 + $0x30] sm:$0xf] %v2633
  %v2635 = vld [vmem:[#allocation3 + $0x34] sm:$0xf]
  %v2636 = vsel %vm2595, %v2573, %v2635
  %2637 = vst [vmem:[#allocation3 + $0x34] sm:$0xf] %v2636
  %v2638 = vld [vmem:[#allocation3 + $0x38] sm:$0xf]
  %v2639 = vsel %vm2595, %v2575, %v2638
  %2640 = vst [vmem:[#allocation3 + $0x38] sm:$0xf] %v2639
  %v2641 = vld [vmem:[#allocation3 + $0x3c] sm:$0xf]
  %v2642 = vsel %vm2595, %v2577, %v2641
  %2643 = vst [vmem:[#allocation3 + $0x3c] sm:$0xf] %v2642
  %2644 = vrot.lane.b32.xlu0 %v2011, 48
  %v2645 = vpop.permute.xlu0 %2644
  %2646 = vrot.lane.b32.xlu0 %v2018, 48
  %v2647 = vpop.permute.xlu0 %2646
  %2648 = vrot.lane.b32.xlu0 %v2025, 48
  %v2649 = vpop.permute.xlu0 %2648
  %2650 = vrot.lane.b32.xlu0 %v2032, 48
  %v2651 = vpop.permute.xlu0 %2650
  %2652 = vrot.lane.b32.xlu0 %v2039, 48
  %v2653 = vpop.permute.xlu0 %2652
  %2654 = vrot.lane.b32.xlu0 %v2046, 48
  %v2655 = vpop.permute.xlu0 %2654
  %2656 = vrot.lane.b32.xlu0 %v2367, 48
  %v2657 = vpop.permute.xlu0 %2656
  %2658 = vrot.lane.b32.xlu0 %v2060, 48
  %v2659 = vpop.permute.xlu0 %2658
  %2660 = vrot.lane.b32.xlu0 %v2067, 48
  %v2661 = vpop.permute.xlu0 %2660
  %2662 = vrot.lane.b32.xlu0 %v2074, 48
  %v2663 = vpop.permute.xlu0 %2662
  %2664 = vrot.lane.b32.xlu0 %v2081, 48
  %v2665 = vpop.permute.xlu0 %2664
  %2666 = vrot.lane.b32.xlu0 %v2088, 48
  %v2667 = vpop.permute.xlu0 %2666
  %2668 = vrot.lane.b32.xlu0 %v2095, 48
  %v2669 = vpop.permute.xlu0 %2668
  %2670 = vrot.lane.b32.xlu0 %v2374, 48
  %v2671 = vpop.permute.xlu0 %2670
  %vm2686 = vcmask 454016
  %vm2687 = vmand %vm2686, %vm2112
  %v2688 = vld [vmem:[#allocation3] sm:$0xf]
  %v2689 = vsel %vm2687, %v2645, %v2688
  %2690 = vst [vmem:[#allocation3] sm:$0xf] %v2689
  %v2691 = vld [vmem:[#allocation3 + $0x4] sm:$0xf]
  %v2692 = vsel %vm2687, %v2647, %v2691
  %2693 = vst [vmem:[#allocation3 + $0x4] sm:$0xf] %v2692
  %v2694 = vld [vmem:[#allocation3 + $0x8] sm:$0xf]
  %v2695 = vsel %vm2687, %v2649, %v2694
  %2696 = vst [vmem:[#allocation3 + $0x8] sm:$0xf] %v2695
  %v2697 = vld [vmem:[#allocation3 + $0xc] sm:$0xf]
  %v2698 = vsel %vm2687, %v2651, %v2697
  %2699 = vst [vmem:[#allocation3 + $0xc] sm:$0xf] %v2698
  %v2700 = vld [vmem:[#allocation3 + $0x10] sm:$0xf]
  %v2701 = vsel %vm2687, %v2653, %v2700
  %2702 = vst [vmem:[#allocation3 + $0x10] sm:$0xf] %v2701
  %v2703 = vld [vmem:[#allocation3 + $0x14] sm:$0xf]
  %v2704 = vsel %vm2687, %v2655, %v2703
  %2705 = vst [vmem:[#allocation3 + $0x14] sm:$0xf] %v2704
  %v2706 = vld [vmem:[#allocation3 + $0x18] sm:$0xf]
  %v2707 = vsel %vm2687, %v2657, %v2706
  %2708 = vst [vmem:[#allocation3 + $0x18] sm:$0xf] %v2707
  %v2709 = vld [vmem:[#allocation3 + $0x20] sm:$0xf]
  %v2710 = vsel %vm2687, %v2659, %v2709
  %2711 = vst [vmem:[#allocation3 + $0x20] sm:$0xf] %v2710
  %v2712 = vld [vmem:[#allocation3 + $0x24] sm:$0xf]
  %v2713 = vsel %vm2687, %v2661, %v2712
  %2714 = vst [vmem:[#allocation3 + $0x24] sm:$0xf] %v2713
  %v2715 = vld [vmem:[#allocation3 + $0x28] sm:$0xf]
  %v2716 = vsel %vm2687, %v2663, %v2715
  %2717 = vst [vmem:[#allocation3 + $0x28] sm:$0xf] %v2716
  %v2718 = vld [vmem:[#allocation3 + $0x2c] sm:$0xf]
  %v2719 = vsel %vm2687, %v2665, %v2718
  %2720 = vst [vmem:[#allocation3 + $0x2c] sm:$0xf] %v2719
  %v2721 = vld [vmem:[#allocation3 + $0x30] sm:$0xf]
  %v2722 = vsel %vm2687, %v2667, %v2721
  %2723 = vst [vmem:[#allocation3 + $0x30] sm:$0xf] %v2722
  %v2724 = vld [vmem:[#allocation3 + $0x34] sm:$0xf]
  %v2725 = vsel %vm2687, %v2669, %v2724
  %2726 = vst [vmem:[#allocation3 + $0x34] sm:$0xf] %v2725
  %v2727 = vld [vmem:[#allocation3 + $0x38] sm:$0xf]
  %v2728 = vsel %vm2687, %v2671, %v2727
  %2729 = vst [vmem:[#allocation3 + $0x38] sm:$0xf] %v2728
  %2730 = vrot.lane.b32.xlu0 %v1985, 56
  %v2731 = vpop.permute.xlu0 %2730
  %2732 = vrot.lane.b32.xlu0 %v1986, 56
  %v2733 = vpop.permute.xlu0 %2732
  %2734 = vrot.lane.b32.xlu0 %v1987, 56
  %v2735 = vpop.permute.xlu0 %2734
  %2736 = vrot.lane.b32.xlu0 %v1988, 56
  %v2737 = vpop.permute.xlu0 %2736
  %2738 = vrot.lane.b32.xlu0 %v1989, 56
  %v2739 = vpop.permute.xlu0 %2738
  %2740 = vrot.lane.b32.xlu0 %v1990, 56
  %v2741 = vpop.permute.xlu0 %2740
  %2742 = vrot.lane.b32.xlu0 %v2359, 56
  %v2743 = vpop.permute.xlu0 %2742
  %2744 = vrot.lane.b32.xlu0 %v1992, 56
  %v2745 = vpop.permute.xlu0 %2744
  %2746 = vrot.lane.b32.xlu0 %v1993, 56
  %v2747 = vpop.permute.xlu0 %2746
  %2748 = vrot.lane.b32.xlu0 %v1994, 56
  %v2749 = vpop.permute.xlu0 %2748
  %2750 = vrot.lane.b32.xlu0 %v1995, 56
  %v2751 = vpop.permute.xlu0 %2750
  %2752 = vrot.lane.b32.xlu0 %v1996, 56
  %v2753 = vpop.permute.xlu0 %2752
  %2754 = vrot.lane.b32.xlu0 %v1997, 56
  %v2755 = vpop.permute.xlu0 %2754
  %2756 = vrot.lane.b32.xlu0 %v2360, 56
  %v2757 = vpop.permute.xlu0 %2756
  %vm2772 = vcmask 519616
  %2773 = vst.msk [vmem:[#allocation3] sm:$0xf] %vm2772, %v2731
  %2774 = vst.msk [vmem:[#allocation3 + $0x4] sm:$0xf] %vm2772, %v2733
  %2775 = vst.msk [vmem:[#allocation3 + $0x8] sm:$0xf] %vm2772, %v2735
  %2776 = vst.msk [vmem:[#allocation3 + $0xc] sm:$0xf] %vm2772, %v2737
  %2777 = vst.msk [vmem:[#allocation3 + $0x10] sm:$0xf] %vm2772, %v2739
  %2778 = vst.msk [vmem:[#allocation3 + $0x14] sm:$0xf] %vm2772, %v2741
  %2779 = vst.msk [vmem:[#allocation3 + $0x18] sm:$0xf] %vm2772, %v2743
  %2780 = vst.msk [vmem:[#allocation3 + $0x20] sm:$0xf] %vm2772, %v2745
  %2781 = vst.msk [vmem:[#allocation3 + $0x24] sm:$0xf] %vm2772, %v2747
  %2782 = vst.msk [vmem:[#allocation3 + $0x28] sm:$0xf] %vm2772, %v2749
  %2783 = vst.msk [vmem:[#allocation3 + $0x2c] sm:$0xf] %vm2772, %v2751
  %2784 = vst.msk [vmem:[#allocation3 + $0x30] sm:$0xf] %vm2772, %v2753
  %2785 = vst.msk [vmem:[#allocation3 + $0x34] sm:$0xf] %vm2772, %v2755
  %2786 = vst.msk [vmem:[#allocation3 + $0x38] sm:$0xf] %vm2772, %v2757
  %2787 = vrot.lane.b32.xlu0 %v2220, 64
  %v2788 = vpop.permute.xlu0 %2787
  %2789 = vrot.lane.b32.xlu0 %v2224, 64
  %v2790 = vpop.permute.xlu0 %2789
  %2791 = vrot.lane.b32.xlu0 %v2228, 64
  %v2792 = vpop.permute.xlu0 %2791
  %2793 = vrot.lane.b32.xlu0 %v2232, 64
  %v2794 = vpop.permute.xlu0 %2793
  %2795 = vrot.lane.b32.xlu0 %v2236, 64
  %v2796 = vpop.permute.xlu0 %2795
  %2797 = vrot.lane.b32.xlu0 %v2240, 64
  %v2798 = vpop.permute.xlu0 %2797
  %2799 = vrot.lane.b32.xlu0 %v2541, 64
  %v2800 = vpop.permute.xlu0 %2799
  %2801 = vrot.lane.b32.xlu0 %v2248, 64
  %v2802 = vpop.permute.xlu0 %2801
  %2803 = vrot.lane.b32.xlu0 %v2252, 64
  %v2804 = vpop.permute.xlu0 %2803
  %2805 = vrot.lane.b32.xlu0 %v2256, 64
  %v2806 = vpop.permute.xlu0 %2805
  %2807 = vrot.lane.b32.xlu0 %v2260, 64
  %v2808 = vpop.permute.xlu0 %2807
  %2809 = vrot.lane.b32.xlu0 %v2264, 64
  %v2810 = vpop.permute.xlu0 %2809
  %2811 = vrot.lane.b32.xlu0 %v2268, 64
  %v2812 = vpop.permute.xlu0 %2811
  %2813 = vrot.lane.b32.xlu0 %v2545, 64
  %v2814 = vpop.permute.xlu0 %2813
  %vm2829 = vcmask 585216
  %vm2830 = vmand %vm2829, %vm207
  %v2831 = vld [vmem:[#allocation3] sm:$0xf]
  %v2832 = vsel %vm2830, %v2788, %v2831
  %2833 = vst [vmem:[#allocation3] sm:$0xf] %v2832
  %v2834 = vld [vmem:[#allocation3 + $0x4] sm:$0xf]
  %v2835 = vsel %vm2830, %v2790, %v2834
  %2836 = vst [vmem:[#allocation3 + $0x4] sm:$0xf] %v2835
  %v2837 = vld [vmem:[#allocation3 + $0x8] sm:$0xf]
  %v2838 = vsel %vm2830, %v2792, %v2837
  %2839 = vst [vmem:[#allocation3 + $0x8] sm:$0xf] %v2838
  %v2840 = vld [vmem:[#allocation3 + $0xc] sm:$0xf]
  %v2841 = vsel %vm2830, %v2794, %v2840
  %2842 = vst [vmem:[#allocation3 + $0xc] sm:$0xf] %v2841
  %v2843 = vld [vmem:[#allocation3 + $0x10] sm:$0xf]
  %v2844 = vsel %vm2830, %v2796, %v2843
  %2845 = vst [vmem:[#allocation3 + $0x10] sm:$0xf] %v2844
  %v2846 = vld [vmem:[#allocation3 + $0x14] sm:$0xf]
  %v2847 = vsel %vm2830, %v2798, %v2846
  %2848 = vst [vmem:[#allocation3 + $0x14] sm:$0xf] %v2847
  %v2849 = vld [vmem:[#allocation3 + $0x18] sm:$0xf]
  %v2850 = vsel %vm2830, %v2800, %v2849
  %2851 = vst [vmem:[#allocation3 + $0x18] sm:$0xf] %v2850
  %v2852 = vld [vmem:[#allocation3 + $0x20] sm:$0xf]
  %v2853 = vsel %vm2830, %v2802, %v2852
  %2854 = vst [vmem:[#allocation3 + $0x20] sm:$0xf] %v2853
  %v2855 = vld [vmem:[#allocation3 + $0x24] sm:$0xf]
  %v2856 = vsel %vm2830, %v2804, %v2855
  %2857 = vst [vmem:[#allocation3 + $0x24] sm:$0xf] %v2856
  %v2858 = vld [vmem:[#allocation3 + $0x28] sm:$0xf]
  %v2859 = vsel %vm2830, %v2806, %v2858
  %2860 = vst [vmem:[#allocation3 + $0x28] sm:$0xf] %v2859
  %v2861 = vld [vmem:[#allocation3 + $0x2c] sm:$0xf]
  %v2862 = vsel %vm2830, %v2808, %v2861
  %2863 = vst [vmem:[#allocation3 + $0x2c] sm:$0xf] %v2862
  %v2864 = vld [vmem:[#allocation3 + $0x30] sm:$0xf]
  %v2865 = vsel %vm2830, %v2810, %v2864
  %2866 = vst [vmem:[#allocation3 + $0x30] sm:$0xf] %v2865
  %v2867 = vld [vmem:[#allocation3 + $0x34] sm:$0xf]
  %v2868 = vsel %vm2830, %v2812, %v2867
  %2869 = vst [vmem:[#allocation3 + $0x34] sm:$0xf] %v2868
  %v2870 = vld [vmem:[#allocation3 + $0x38] sm:$0xf]
  %v2871 = vsel %vm2830, %v2814, %v2870
  %2872 = vst [vmem:[#allocation3 + $0x38] sm:$0xf] %v2871
  %v2873 = vld [vmem:[#allocation3] sm:$0xf]
  %v2874 = vld [vmem:[#allocation3 + $0x4] sm:$0xf]
  %v2875 = vld [vmem:[#allocation3 + $0x8] sm:$0xf]
  %v2876 = vld [vmem:[#allocation3 + $0xc] sm:$0xf]
  %v2877 = vld [vmem:[#allocation3 + $0x10] sm:$0xf]
  %v2878 = vld [vmem:[#allocation3 + $0x14] sm:$0xf]
  %v2879 = vld [vmem:[#allocation3 + $0x18] sm:$0xf]
  %v2880 = vld [vmem:[#allocation3 + $0x1c] sm:$0xf]
  %v2881 = vld [vmem:[#allocation3 + $0x20] sm:$0xf]
  %v2882 = vld [vmem:[#allocation3 + $0x24] sm:$0xf]
  %v2883 = vld [vmem:[#allocation3 + $0x28] sm:$0xf]
  %v2884 = vld [vmem:[#allocation3 + $0x2c] sm:$0xf]
  %v2885 = vld [vmem:[#allocation3 + $0x30] sm:$0xf]
  %v2886 = vld [vmem:[#allocation3 + $0x34] sm:$0xf]
  %v2887 = vld [vmem:[#allocation3 + $0x38] sm:$0xf]
  %v2888 = vld [vmem:[#allocation3 + $0x3c] sm:$0xf]
  %v2889 = vld [vmem:[%s7] sm:$0xf]
  %v2890 = vld [vmem:[%s7 + $0x4] sm:$0xf]
  %v2891 = vld [vmem:[%s7 + $0x8] sm:$0xf]
  %v2892 = vld [vmem:[%s7 + $0xc] sm:$0xf]
  %v2893 = vld [vmem:[%s7 + $0x10] sm:$0xf]
  %v2894 = vld [vmem:[%s7 + $0x14] sm:$0xf]
  %v2895 = vld [vmem:[%s7 + $0x18] sm:$0xf]
  %v2896 = vld [vmem:[%s7 + $0x1c] sm:$0xf]
  %v2897 = vld [vmem:[%s7 + $0x20] sm:$0xf]
  %v2914 = vunpack.c.l.b16 %v2873
  %v2915 = vunpack.c.l.b16 %v2874
  %v2916 = vunpack.c.l.b16 %v2875
  %v2917 = vunpack.c.l.b16 %v2876
  %v2918 = vunpack.c.l.b16 %v2877
  %v2919 = vunpack.c.l.b16 %v2878
  %v2920 = vunpack.c.l.b16 %v2879
  %v2921 = vunpack.c.l.b16 %v2880
  %v2922 = vunpack.c.l.b16 %v2881
  %v2923 = vunpack.c.l.b16 %v2882
  %v2924 = vunpack.c.l.b16 %v2883
  %v2925 = vunpack.c.l.b16 %v2884
  %v2926 = vunpack.c.l.b16 %v2885
  %v2927 = vunpack.c.l.b16 %v2886
  %v2928 = vunpack.c.l.b16 %v2887
  %v2929 = vunpack.c.l.b16 %v2888
  %v2930 = vpack.c.b16 %v2915, %v2914
  %v2931 = vpack.c.b16 %v2917, %v2916
  %v2932 = vpack.c.b16 %v2919, %v2918
  %v2933 = vpack.c.b16 %v2921, %v2920
  %v2934 = vpack.c.b16 %v2923, %v2922
  %v2935 = vpack.c.b16 %v2925, %v2924
  %v2936 = vpack.c.b16 %v2927, %v2926
  %v2937 = vpack.c.b16 %v2929, %v2928
  %v2947 = vunpack.c.l.b16 %v2889
  %v2948 = vunpack.c.l.b16 %v2890
  %v2949 = vunpack.c.l.b16 %v2891
  %v2950 = vunpack.c.l.b16 %v2892
  %v2951 = vunpack.c.l.b16 %v2893
  %v2952 = vunpack.c.l.b16 %v2894
  %v2953 = vunpack.c.l.b16 %v2895
  %v2954 = vunpack.c.l.b16 %v2896
  %v2955 = vunpack.c.l.b16 %v2897
  %v2956 = vpack.c.b16 %v2948, %v2947
  %v2957 = vpack.c.b16 %v2950, %v2949
  %v2958 = vpack.c.b16 %v2952, %v2951
  %v2959 = vpack.c.b16 %v2954, %v2953
  %v2960 = vpack.c.b16 %v2955, %v2955
  %vm2965 = vcmask 588800
  %v2967 = vsel %vm2965, %v2930, 0
  %v2970 = vsel %vm2965, %v2931, 0
  %v2973 = vsel %vm2965, %v2932, 0
  %v2976 = vsel %vm2965, %v2933, 0
  %v2979 = vsel %vm2965, %v2934, 0
  %v2982 = vsel %vm2965, %v2935, 0
  %v2985 = vsel %vm2965, %v2936, 0
  %v2988 = vsel %vm2965, %v2937, 0
  %vm2990 = vcmask 1043456
  %v2992 = vsel %vm2990, %v2960, 0
  %2994 = vmatprep.subr.bf16.mxu0 0
  %2995 = vmatpush1.bf16.msra.mxu0 0
  %2996 = vmatprep.subr.bf16.mxu0 0
  %2997 = vmatpush1.bf16.msra.mxu0 0
  %2998 = vmatprep.subr.bf16.mxu0 0
  %2999 = vmatpush1.bf16.msra.mxu0 0
  %3000 = vmatprep.subr.bf16.mxu0 0
  %3001 = vmatpush1.bf16.msra.mxu0 %v2992
  %3002 = vmatprep.subr.bf16.mxu0 0
  %3003 = vmatpush1.bf16.msra.mxu0 %v2959
  %3004 = vmatprep.subr.bf16.mxu0 0
  %3005 = vmatpush1.bf16.msra.mxu0 %v2958
  %3006 = vmatprep.subr.bf16.mxu0 0
  %3007 = vmatpush1.bf16.msra.mxu0 %v2957
  %3008 = vmatprep.subr.bf16.mxu0 0
  %3009 = vmatpush1.bf16.msra.mxu0 %v2956
  %3010 = vmatprep.subr.bf16.mxu0 0
  %3011 = vmatpush2.bf16.msra.mxu0 0
  %3012 = vmatprep.subr.bf16.mxu0 0
  %3013 = vmatpush2.bf16.msra.mxu0 0
  %3014 = vmatprep.subr.bf16.mxu0 0
  %3015 = vmatpush2.bf16.msra.mxu0 0
  %3016 = vmatprep.subr.bf16.mxu0 0
  %3017 = vmatpush2.bf16.msra.mxu0 0
  %3018 = vmatprep.subr.bf16.mxu0 0
  %3019 = vmatpush2.bf16.msra.mxu0 0
  %3020 = vmatprep.subr.bf16.mxu0 0
  %3021 = vmatpush2.bf16.msra.mxu0 0
  %3022 = vmatprep.subr.bf16.mxu0 0
  %3023 = vmatpush2.bf16.msra.mxu0 0
  %3024 = vmatprep.subr.bf16.mxu0 0
  %3025 = vmatpush2.bf16.msra.mxu0 0
  %3026 = vmatprep.mubr.bf16.mxu0 0
  %3027 = vmatmul.mubr.bf16.gmra.mxu0 %v2967
  %v3028 = vpop.f32.mrf.mxu0
  %v3029 = vadd.f32 0.0, %v3028
  %v3030 = vpop.f32.mrf.mxu0
  %v3031 = vpop.f32.mrf.mxu0
  %v3032 = vadd.f32 0.0, %v3031
  %v3033 = vpop.f32.mrf.mxu0
  %3034 = vmatprep.mubr.bf16.mxu0 0
  %3035 = vmatmul.mubr.bf16.gmra.mxu0 %v2970
  %v3036 = vpop.f32.mrf.mxu0
  %v3037 = vadd.f32 0.0, %v3036
  %v3038 = vpop.f32.mrf.mxu0
  %v3039 = vpop.f32.mrf.mxu0
  %v3040 = vadd.f32 0.0, %v3039
  %v3041 = vpop.f32.mrf.mxu0
  %3042 = vmatprep.mubr.bf16.mxu0 0
  %3043 = vmatmul.mubr.bf16.gmra.mxu0 %v2973
  %v3044 = vpop.f32.mrf.mxu0
  %v3045 = vadd.f32 0.0, %v3044
  %v3046 = vpop.f32.mrf.mxu0
  %v3047 = vpop.f32.mrf.mxu0
  %v3048 = vadd.f32 0.0, %v3047
  %v3049 = vpop.f32.mrf.mxu0
  %3050 = vmatprep.mubr.bf16.mxu0 0
  %3051 = vmatmul.mubr.bf16.gmra.mxu0 %v2976
  %v3052 = vpop.f32.mrf.mxu0
  %v3053 = vadd.f32 0.0, %v3052
  %v3054 = vpop.f32.mrf.mxu0
  %v3055 = vpop.f32.mrf.mxu0
  %v3056 = vadd.f32 0.0, %v3055
  %v3057 = vpop.f32.mrf.mxu0
  %3058 = vmatprep.mubr.bf16.mxu0 0
  %3059 = vmatmul.mubr.bf16.gmra.mxu0 %v2979
  %v3060 = vpop.f32.mrf.mxu0
  %v3061 = vadd.f32 0.0, %v3060
  %v3062 = vpop.f32.mrf.mxu0
  %v3063 = vpop.f32.mrf.mxu0
  %v3064 = vadd.f32 0.0, %v3063
  %v3065 = vpop.f32.mrf.mxu0
  %3066 = vmatprep.mubr.bf16.mxu0 0
  %3067 = vmatmul.mubr.bf16.gmra.mxu0 %v2982
  %v3068 = vpop.f32.mrf.mxu0
  %v3069 = vadd.f32 0.0, %v3068
  %v3070 = vpop.f32.mrf.mxu0
  %v3071 = vpop.f32.mrf.mxu0
  %v3072 = vadd.f32 0.0, %v3071
  %v3073 = vpop.f32.mrf.mxu0
  %3074 = vmatprep.mubr.bf16.mxu0 0
  %3075 = vmatmul.mubr.bf16.gmra.mxu0 %v2985
  %v3076 = vpop.f32.mrf.mxu0
  %v3077 = vadd.f32 0.0, %v3076
  %v3078 = vpop.f32.mrf.mxu0
  %v3079 = vpop.f32.mrf.mxu0
  %v3080 = vadd.f32 0.0, %v3079
  %v3081 = vpop.f32.mrf.mxu0
  %3082 = vmatprep.mubr.bf16.mxu0 0
  %3083 = vmatmul.mubr.bf16.gmra.mxu0 %v2988
  %v3084 = vpop.f32.mrf.mxu0
  %v3085 = vadd.f32 0.0, %v3084
  %v3086 = vpop.f32.mrf.mxu0
  %v3087 = vpop.f32.mrf.mxu0
  %v3088 = vadd.f32 0.0, %v3087
  %v3089 = vpop.f32.mrf.mxu0
  %3090 = vdwg.mxu0
  %v3091 = vld [vmem:[%s8] sm:$0x1]
  %v3092 = vld [vmem:[%s9] sm:$0x1]
  %v3093 = vsel %vm1735, %v3029, 0.0
  %v3094 = vsel %vm1735, %v3032, 0.0
  %v3095 = vadd.f32 %v3093, %v3094
  %v3096 = vsel %vm1735, %v3037, 0.0
  %v3097 = vadd.f32 %v3095, %v3096
  %v3098 = vsel %vm1735, %v3040, 0.0
  %v3099 = vadd.f32 %v3097, %v3098
  %v3100 = vsel %vm1735, %v3045, 0.0
  %v3101 = vadd.f32 %v3099, %v3100
  %v3102 = vsel %vm1735, %v3048, 0.0
  %v3103 = vadd.f32 %v3101, %v3102
  %v3104 = vsel %vm1735, %v3053, 0.0
  %v3105 = vadd.f32 %v3103, %v3104
  %v3106 = vsel %vm1735, %v3056, 0.0
  %v3107 = vadd.f32 %v3105, %v3106
  %v3108 = vsel %vm1735, %v3061, 0.0
  %v3109 = vadd.f32 %v3107, %v3108
  %v3110 = vsel %vm1735, %v3064, 0.0
  %v3111 = vadd.f32 %v3109, %v3110
  %v3112 = vsel %vm1735, %v3069, 0.0
  %v3113 = vadd.f32 %v3111, %v3112
  %v3114 = vsel %vm1735, %v3072, 0.0
  %v3115 = vadd.f32 %v3113, %v3114
  %v3116 = vsel %vm1735, %v3077, 0.0
  %v3117 = vadd.f32 %v3115, %v3116
  %v3118 = vsel %vm1735, %v3080, 0.0
  %v3119 = vadd.f32 %v3117, %v3118
  %v3120 = vsel %vm1735, %v3085, 0.0
  %v3121 = vadd.f32 %v3119, %v3120
  %v3122 = vsel %vm1735, %v3088, 0.0
  %v3123 = vadd.f32 %v3121, %v3122
  %v3124 = vrot.slane %v3123, 4
  %v3125 = vadd.f32 %v3123, %v3124
  %v3126 = vrot.slane %v3125, 2
  %v3127 = vadd.f32 %v3125, %v3126
  %v3128 = vrot.slane %v3127, 1
  %v3129 = vadd.f32 %v3127, %v3128
  %v3130 = vmul.f32 %v3129, %v1773
  %v3131 = vsub.f32 %v3029, %v3130
  %v3132 = vsub.f32 %v3032, %v3130
  %v3133 = vsub.f32 %v3037, %v3130
  %v3134 = vsub.f32 %v3040, %v3130
  %v3135 = vsub.f32 %v3045, %v3130
  %v3136 = vsub.f32 %v3048, %v3130
  %v3137 = vsub.f32 %v3053, %v3130
  %v3138 = vsub.f32 %v3056, %v3130
  %v3139 = vsub.f32 %v3061, %v3130
  %v3140 = vsub.f32 %v3064, %v3130
  %v3141 = vsub.f32 %v3069, %v3130
  %v3142 = vsub.f32 %v3072, %v3130
  %v3143 = vsub.f32 %v3077, %v3130
  %v3144 = vsub.f32 %v3080, %v3130
  %v3145 = vsub.f32 %v3085, %v3130
  %v3146 = vsub.f32 %v3088, %v3130
  %v3147 = vmul.f32 %v3131, %v3131
  %v3148 = vmul.f32 %v3132, %v3132
  %v3149 = vmul.f32 %v3133, %v3133
  %v3150 = vmul.f32 %v3134, %v3134
  %v3151 = vmul.f32 %v3135, %v3135
  %v3152 = vmul.f32 %v3136, %v3136
  %v3153 = vmul.f32 %v3137, %v3137
  %v3154 = vmul.f32 %v3138, %v3138
  %v3155 = vmul.f32 %v3139, %v3139
  %v3156 = vmul.f32 %v3140, %v3140
  %v3157 = vmul.f32 %v3141, %v3141
  %v3158 = vmul.f32 %v3142, %v3142
  %v3159 = vmul.f32 %v3143, %v3143
  %v3160 = vmul.f32 %v3144, %v3144
  %v3161 = vmul.f32 %v3145, %v3145
  %v3162 = vmul.f32 %v3146, %v3146
  %v3163 = vsel %vm1735, %v3147, 0.0
  %v3164 = vsel %vm1735, %v3148, 0.0
  %v3165 = vadd.f32 %v3163, %v3164
  %v3166 = vsel %vm1735, %v3149, 0.0
  %v3167 = vadd.f32 %v3165, %v3166
  %v3168 = vsel %vm1735, %v3150, 0.0
  %v3169 = vadd.f32 %v3167, %v3168
  %v3170 = vsel %vm1735, %v3151, 0.0
  %v3171 = vadd.f32 %v3169, %v3170
  %v3172 = vsel %vm1735, %v3152, 0.0
  %v3173 = vadd.f32 %v3171, %v3172
  %v3174 = vsel %vm1735, %v3153, 0.0
  %v3175 = vadd.f32 %v3173, %v3174
  %v3176 = vsel %vm1735, %v3154, 0.0
  %v3177 = vadd.f32 %v3175, %v3176
  %v3178 = vsel %vm1735, %v3155, 0.0
  %v3179 = vadd.f32 %v3177, %v3178
  %v3180 = vsel %vm1735, %v3156, 0.0
  %v3181 = vadd.f32 %v3179, %v3180
  %v3182 = vsel %vm1735, %v3157, 0.0
  %v3183 = vadd.f32 %v3181, %v3182
  %v3184 = vsel %vm1735, %v3158, 0.0
  %v3185 = vadd.f32 %v3183, %v3184
  %v3186 = vsel %vm1735, %v3159, 0.0
  %v3187 = vadd.f32 %v3185, %v3186
  %v3188 = vsel %vm1735, %v3160, 0.0
  %v3189 = vadd.f32 %v3187, %v3188
  %v3190 = vsel %vm1735, %v3161, 0.0
  %v3191 = vadd.f32 %v3189, %v3190
  %v3192 = vsel %vm1735, %v3162, 0.0
  %v3193 = vadd.f32 %v3191, %v3192
  %v3194 = vrot.slane %v3193, 4
  %v3195 = vadd.f32 %v3193, %v3194
  %v3196 = vrot.slane %v3195, 2
  %v3197 = vadd.f32 %v3195, %v3196
  %v3198 = vrot.slane %v3197, 1
  %v3199 = vadd.f32 %v3197, %v3198
  %v3200 = vmul.f32 %v3199, %v1773
  %v3201 = vadd.f32 %v3200, 1e-05
  %v3202 = vrsqrt.pop %v3201
  %v3203 = vmul.f32 %v3131, %v3202
  %v3204 = vmul.f32 %v3132, %v3202
  %v3205 = vmul.f32 %v3133, %v3202
  %v3206 = vmul.f32 %v3134, %v3202
  %v3207 = vmul.f32 %v3135, %v3202
  %v3208 = vmul.f32 %v3136, %v3202
  %v3209 = vmul.f32 %v3137, %v3202
  %v3210 = vmul.f32 %v3138, %v3202
  %v3211 = vmul.f32 %v3139, %v3202
  %v3212 = vmul.f32 %v3140, %v3202
  %v3213 = vmul.f32 %v3141, %v3202
  %v3214 = vmul.f32 %v3142, %v3202
  %v3215 = vmul.f32 %v3143, %v3202
  %v3216 = vmul.f32 %v3144, %v3202
  %v3217 = vmul.f32 %v3145, %v3202
  %v3218 = vmul.f32 %v3146, %v3202
  %v3220 = vlaneseq
  %v3221 = vshrl.u32 %v3220, 7
  %v3222 = vsub.s32 0, %v3221
  %v3223 = vrot.slane %v3091, %v3222
  %v3225 = vmul.f32 %v3203, %v3223
  %v3226 = vmul.f32 %v3204, %v3223
  %v3227 = vmul.f32 %v3205, %v3223
  %v3228 = vmul.f32 %v3206, %v3223
  %v3229 = vmul.f32 %v3207, %v3223
  %v3230 = vmul.f32 %v3208, %v3223
  %v3231 = vmul.f32 %v3209, %v3223
  %v3232 = vmul.f32 %v3210, %v3223
  %v3233 = vmul.f32 %v3211, %v3223
  %v3234 = vmul.f32 %v3212, %v3223
  %v3235 = vmul.f32 %v3213, %v3223
  %v3236 = vmul.f32 %v3214, %v3223
  %v3237 = vmul.f32 %v3215, %v3223
  %v3238 = vmul.f32 %v3216, %v3223
  %v3239 = vmul.f32 %v3217, %v3223
  %v3240 = vmul.f32 %v3218, %v3223
  %v3242 = vlaneseq
  %v3243 = vshrl.u32 %v3242, 7
  %v3244 = vsub.s32 0, %v3243
  %v3245 = vrot.slane %v3092, %v3244
  %v3247 = vadd.f32 %v3225, %v3245
  %v3248 = vadd.f32 %v3226, %v3245
  %v3249 = vadd.f32 %v3227, %v3245
  %v3250 = vadd.f32 %v3228, %v3245
  %v3251 = vadd.f32 %v3229, %v3245
  %v3252 = vadd.f32 %v3230, %v3245
  %v3253 = vadd.f32 %v3231, %v3245
  %v3254 = vadd.f32 %v3232, %v3245
  %v3255 = vadd.f32 %v3233, %v3245
  %v3256 = vadd.f32 %v3234, %v3245
  %v3257 = vadd.f32 %v3235, %v3245
  %v3258 = vadd.f32 %v3236, %v3245
  %v3259 = vadd.f32 %v3237, %v3245
  %v3260 = vadd.f32 %v3238, %v3245
  %v3261 = vadd.f32 %v3239, %v3245
  %v3262 = vadd.f32 %v3240, %v3245
  %v3263 = vld [vmem:[%s10] sm:$0x3]
  %3264 = vrot.lane.b32.xlu0 %v1584, 112
  %v3265 = vpop.permute.xlu0 %3264
  %3266 = vrot.lane.b32.xlu0 %v1585, 112
  %v3267 = vpop.permute.xlu0 %3266
  %3268 = vrot.lane.b32.xlu0 %v1586, 112
  %v3269 = vpop.permute.xlu0 %3268
  %3270 = vrot.lane.b32.xlu0 %v1587, 112
  %v3271 = vpop.permute.xlu0 %3270
  %3272 = vrot.lane.b32.xlu0 %v1588, 112
  %v3273 = vpop.permute.xlu0 %3272
  %3274 = vrot.lane.b32.xlu0 %v1589, 112
  %v3275 = vpop.permute.xlu0 %3274
  %3276 = vrot.lane.b32.xlu0 %v1590, 112
  %v3277 = vpop.permute.xlu0 %3276
  %3278 = vrot.lane.b32.xlu0 %v1591, 112
  %v3279 = vpop.permute.xlu0 %3278
  %vm3280 = vcmask 31744
  %v3282 = vsel %vm3280, %v3265, 0
  %v3285 = vsel %vm3280, %v3267, 0
  %v3288 = vsel %vm3280, %v3269, 0
  %v3291 = vsel %vm3280, %v3271, 0
  %v3294 = vsel %vm3280, %v3273, 0
  %v3297 = vsel %vm3280, %v3275, 0
  %v3300 = vsel %vm3280, %v3277, 0
  %v3303 = vsel %vm3280, %v3279, 0
  %v3306 = vsel %vm1632, %v3263, 0
  %3308 = vmatprep.subr.bf16.mxu0 0
  %3309 = vmatpush1.bf16.msra.mxu0 0
  %3310 = vmatprep.subr.bf16.mxu0 0
  %3311 = vmatpush1.bf16.msra.mxu0 0
  %3312 = vmatprep.subr.bf16.mxu0 0
  %3313 = vmatpush1.bf16.msra.mxu0 0
  %3314 = vmatprep.subr.bf16.mxu0 0
  %3315 = vmatpush1.bf16.msra.mxu0 0
  %3316 = vmatprep.subr.bf16.mxu0 0
  %3317 = vmatpush1.bf16.msra.mxu0 0
  %3318 = vmatprep.subr.bf16.mxu0 0
  %3319 = vmatpush1.bf16.msra.mxu0 0
  %3320 = vmatprep.subr.bf16.mxu0 0
  %3321 = vmatpush1.bf16.msra.mxu0 0
  %3322 = vmatprep.subr.bf16.mxu0 0
  %3323 = vmatpush1.bf16.msra.mxu0 %v3306
  %3324 = vmatprep.subr.bf16.mxu0 0
  %3325 = vmatpush2.bf16.msra.mxu0 0
  %3326 = vmatprep.subr.bf16.mxu0 0
  %3327 = vmatpush2.bf16.msra.mxu0 0
  %3328 = vmatprep.subr.bf16.mxu0 0
  %3329 = vmatpush2.bf16.msra.mxu0 0
  %3330 = vmatprep.subr.bf16.mxu0 0
  %3331 = vmatpush2.bf16.msra.mxu0 0
  %3332 = vmatprep.subr.bf16.mxu0 0
  %3333 = vmatpush2.bf16.msra.mxu0 0
  %3334 = vmatprep.subr.bf16.mxu0 0
  %3335 = vmatpush2.bf16.msra.mxu0 0
  %3336 = vmatprep.subr.bf16.mxu0 0
  %3337 = vmatpush2.bf16.msra.mxu0 0
  %3338 = vmatprep.subr.bf16.mxu0 0
  %3339 = vmatpush2.bf16.msra.mxu0 0
  %3340 = vmatprep.mubr.bf16.mxu0 0
  %3341 = vmatmul.mubr.bf16.gmra.mxu0 %v3282
  %v3342 = vpop.f32.mrf.mxu0
  %v3343 = vadd.f32 0.0, %v3342
  %v3344 = vpop.f32.mrf.mxu0
  %v3345 = vpop.f32.mrf.mxu0
  %v3346 = vadd.f32 0.0, %v3345
  %v3347 = vpop.f32.mrf.mxu0
  %3348 = vmatprep.mubr.bf16.mxu0 0
  %3349 = vmatmul.mubr.bf16.gmra.mxu0 %v3285
  %v3350 = vpop.f32.mrf.mxu0
  %v3351 = vadd.f32 0.0, %v3350
  %v3352 = vpop.f32.mrf.mxu0
  %v3353 = vpop.f32.mrf.mxu0
  %v3354 = vadd.f32 0.0, %v3353
  %v3355 = vpop.f32.mrf.mxu0
  %3356 = vmatprep.mubr.bf16.mxu0 0
  %3357 = vmatmul.mubr.bf16.gmra.mxu0 %v3288
  %v3358 = vpop.f32.mrf.mxu0
  %v3359 = vadd.f32 0.0, %v3358
  %v3360 = vpop.f32.mrf.mxu0
  %v3361 = vpop.f32.mrf.mxu0
  %v3362 = vadd.f32 0.0, %v3361
  %v3363 = vpop.f32.mrf.mxu0
  %3364 = vmatprep.mubr.bf16.mxu0 0
  %3365 = vmatmul.mubr.bf16.gmra.mxu0 %v3291
  %v3366 = vpop.f32.mrf.mxu0
  %v3367 = vadd.f32 0.0, %v3366
  %v3368 = vpop.f32.mrf.mxu0
  %v3369 = vpop.f32.mrf.mxu0
  %v3370 = vadd.f32 0.0, %v3369
  %v3371 = vpop.f32.mrf.mxu0
  %3372 = vmatprep.mubr.bf16.mxu0 0
  %3373 = vmatmul.mubr.bf16.gmra.mxu0 %v3294
  %v3374 = vpop.f32.mrf.mxu0
  %v3375 = vadd.f32 0.0, %v3374
  %v3376 = vpop.f32.mrf.mxu0
  %v3377 = vpop.f32.mrf.mxu0
  %v3378 = vadd.f32 0.0, %v3377
  %v3379 = vpop.f32.mrf.mxu0
  %3380 = vmatprep.mubr.bf16.mxu0 0
  %3381 = vmatmul.mubr.bf16.gmra.mxu0 %v3297
  %v3382 = vpop.f32.mrf.mxu0
  %v3383 = vadd.f32 0.0, %v3382
  %v3384 = vpop.f32.mrf.mxu0
  %v3385 = vpop.f32.mrf.mxu0
  %v3386 = vadd.f32 0.0, %v3385
  %v3387 = vpop.f32.mrf.mxu0
  %3388 = vmatprep.mubr.bf16.mxu0 0
  %3389 = vmatmul.mubr.bf16.gmra.mxu0 %v3300
  %v3390 = vpop.f32.mrf.mxu0
  %v3391 = vadd.f32 0.0, %v3390
  %v3392 = vpop.f32.mrf.mxu0
  %v3393 = vpop.f32.mrf.mxu0
  %v3394 = vadd.f32 0.0, %v3393
  %v3395 = vpop.f32.mrf.mxu0
  %3396 = vmatprep.mubr.bf16.mxu0 0
  %3397 = vmatmul.mubr.bf16.gmra.mxu0 %v3303
  %v3398 = vpop.f32.mrf.mxu0
  %v3399 = vadd.f32 0.0, %v3398
  %v3400 = vpop.f32.mrf.mxu0
  %v3401 = vpop.f32.mrf.mxu0
  %v3402 = vadd.f32 0.0, %v3401
  %v3403 = vpop.f32.mrf.mxu0
  %3404 = vdwg.mxu0
  %v3405 = vld [vmem:[%s11] sm:$0x1]
  %v3406 = vld [vmem:[%s12] sm:$0x1]
  %v3407 = vsel %vm1735, %v3343, 0.0
  %v3408 = vsel %vm1735, %v3346, 0.0
  %v3409 = vadd.f32 %v3407, %v3408
  %v3410 = vsel %vm1735, %v3351, 0.0
  %v3411 = vadd.f32 %v3409, %v3410
  %v3412 = vsel %vm1735, %v3354, 0.0
  %v3413 = vadd.f32 %v3411, %v3412
  %v3414 = vsel %vm1735, %v3359, 0.0
  %v3415 = vadd.f32 %v3413, %v3414
  %v3416 = vsel %vm1735, %v3362, 0.0
  %v3417 = vadd.f32 %v3415, %v3416
  %v3418 = vsel %vm1735, %v3367, 0.0
  %v3419 = vadd.f32 %v3417, %v3418
  %v3420 = vsel %vm1735, %v3370, 0.0
  %v3421 = vadd.f32 %v3419, %v3420
  %v3422 = vsel %vm1735, %v3375, 0.0
  %v3423 = vadd.f32 %v3421, %v3422
  %v3424 = vsel %vm1735, %v3378, 0.0
  %v3425 = vadd.f32 %v3423, %v3424
  %v3426 = vsel %vm1735, %v3383, 0.0
  %v3427 = vadd.f32 %v3425, %v3426
  %v3428 = vsel %vm1735, %v3386, 0.0
  %v3429 = vadd.f32 %v3427, %v3428
  %v3430 = vsel %vm1735, %v3391, 0.0
  %v3431 = vadd.f32 %v3429, %v3430
  %v3432 = vsel %vm1735, %v3394, 0.0
  %v3433 = vadd.f32 %v3431, %v3432
  %v3434 = vsel %vm1735, %v3399, 0.0
  %v3435 = vadd.f32 %v3433, %v3434
  %v3436 = vsel %vm1735, %v3402, 0.0
  %v3437 = vadd.f32 %v3435, %v3436
  %v3438 = vrot.slane %v3437, 4
  %v3439 = vadd.f32 %v3437, %v3438
  %v3440 = vrot.slane %v3439, 2
  %v3441 = vadd.f32 %v3439, %v3440
  %v3442 = vrot.slane %v3441, 1
  %v3443 = vadd.f32 %v3441, %v3442
  %v3444 = vmul.f32 %v3443, %v1773
  %v3445 = vsub.f32 %v3343, %v3444
  %v3446 = vsub.f32 %v3346, %v3444
  %v3447 = vsub.f32 %v3351, %v3444
  %v3448 = vsub.f32 %v3354, %v3444
  %v3449 = vsub.f32 %v3359, %v3444
  %v3450 = vsub.f32 %v3362, %v3444
  %v3451 = vsub.f32 %v3367, %v3444
  %v3452 = vsub.f32 %v3370, %v3444
  %v3453 = vsub.f32 %v3375, %v3444
  %v3454 = vsub.f32 %v3378, %v3444
  %v3455 = vsub.f32 %v3383, %v3444
  %v3456 = vsub.f32 %v3386, %v3444
  %v3457 = vsub.f32 %v3391, %v3444
  %v3458 = vsub.f32 %v3394, %v3444
  %v3459 = vsub.f32 %v3399, %v3444
  %v3460 = vsub.f32 %v3402, %v3444
  %v3461 = vmul.f32 %v3445, %v3445
  %v3462 = vmul.f32 %v3446, %v3446
  %v3463 = vmul.f32 %v3447, %v3447
  %v3464 = vmul.f32 %v3448, %v3448
  %v3465 = vmul.f32 %v3449, %v3449
  %v3466 = vmul.f32 %v3450, %v3450
  %v3467 = vmul.f32 %v3451, %v3451
  %v3468 = vmul.f32 %v3452, %v3452
  %v3469 = vmul.f32 %v3453, %v3453
  %v3470 = vmul.f32 %v3454, %v3454
  %v3471 = vmul.f32 %v3455, %v3455
  %v3472 = vmul.f32 %v3456, %v3456
  %v3473 = vmul.f32 %v3457, %v3457
  %v3474 = vmul.f32 %v3458, %v3458
  %v3475 = vmul.f32 %v3459, %v3459
  %v3476 = vmul.f32 %v3460, %v3460
  %v3477 = vsel %vm1735, %v3461, 0.0
  %v3478 = vsel %vm1735, %v3462, 0.0
  %v3479 = vadd.f32 %v3477, %v3478
  %v3480 = vsel %vm1735, %v3463, 0.0
  %v3481 = vadd.f32 %v3479, %v3480
  %v3482 = vsel %vm1735, %v3464, 0.0
  %v3483 = vadd.f32 %v3481, %v3482
  %v3484 = vsel %vm1735, %v3465, 0.0
  %v3485 = vadd.f32 %v3483, %v3484
  %v3486 = vsel %vm1735, %v3466, 0.0
  %v3487 = vadd.f32 %v3485, %v3486
  %v3488 = vsel %vm1735, %v3467, 0.0
  %v3489 = vadd.f32 %v3487, %v3488
  %v3490 = vsel %vm1735, %v3468, 0.0
  %v3491 = vadd.f32 %v3489, %v3490
  %v3492 = vsel %vm1735, %v3469, 0.0
  %v3493 = vadd.f32 %v3491, %v3492
  %v3494 = vsel %vm1735, %v3470, 0.0
  %v3495 = vadd.f32 %v3493, %v3494
  %v3496 = vsel %vm1735, %v3471, 0.0
  %v3497 = vadd.f32 %v3495, %v3496
  %v3498 = vsel %vm1735, %v3472, 0.0
  %v3499 = vadd.f32 %v3497, %v3498
  %v3500 = vsel %vm1735, %v3473, 0.0
  %v3501 = vadd.f32 %v3499, %v3500
  %v3502 = vsel %vm1735, %v3474, 0.0
  %v3503 = vadd.f32 %v3501, %v3502
  %v3504 = vsel %vm1735, %v3475, 0.0
  %v3505 = vadd.f32 %v3503, %v3504
  %v3506 = vsel %vm1735, %v3476, 0.0
  %v3507 = vadd.f32 %v3505, %v3506
  %v3508 = vrot.slane %v3507, 4
  %v3509 = vadd.f32 %v3507, %v3508
  %v3510 = vrot.slane %v3509, 2
  %v3511 = vadd.f32 %v3509, %v3510
  %v3512 = vrot.slane %v3511, 1
  %v3513 = vadd.f32 %v3511, %v3512
  %v3514 = vmul.f32 %v3513, %v1773
  %v3515 = vadd.f32 %v3514, 1e-05
  %v3516 = vrsqrt.pop %v3515
  %v3517 = vmul.f32 %v3445, %v3516
  %v3518 = vmul.f32 %v3446, %v3516
  %v3519 = vmul.f32 %v3447, %v3516
  %v3520 = vmul.f32 %v3448, %v3516
  %v3521 = vmul.f32 %v3449, %v3516
  %v3522 = vmul.f32 %v3450, %v3516
  %v3523 = vmul.f32 %v3451, %v3516
  %v3524 = vmul.f32 %v3452, %v3516
  %v3525 = vmul.f32 %v3453, %v3516
  %v3526 = vmul.f32 %v3454, %v3516
  %v3527 = vmul.f32 %v3455, %v3516
  %v3528 = vmul.f32 %v3456, %v3516
  %v3529 = vmul.f32 %v3457, %v3516
  %v3530 = vmul.f32 %v3458, %v3516
  %v3531 = vmul.f32 %v3459, %v3516
  %v3532 = vmul.f32 %v3460, %v3516
  %v3534 = vlaneseq
  %v3535 = vshrl.u32 %v3534, 7
  %v3536 = vsub.s32 0, %v3535
  %v3537 = vrot.slane %v3405, %v3536
  %v3539 = vmul.f32 %v3517, %v3537
  %v3540 = vmul.f32 %v3518, %v3537
  %v3541 = vmul.f32 %v3519, %v3537
  %v3542 = vmul.f32 %v3520, %v3537
  %v3543 = vmul.f32 %v3521, %v3537
  %v3544 = vmul.f32 %v3522, %v3537
  %v3545 = vmul.f32 %v3523, %v3537
  %v3546 = vmul.f32 %v3524, %v3537
  %v3547 = vmul.f32 %v3525, %v3537
  %v3548 = vmul.f32 %v3526, %v3537
  %v3549 = vmul.f32 %v3527, %v3537
  %v3550 = vmul.f32 %v3528, %v3537
  %v3551 = vmul.f32 %v3529, %v3537
  %v3552 = vmul.f32 %v3530, %v3537
  %v3553 = vmul.f32 %v3531, %v3537
  %v3554 = vmul.f32 %v3532, %v3537
  %v3556 = vlaneseq
  %v3557 = vshrl.u32 %v3556, 7
  %v3558 = vsub.s32 0, %v3557
  %v3559 = vrot.slane %v3406, %v3558
  %v3561 = vadd.f32 %v3539, %v3559
  %v3562 = vadd.f32 %v3540, %v3559
  %v3563 = vadd.f32 %v3541, %v3559
  %v3564 = vadd.f32 %v3542, %v3559
  %v3565 = vadd.f32 %v3543, %v3559
  %v3566 = vadd.f32 %v3544, %v3559
  %v3567 = vadd.f32 %v3545, %v3559
  %v3568 = vadd.f32 %v3546, %v3559
  %v3569 = vadd.f32 %v3547, %v3559
  %v3570 = vadd.f32 %v3548, %v3559
  %v3571 = vadd.f32 %v3549, %v3559
  %v3572 = vadd.f32 %v3550, %v3559
  %v3573 = vadd.f32 %v3551, %v3559
  %v3574 = vadd.f32 %v3552, %v3559
  %v3575 = vadd.f32 %v3553, %v3559
  %v3576 = vadd.f32 %v3554, %v3559
  %v3577 = vadd.f32 %v3247, %v3561
  %v3578 = vadd.f32 %v3248, %v3562
  %v3579 = vadd.f32 %v3249, %v3563
  %v3580 = vadd.f32 %v3250, %v3564
  %v3581 = vadd.f32 %v3251, %v3565
  %v3582 = vadd.f32 %v3252, %v3566
  %v3583 = vadd.f32 %v3253, %v3567
  %v3584 = vadd.f32 %v3254, %v3568
  %v3585 = vadd.f32 %v3255, %v3569
  %v3586 = vadd.f32 %v3256, %v3570
  %v3587 = vadd.f32 %v3257, %v3571
  %v3588 = vadd.f32 %v3258, %v3572
  %v3589 = vadd.f32 %v3259, %v3573
  %v3590 = vadd.f32 %v3260, %v3574
  %v3591 = vadd.f32 %v3261, %v3575
  %v3592 = vadd.f32 %v3262, %v3576
  %v3593 = vmax.f32 %v3577, 0.0
  %v3594 = vmax.f32 %v3578, 0.0
  %v3595 = vmax.f32 %v3579, 0.0
  %v3596 = vmax.f32 %v3580, 0.0
  %v3597 = vmax.f32 %v3581, 0.0
  %v3598 = vmax.f32 %v3582, 0.0
  %v3599 = vmax.f32 %v3583, 0.0
  %v3600 = vmax.f32 %v3584, 0.0
  %v3601 = vmax.f32 %v3585, 0.0
  %v3602 = vmax.f32 %v3586, 0.0
  %v3603 = vmax.f32 %v3587, 0.0
  %v3604 = vmax.f32 %v3588, 0.0
  %v3605 = vmax.f32 %v3589, 0.0
  %v3606 = vmax.f32 %v3590, 0.0
  %v3607 = vmax.f32 %v3591, 0.0
  %v3608 = vmax.f32 %v3592, 0.0
  %3609 = vst.msk [vmem:[%s13] sm:$0xff] %vm1735, %v3593
  %3610 = vst.msk [vmem:[%s13 + $0x8] sm:$0xff] %vm1735, %v3594
  %3611 = vst.msk [vmem:[%s13 + $0x10] sm:$0xff] %vm1735, %v3595
  %3612 = vst.msk [vmem:[%s13 + $0x18] sm:$0xff] %vm1735, %v3596
  %3613 = vst.msk [vmem:[%s13 + $0x20] sm:$0xff] %vm1735, %v3597
  %3614 = vst.msk [vmem:[%s13 + $0x28] sm:$0xff] %vm1735, %v3598
  %3615 = vst.msk [vmem:[%s13 + $0x30] sm:$0xff] %vm1735, %v3599
  %3616 = vst.msk [vmem:[%s13 + $0x38] sm:$0xff] %vm1735, %v3600
  %3617 = vst.msk [vmem:[%s13 + $0x40] sm:$0xff] %vm1735, %v3601
  %3618 = vst.msk [vmem:[%s13 + $0x48] sm:$0xff] %vm1735, %v3602
  %3619 = vst.msk [vmem:[%s13 + $0x50] sm:$0xff] %vm1735, %v3603
  %3620 = vst.msk [vmem:[%s13 + $0x58] sm:$0xff] %vm1735, %v3604
  %3621 = vst.msk [vmem:[%s13 + $0x60] sm:$0xff] %vm1735, %v3605
  %3622 = vst.msk [vmem:[%s13 + $0x68] sm:$0xff] %vm1735, %v3606
  %3623 = vst.msk [vmem:[%s13 + $0x70] sm:$0xff] %vm1735, %v3607
  %3624 = vst.msk [vmem:[%s13 + $0x78] sm:$0xff] %vm1735, %v3608
  // Predicated region
  $region54: #{tpu_custom_call.1} parent=0 // pred_check
    _
  $region55: #{tpu_custom_call.1} parent=0 // pred_check_branch
    %3626 = sbr.rel (0) target = $region57
  $region56: #{tpu_custom_call.1} parent=0 // pred_region
    _
  $region57: #{tpu_custom_call.1} parent=0 // pred_fallthru
    _
  // Predicated region
  $region58: #{tpu_custom_call.1} parent=0 // pred_check
    _
  $region59: #{tpu_custom_call.1} parent=0 // pred_check_branch
    %3628 = sbr.rel (0) target = $region61
  $region60: #{tpu_custom_call.1} parent=0 // pred_region
    _
  $region61: #{tpu_custom_call.1} parent=0 // pred_fallthru
    _

</llo_original>
